<compile_context>
chip_gen: v7x
topology: tpu7x:2x2x1
jax: 0.10.0
libtpu: 0.0.40
codegen_flags: <defaults>
</compile_context>

<pallas_src>
import jax
import jax.numpy as jnp
from jax.experimental import pallas as pl
from jax.experimental.pallas import tpu as pltpu


# ---------------------------------------------------------------------------
# Kernel: fused affine channel-mix + separable bicubic 4x downsample.
# ---------------------------------------------------------------------------
def _fused_kernel(at_sm, bt_sm, c_sm,          # SMEM: (Cm,Cm), (Cm,Cp), (Cm,)
                  ini_ref, pan_ref,            # VMEM: (1,Cm,TH,W), (1,Cp,TH,W)
                  dht_ref, dw_ref,             # VMEM: (TH4,TH), (W,W4)
                  out1_ref, down_ref):         # VMEM: (1,Cm,TH,W), (1,Cm,TH4,W4)
    cm = ini_ref.shape[1]
    cp = pan_ref.shape[1]

    dht = dht_ref[...]                         # (TH4, TH)
    dw = dw_ref[...]                           # (W, W4)

    # Unrolled over the (small) channel dims; every FMA is a lane-wide VPU op
    # on a (TH, W) slab with a scalar weight broadcast from SMEM.
    for i in range(cm):
        acc = at_sm[i, 0] * ini_ref[0, 0].astype(jnp.float32)
        for j in range(1, cm):
            acc = acc + at_sm[i, j] * ini_ref[0, j].astype(jnp.float32)
        for k in range(cp):
            acc = acc + bt_sm[i, k] * pan_ref[0, k].astype(jnp.float32)
        acc = acc + c_sm[i]                    # (TH, W) == (output + IniFus)/2

        out1_ref[0, i] = acc.astype(out1_ref.dtype)

        # Separable bicubic 4x downsample: height pass then width pass.
        ydown = jnp.dot(dht, acc, preferred_element_type=jnp.float32)   # (TH4, W)
        down_ref[0, i] = jnp.dot(
            ydown, dw, preferred_element_type=jnp.float32).astype(down_ref.dtype)


# ---------------------------------------------------------------------------
# Parameter / constant setup (wrapper-side, outside the kernel).
# ---------------------------------------------------------------------------
def _bicubic_down4_matrix(size):
    """(size, size//4): PyTorch bicubic, scale 0.25, align_corners=False.

    src = 4*dst + 1.5 -> taps at 4*dst+{0,1,2,3} with fixed fraction t=0.5,
    cubic (a=-0.75) weights [-0.09375, 0.59375, 0.59375, -0.09375].
    """
    assert size % 4 == 0
    w = jnp.array([-0.09375, 0.59375, 0.59375, -0.09375], jnp.float32)
    out = size // 4
    m = jnp.zeros((size, out), jnp.float32)
    cols = jnp.arange(out)
    for j in range(4):
        m = m.at[4 * cols + j, cols].set(w[j])
    return m


def _compose_affine(params):
    """Fold sD -> PanFN -> sSR -> MSFN -> (out + x)/2 into out1 = x@A + p@B + c."""
    w_sd, b_sd = params["w_sd"], params["b_sd"]
    w_pa, w_pb, b_p = params["w_pa"], params["w_pb"], params["b_p"]
    w_sr, b_sr = params["w_sr"], params["b_sr"]
    w_ma, w_mb, b_m = params["w_ma"], params["w_mb"], params["b_m"]
    cm = w_sd.shape[0]
    chain = w_sd @ w_pa @ w_sr @ w_mb                              # (Cm, Cm)
    a = 0.5 * (jnp.eye(cm, dtype=jnp.float32) + w_ma + chain)      # (Cm, Cm)
    b = 0.5 * (w_pb @ w_sr @ w_mb)                                 # (Cp, Cm)
    c = 0.5 * (((b_sd @ w_pa + b_p) @ w_sr + b_sr) @ w_mb + b_m)   # (1, Cm)
    # Channel-major (transposed) form used by the kernel.
    return a.T, b.T, c.reshape(-1)


def _pick_tile_h(h, w, cm, cp, target_bytes=4 << 20):
    """Largest H-tile (full H, or a multiple of 32) whose f32 traffic fits the target."""
    bytes_per_row = (2 * cm + cp) * w * 4
    if h * bytes_per_row <= target_bytes:
        return h
    cands = [t for t in range(32, h, 32)
             if h % t == 0 and t * bytes_per_row <= target_bytes]
    return max(cands) if cands else h


def make_params(key, channel_msi, channel_pan):
    ks = jax.random.split(key, 11)
    s = 0.2
    return dict(
        w_sd=s * jax.random.normal(ks[0], (channel_msi, channel_pan), jnp.float32),
        b_sd=s * jax.random.normal(ks[1], (1, channel_pan), jnp.float32),
        w_pa=s * jax.random.normal(ks[2], (channel_pan, channel_pan), jnp.float32),
        w_pb=s * jax.random.normal(ks[3], (channel_pan, channel_pan), jnp.float32),
        b_p=s * jax.random.normal(ks[4], (1, channel_pan), jnp.float32),
        w_sr=s * jax.random.normal(ks[5], (channel_pan, channel_msi), jnp.float32),
        b_sr=s * jax.random.normal(ks[6], (1, channel_msi), jnp.float32),
        w_ma=s * jax.random.normal(ks[7], (channel_msi, channel_msi), jnp.float32),
        w_mb=s * jax.random.normal(ks[8], (channel_msi, channel_msi), jnp.float32),
        b_m=s * jax.random.normal(ks[9], (1, channel_msi), jnp.float32),
    )


# ---------------------------------------------------------------------------
# Forward wrapper.
# ---------------------------------------------------------------------------
def ssr_help_forward(pan, ini_fus, params, *, tile_h=None):
    """pan: (N, Cp, H, W), ini_fus: (N, Cm, H, W)  (NCHW, PyTorch convention)."""
    N, Cm, H, W = ini_fus.shape
    Np, Cp, Hp, Wp = pan.shape
    assert Np == N and (Hp, Wp) == (H, W)
    assert H % 4 == 0 and W % 4 == 0
    if tile_h is None:
        tile_h = _pick_tile_h(H, W, Cm, Cp)
    assert H % tile_h == 0 and tile_h % 4 == 0
    assert tile_h == H or tile_h % 32 == 0     # keeps the down-block 8-aligned
    H4, W4, TH4 = H // 4, W // 4, tile_h // 4

    at, bt, c = _compose_affine(params)        # (Cm,Cm), (Cm,Cp), (Cm,)
    dht = _bicubic_down4_matrix(tile_h).T      # (TH4, tile_h)
    dw = _bicubic_down4_matrix(W)              # (W, W4)

    smem = pl.BlockSpec(memory_space=pltpu.MemorySpace.SMEM)
    grid = (N, H // tile_h)

    out1, down = pl.pallas_call(
        _fused_kernel,
        out_shape=(jax.ShapeDtypeStruct((N, Cm, H, W), jnp.float32),
                   jax.ShapeDtypeStruct((N, Cm, H4, W4), jnp.float32)),
        grid=grid,
        in_specs=[smem, smem, smem,
                  pl.BlockSpec((1, Cm, tile_h, W), lambda n, h: (n, 0, h, 0)),
                  pl.BlockSpec((1, Cp, tile_h, W), lambda n, h: (n, 0, h, 0)),
                  pl.BlockSpec((TH4, tile_h), lambda n, h: (0, 0)),
                  pl.BlockSpec((W, W4), lambda n, h: (0, 0))],
        out_specs=(pl.BlockSpec((1, Cm, tile_h, W), lambda n, h: (n, 0, h, 0)),
                   pl.BlockSpec((1, Cm, TH4, W4), lambda n, h: (n, 0, h, 0))),
        compiler_params=pltpu.CompilerParams(
            dimension_semantics=("parallel", "parallel")),
    )(at, bt, c, ini_fus, pan, dht, dw)
    return out1, down


# ---------------------------------------------------------------------------
# Pure-JAX reference (un-fused, matches the PyTorch graph as modeled).
# ---------------------------------------------------------------------------
def _reference(pan, ini_fus, params):
    N, Cm, H, W = ini_fus.shape
    Cp = pan.shape[1]
    x = jnp.transpose(ini_fus, (0, 2, 3, 1)).reshape(-1, Cm)
    p = jnp.transpose(pan, (0, 2, 3, 1)).reshape(-1, Cp)
    fsd = x @ params["w_sd"] + params["b_sd"]
    pf = fsd @ params["w_pa"] + p @ params["w_pb"] + params["b_p"]
    fsr = pf @ params["w_sr"] + params["b_sr"]
    out = x @ params["w_ma"] + fsr @ params["w_mb"] + params["b_m"]
    out1 = 0.5 * (out + x)
    out1 = jnp.transpose(out1.reshape(N, H, W, Cm), (0, 3, 1, 2))
    dh = _bicubic_down4_matrix(H)
    dwm = _bicubic_down4_matrix(W)
    down = jnp.einsum("nchw,hk,wl->nckl", out1, dh, dwm)
    return out1, down


# ---------------------------------------------------------------------------
if __name__ == "__main__":
    N, channel_msi, channel_pan, H, W = 2, 8, 4, 16, 16

    key = jax.random.PRNGKey(0)
    k_pan, k_fus, k_par = jax.random.split(key, 3)
    pan = jax.random.normal(k_pan, (N, channel_pan, H, W), jnp.float32)
    ini_fus = jax.random.normal(k_fus, (N, channel_msi, H, W), jnp.float32)
    params = make_params(k_par, channel_msi, channel_pan)

    out1, spa_down = ssr_help_forward(pan, ini_fus, params)
    jax.block_until_ready((out1, spa_down))

    assert out1.shape == (N, channel_msi, H, W)
    assert spa_down.shape == (N, channel_msi, H // 4, W // 4)
    assert jnp.all(jnp.isfinite(out1)) and jnp.all(jnp.isfinite(spa_down))

    ref1, refd = _reference(pan, ini_fus, params)
    assert jnp.allclose(out1, ref1, rtol=2e-3, atol=2e-3)
    assert jnp.allclose(spa_down, refd, rtol=2e-3, atol=2e-3)
    print("KERNEL_OK")
</pallas_src>

<mosaic_0001>
module attributes {stable_mosaic.version = 11 : i64} {
  func.func @_fused_kernel(%arg0: i32, %arg1: i32, %arg2: memref<8x8xf32, #tpu.memory_space<smem>>, %arg3: memref<8x4xf32, #tpu.memory_space<smem>>, %arg4: memref<8xf32, #tpu.memory_space<smem>>, %arg5: memref<1x8x16x16xf32, #tpu.memory_space<vmem>>, %arg6: memref<1x4x16x16xf32, #tpu.memory_space<vmem>>, %arg7: memref<4x16xf32, #tpu.memory_space<vmem>>, %arg8: memref<16x4xf32, #tpu.memory_space<vmem>>, %arg9: memref<1x8x16x16xf32, #tpu.memory_space<vmem>>, %arg10: memref<1x8x4x4xf32, #tpu.memory_space<vmem>>) attributes {dimension_semantics = [#tpu.dimension_semantics<parallel>, #tpu.dimension_semantics<parallel>], iteration_bounds = array<i64: 2, 1>, scalar_prefetch = 0 : i64, scratch_operands = 0 : i64, tpu.core_type = #tpu.core_type<tc>, window_params = [{transform_indices = @transform_0, window_bounds = array<i64: 8, 8>}, {transform_indices = @transform_1, window_bounds = array<i64: 8, 4>}, {transform_indices = @transform_2, window_bounds = array<i64: 8>}, {transform_indices = @transform_3, window_bounds = array<i64: 1, 8, 16, 16>}, {transform_indices = @transform_4, window_bounds = array<i64: 1, 4, 16, 16>}, {pipeline_mode = #tpu.pipeline_mode<synchronous>, transform_indices = @transform_5, window_bounds = array<i64: 4, 16>}, {pipeline_mode = #tpu.pipeline_mode<synchronous>, transform_indices = @transform_6, window_bounds = array<i64: 16, 4>}, {transform_indices = @transform_7, window_bounds = array<i64: 1, 8, 16, 16>}, {transform_indices = @transform_8, window_bounds = array<i64: 1, 8, 4, 4>}]} {
    %c0 = arith.constant 0 : index
    %c0_0 = arith.constant 0 : index
    %0 = vector.load %arg7[%c0, %c0_0] : memref<4x16xf32, #tpu.memory_space<vmem>>, vector<4x16xf32>
    %c0_1 = arith.constant 0 : index
    %c0_2 = arith.constant 0 : index
    %1 = vector.load %arg8[%c0_1, %c0_2] : memref<16x4xf32, #tpu.memory_space<vmem>>, vector<16x4xf32>
    %c0_3 = arith.constant 0 : index
    %c0_4 = arith.constant 0 : index
    %2 = memref.load %arg2[%c0_3, %c0_4] : memref<8x8xf32, #tpu.memory_space<smem>>
    %c0_5 = arith.constant 0 : index
    %c0_6 = arith.constant 0 : index
    %c0_7 = arith.constant 0 : index
    %c0_8 = arith.constant 0 : index
    %3 = vector.load %arg5[%c0_5, %c0_6, %c0_7, %c0_8] : memref<1x8x16x16xf32, #tpu.memory_space<vmem>>, vector<1x1x16x16xf32>
    %4 = vector.shape_cast %3 : vector<1x1x16x16xf32> to vector<16x16xf32>
    %5 = vector.broadcast %2 : f32 to vector<16x16xf32>
    %6 = arith.mulf %5, %4 : vector<16x16xf32>
    %c0_9 = arith.constant 0 : index
    %c1 = arith.constant 1 : index
    %7 = memref.load %arg2[%c0_9, %c1] : memref<8x8xf32, #tpu.memory_space<smem>>
    %c0_10 = arith.constant 0 : index
    %c1_11 = arith.constant 1 : index
    %c0_12 = arith.constant 0 : index
    %c0_13 = arith.constant 0 : index
    %8 = vector.load %arg5[%c0_10, %c1_11, %c0_12, %c0_13] : memref<1x8x16x16xf32, #tpu.memory_space<vmem>>, vector<1x1x16x16xf32>
    %9 = vector.shape_cast %8 : vector<1x1x16x16xf32> to vector<16x16xf32>
    %10 = vector.broadcast %7 : f32 to vector<16x16xf32>
    %11 = arith.mulf %10, %9 : vector<16x16xf32>
    %12 = arith.addf %6, %11 : vector<16x16xf32>
    %c0_14 = arith.constant 0 : index
    %c2 = arith.constant 2 : index
    %13 = memref.load %arg2[%c0_14, %c2] : memref<8x8xf32, #tpu.memory_space<smem>>
    %c0_15 = arith.constant 0 : index
    %c2_16 = arith.constant 2 : index
    %c0_17 = arith.constant 0 : index
    %c0_18 = arith.constant 0 : index
    %14 = vector.load %arg5[%c0_15, %c2_16, %c0_17, %c0_18] : memref<1x8x16x16xf32, #tpu.memory_space<vmem>>, vector<1x1x16x16xf32>
    %15 = vector.shape_cast %14 : vector<1x1x16x16xf32> to vector<16x16xf32>
    %16 = vector.broadcast %13 : f32 to vector<16x16xf32>
    %17 = arith.mulf %16, %15 : vector<16x16xf32>
    %18 = arith.addf %12, %17 : vector<16x16xf32>
    %c0_19 = arith.constant 0 : index
    %c3 = arith.constant 3 : index
    %19 = memref.load %arg2[%c0_19, %c3] : memref<8x8xf32, #tpu.memory_space<smem>>
    %c0_20 = arith.constant 0 : index
    %c3_21 = arith.constant 3 : index
    %c0_22 = arith.constant 0 : index
    %c0_23 = arith.constant 0 : index
    %20 = vector.load %arg5[%c0_20, %c3_21, %c0_22, %c0_23] : memref<1x8x16x16xf32, #tpu.memory_space<vmem>>, vector<1x1x16x16xf32>
    %21 = vector.shape_cast %20 : vector<1x1x16x16xf32> to vector<16x16xf32>
    %22 = vector.broadcast %19 : f32 to vector<16x16xf32>
    %23 = arith.mulf %22, %21 : vector<16x16xf32>
    %24 = arith.addf %18, %23 : vector<16x16xf32>
    %c0_24 = arith.constant 0 : index
    %c4 = arith.constant 4 : index
    %25 = memref.load %arg2[%c0_24, %c4] : memref<8x8xf32, #tpu.memory_space<smem>>
    %c0_25 = arith.constant 0 : index
    %c4_26 = arith.constant 4 : index
    %c0_27 = arith.constant 0 : index
    %c0_28 = arith.constant 0 : index
    %26 = vector.load %arg5[%c0_25, %c4_26, %c0_27, %c0_28] : memref<1x8x16x16xf32, #tpu.memory_space<vmem>>, vector<1x1x16x16xf32>
    %27 = vector.shape_cast %26 : vector<1x1x16x16xf32> to vector<16x16xf32>
    %28 = vector.broadcast %25 : f32 to vector<16x16xf32>
    %29 = arith.mulf %28, %27 : vector<16x16xf32>
    %30 = arith.addf %24, %29 : vector<16x16xf32>
    %c0_29 = arith.constant 0 : index
    %c5 = arith.constant 5 : index
    %31 = memref.load %arg2[%c0_29, %c5] : memref<8x8xf32, #tpu.memory_space<smem>>
    %c0_30 = arith.constant 0 : index
    %c5_31 = arith.constant 5 : index
    %c0_32 = arith.constant 0 : index
    %c0_33 = arith.constant 0 : index
    %32 = vector.load %arg5[%c0_30, %c5_31, %c0_32, %c0_33] : memref<1x8x16x16xf32, #tpu.memory_space<vmem>>, vector<1x1x16x16xf32>
    %33 = vector.shape_cast %32 : vector<1x1x16x16xf32> to vector<16x16xf32>
    %34 = vector.broadcast %31 : f32 to vector<16x16xf32>
    %35 = arith.mulf %34, %33 : vector<16x16xf32>
    %36 = arith.addf %30, %35 : vector<16x16xf32>
    %c0_34 = arith.constant 0 : index
    %c6 = arith.constant 6 : index
    %37 = memref.load %arg2[%c0_34, %c6] : memref<8x8xf32, #tpu.memory_space<smem>>
    %c0_35 = arith.constant 0 : index
    %c6_36 = arith.constant 6 : index
    %c0_37 = arith.constant 0 : index
    %c0_38 = arith.constant 0 : index
    %38 = vector.load %arg5[%c0_35, %c6_36, %c0_37, %c0_38] : memref<1x8x16x16xf32, #tpu.memory_space<vmem>>, vector<1x1x16x16xf32>
    %39 = vector.shape_cast %38 : vector<1x1x16x16xf32> to vector<16x16xf32>
    %40 = vector.broadcast %37 : f32 to vector<16x16xf32>
    %41 = arith.mulf %40, %39 : vector<16x16xf32>
    %42 = arith.addf %36, %41 : vector<16x16xf32>
    %c0_39 = arith.constant 0 : index
    %c7 = arith.constant 7 : index
    %43 = memref.load %arg2[%c0_39, %c7] : memref<8x8xf32, #tpu.memory_space<smem>>
    %c0_40 = arith.constant 0 : index
    %c7_41 = arith.constant 7 : index
    %c0_42 = arith.constant 0 : index
    %c0_43 = arith.constant 0 : index
    %44 = vector.load %arg5[%c0_40, %c7_41, %c0_42, %c0_43] : memref<1x8x16x16xf32, #tpu.memory_space<vmem>>, vector<1x1x16x16xf32>
    %45 = vector.shape_cast %44 : vector<1x1x16x16xf32> to vector<16x16xf32>
    %46 = vector.broadcast %43 : f32 to vector<16x16xf32>
    %47 = arith.mulf %46, %45 : vector<16x16xf32>
    %48 = arith.addf %42, %47 : vector<16x16xf32>
    %c0_44 = arith.constant 0 : index
    %c0_45 = arith.constant 0 : index
    %49 = memref.load %arg3[%c0_44, %c0_45] : memref<8x4xf32, #tpu.memory_space<smem>>
    %c0_46 = arith.constant 0 : index
    %c0_47 = arith.constant 0 : index
    %c0_48 = arith.constant 0 : index
    %c0_49 = arith.constant 0 : index
    %50 = vector.load %arg6[%c0_46, %c0_47, %c0_48, %c0_49] : memref<1x4x16x16xf32, #tpu.memory_space<vmem>>, vector<1x1x16x16xf32>
    %51 = vector.shape_cast %50 : vector<1x1x16x16xf32> to vector<16x16xf32>
    %52 = vector.broadcast %49 : f32 to vector<16x16xf32>
    %53 = arith.mulf %52, %51 : vector<16x16xf32>
    %54 = arith.addf %48, %53 : vector<16x16xf32>
    %c0_50 = arith.constant 0 : index
    %c1_51 = arith.constant 1 : index
    %55 = memref.load %arg3[%c0_50, %c1_51] : memref<8x4xf32, #tpu.memory_space<smem>>
    %c0_52 = arith.constant 0 : index
    %c1_53 = arith.constant 1 : index
    %c0_54 = arith.constant 0 : index
    %c0_55 = arith.constant 0 : index
    %56 = vector.load %arg6[%c0_52, %c1_53, %c0_54, %c0_55] : memref<1x4x16x16xf32, #tpu.memory_space<vmem>>, vector<1x1x16x16xf32>
    %57 = vector.shape_cast %56 : vector<1x1x16x16xf32> to vector<16x16xf32>
    %58 = vector.broadcast %55 : f32 to vector<16x16xf32>
    %59 = arith.mulf %58, %57 : vector<16x16xf32>
    %60 = arith.addf %54, %59 : vector<16x16xf32>
    %c0_56 = arith.constant 0 : index
    %c2_57 = arith.constant 2 : index
    %61 = memref.load %arg3[%c0_56, %c2_57] : memref<8x4xf32, #tpu.memory_space<smem>>
    %c0_58 = arith.constant 0 : index
    %c2_59 = arith.constant 2 : index
    %c0_60 = arith.constant 0 : index
    %c0_61 = arith.constant 0 : index
    %62 = vector.load %arg6[%c0_58, %c2_59, %c0_60, %c0_61] : memref<1x4x16x16xf32, #tpu.memory_space<vmem>>, vector<1x1x16x16xf32>
    %63 = vector.shape_cast %62 : vector<1x1x16x16xf32> to vector<16x16xf32>
    %64 = vector.broadcast %61 : f32 to vector<16x16xf32>
    %65 = arith.mulf %64, %63 : vector<16x16xf32>
    %66 = arith.addf %60, %65 : vector<16x16xf32>
    %c0_62 = arith.constant 0 : index
    %c3_63 = arith.constant 3 : index
    %67 = memref.load %arg3[%c0_62, %c3_63] : memref<8x4xf32, #tpu.memory_space<smem>>
    %c0_64 = arith.constant 0 : index
    %c3_65 = arith.constant 3 : index
    %c0_66 = arith.constant 0 : index
    %c0_67 = arith.constant 0 : index
    %68 = vector.load %arg6[%c0_64, %c3_65, %c0_66, %c0_67] : memref<1x4x16x16xf32, #tpu.memory_space<vmem>>, vector<1x1x16x16xf32>
    %69 = vector.shape_cast %68 : vector<1x1x16x16xf32> to vector<16x16xf32>
    %70 = vector.broadcast %67 : f32 to vector<16x16xf32>
    %71 = arith.mulf %70, %69 : vector<16x16xf32>
    %72 = arith.addf %66, %71 : vector<16x16xf32>
    %c0_68 = arith.constant 0 : index
    %73 = memref.load %arg4[%c0_68] : memref<8xf32, #tpu.memory_space<smem>>
    %74 = vector.broadcast %73 : f32 to vector<16x16xf32>
    %75 = arith.addf %72, %74 : vector<16x16xf32>
    %c0_69 = arith.constant 0 : index
    %c0_70 = arith.constant 0 : index
    %c0_71 = arith.constant 0 : index
    %c0_72 = arith.constant 0 : index
    %76 = vector.load %arg9[%c0_69, %c0_70, %c0_71, %c0_72] : memref<1x8x16x16xf32, #tpu.memory_space<vmem>>, vector<1x1x16x16xf32>
    %77 = vector.shape_cast %76 : vector<1x1x16x16xf32> to vector<16x16xf32>
    %78 = vector.shape_cast %75 : vector<16x16xf32> to vector<1x1x16x16xf32>
    tpu.vector_store %arg9[%c0_69, %c0_70, %c0_71, %c0_72], %78 {strides = array<i32>} : memref<1x8x16x16xf32, #tpu.memory_space<vmem>>, vector<1x1x16x16xf32>,
    %cst = arith.constant dense<0.000000e+00> : vector<4x16xf32>
    %79 = tpu.matmul %0, %75, %cst {dimension_numbers = #tpu.dot_dimension_numbers<[1], [0], [0], [1], [0, 0, 1, 1], [], []>} : vector<4x16xf32>, vector<16x16xf32>, vector<4x16xf32> -> vector<4x16xf32>
    %cst_73 = arith.constant dense<0.000000e+00> : vector<4x4xf32>
    %80 = tpu.matmul %79, %1, %cst_73 {dimension_numbers = #tpu.dot_dimension_numbers<[1], [0], [0], [1], [0, 0, 1, 1], [], []>} : vector<4x16xf32>, vector<16x4xf32>, vector<4x4xf32> -> vector<4x4xf32>
    %c0_74 = arith.constant 0 : index
    %c0_75 = arith.constant 0 : index
    %c0_76 = arith.constant 0 : index
    %c0_77 = arith.constant 0 : index
    %81 = vector.load %arg10[%c0_74, %c0_75, %c0_76, %c0_77] : memref<1x8x4x4xf32, #tpu.memory_space<vmem>>, vector<1x1x4x4xf32>
    %82 = vector.shape_cast %81 : vector<1x1x4x4xf32> to vector<4x4xf32>
    %83 = vector.shape_cast %80 : vector<4x4xf32> to vector<1x1x4x4xf32>
    tpu.vector_store %arg10[%c0_74, %c0_75, %c0_76, %c0_77], %83 {strides = array<i32>} : memref<1x8x4x4xf32, #tpu.memory_space<vmem>>, vector<1x1x4x4xf32>,
    %c1_78 = arith.constant 1 : index
    %c0_79 = arith.constant 0 : index
    %84 = memref.load %arg2[%c1_78, %c0_79] : memref<8x8xf32, #tpu.memory_space<smem>>
    %c0_80 = arith.constant 0 : index
    %c0_81 = arith.constant 0 : index
    %c0_82 = arith.constant 0 : index
    %c0_83 = arith.constant 0 : index
    %85 = vector.load %arg5[%c0_80, %c0_81, %c0_82, %c0_83] : memref<1x8x16x16xf32, #tpu.memory_space<vmem>>, vector<1x1x16x16xf32>
    %86 = vector.shape_cast %85 : vector<1x1x16x16xf32> to vector<16x16xf32>
    %87 = vector.broadcast %84 : f32 to vector<16x16xf32>
    %88 = arith.mulf %87, %86 : vector<16x16xf32>
    %c1_84 = arith.constant 1 : index
    %c1_85 = arith.constant 1 : index
    %89 = memref.load %arg2[%c1_84, %c1_85] : memref<8x8xf32, #tpu.memory_space<smem>>
    %c0_86 = arith.constant 0 : index
    %c1_87 = arith.constant 1 : index
    %c0_88 = arith.constant 0 : index
    %c0_89 = arith.constant 0 : index
    %90 = vector.load %arg5[%c0_86, %c1_87, %c0_88, %c0_89] : memref<1x8x16x16xf32, #tpu.memory_space<vmem>>, vector<1x1x16x16xf32>
    %91 = vector.shape_cast %90 : vector<1x1x16x16xf32> to vector<16x16xf32>
    %92 = vector.broadcast %89 : f32 to vector<16x16xf32>
    %93 = arith.mulf %92, %91 : vector<16x16xf32>
    %94 = arith.addf %88, %93 : vector<16x16xf32>
    %c1_90 = arith.constant 1 : index
    %c2_91 = arith.constant 2 : index
    %95 = memref.load %arg2[%c1_90, %c2_91] : memref<8x8xf32, #tpu.memory_space<smem>>
    %c0_92 = arith.constant 0 : index
    %c2_93 = arith.constant 2 : index
    %c0_94 = arith.constant 0 : index
    %c0_95 = arith.constant 0 : index
    %96 = vector.load %arg5[%c0_92, %c2_93, %c0_94, %c0_95] : memref<1x8x16x16xf32, #tpu.memory_space<vmem>>, vector<1x1x16x16xf32>
    %97 = vector.shape_cast %96 : vector<1x1x16x16xf32> to vector<16x16xf32>
    %98 = vector.broadcast %95 : f32 to vector<16x16xf32>
    %99 = arith.mulf %98, %97 : vector<16x16xf32>
    %100 = arith.addf %94, %99 : vector<16x16xf32>
    %c1_96 = arith.constant 1 : index
    %c3_97 = arith.constant 3 : index
    %101 = memref.load %arg2[%c1_96, %c3_97] : memref<8x8xf32, #tpu.memory_space<smem>>
    %c0_98 = arith.constant 0 : index
    %c3_99 = arith.constant 3 : index
    %c0_100 = arith.constant 0 : index
    %c0_101 = arith.constant 0 : index
    %102 = vector.load %arg5[%c0_98, %c3_99, %c0_100, %c0_101] : memref<1x8x16x16xf32, #tpu.memory_space<vmem>>, vector<1x1x16x16xf32>
    %103 = vector.shape_cast %102 : vector<1x1x16x16xf32> to vector<16x16xf32>
    %104 = vector.broadcast %101 : f32 to vector<16x16xf32>
    %105 = arith.mulf %104, %103 : vector<16x16xf32>
    %106 = arith.addf %100, %105 : vector<16x16xf32>
    %c1_102 = arith.constant 1 : index
    %c4_103 = arith.constant 4 : index
    %107 = memref.load %arg2[%c1_102, %c4_103] : memref<8x8xf32, #tpu.memory_space<smem>>
    %c0_104 = arith.constant 0 : index
    %c4_105 = arith.constant 4 : index
    %c0_106 = arith.constant 0 : index
    %c0_107 = arith.constant 0 : index
    %108 = vector.load %arg5[%c0_104, %c4_105, %c0_106, %c0_107] : memref<1x8x16x16xf32, #tpu.memory_space<vmem>>, vector<1x1x16x16xf32>
    %109 = vector.shape_cast %108 : vector<1x1x16x16xf32> to vector<16x16xf32>
    %110 = vector.broadcast %107 : f32 to vector<16x16xf32>
    %111 = arith.mulf %110, %109 : vector<16x16xf32>
    %112 = arith.addf %106, %111 : vector<16x16xf32>
    %c1_108 = arith.constant 1 : index
    %c5_109 = arith.constant 5 : index
    %113 = memref.load %arg2[%c1_108, %c5_109] : memref<8x8xf32, #tpu.memory_space<smem>>
    %c0_110 = arith.constant 0 : index
    %c5_111 = arith.constant 5 : index
    %c0_112 = arith.constant 0 : index
    %c0_113 = arith.constant 0 : index
    %114 = vector.load %arg5[%c0_110, %c5_111, %c0_112, %c0_113] : memref<1x8x16x16xf32, #tpu.memory_space<vmem>>, vector<1x1x16x16xf32>
    %115 = vector.shape_cast %114 : vector<1x1x16x16xf32> to vector<16x16xf32>
    %116 = vector.broadcast %113 : f32 to vector<16x16xf32>
    %117 = arith.mulf %116, %115 : vector<16x16xf32>
    %118 = arith.addf %112, %117 : vector<16x16xf32>
    %c1_114 = arith.constant 1 : index
    %c6_115 = arith.constant 6 : index
    %119 = memref.load %arg2[%c1_114, %c6_115] : memref<8x8xf32, #tpu.memory_space<smem>>
    %c0_116 = arith.constant 0 : index
    %c6_117 = arith.constant 6 : index
    %c0_118 = arith.constant 0 : index
    %c0_119 = arith.constant 0 : index
    %120 = vector.load %arg5[%c0_116, %c6_117, %c0_118, %c0_119] : memref<1x8x16x16xf32, #tpu.memory_space<vmem>>, vector<1x1x16x16xf32>
    %121 = vector.shape_cast %120 : vector<1x1x16x16xf32> to vector<16x16xf32>
    %122 = vector.broadcast %119 : f32 to vector<16x16xf32>
    %123 = arith.mulf %122, %121 : vector<16x16xf32>
    %124 = arith.addf %118, %123 : vector<16x16xf32>
    %c1_120 = arith.constant 1 : index
    %c7_121 = arith.constant 7 : index
    %125 = memref.load %arg2[%c1_120, %c7_121] : memref<8x8xf32, #tpu.memory_space<smem>>
    %c0_122 = arith.constant 0 : index
    %c7_123 = arith.constant 7 : index
    %c0_124 = arith.constant 0 : index
    %c0_125 = arith.constant 0 : index
    %126 = vector.load %arg5[%c0_122, %c7_123, %c0_124, %c0_125] : memref<1x8x16x16xf32, #tpu.memory_space<vmem>>, vector<1x1x16x16xf32>
    %127 = vector.shape_cast %126 : vector<1x1x16x16xf32> to vector<16x16xf32>
    %128 = vector.broadcast %125 : f32 to vector<16x16xf32>
    %129 = arith.mulf %128, %127 : vector<16x16xf32>
    %130 = arith.addf %124, %129 : vector<16x16xf32>
    %c1_126 = arith.constant 1 : index
    %c0_127 = arith.constant 0 : index
    %131 = memref.load %arg3[%c1_126, %c0_127] : memref<8x4xf32, #tpu.memory_space<smem>>
    %c0_128 = arith.constant 0 : index
    %c0_129 = arith.constant 0 : index
    %c0_130 = arith.constant 0 : index
    %c0_131 = arith.constant 0 : index
    %132 = vector.load %arg6[%c0_128, %c0_129, %c0_130, %c0_131] : memref<1x4x16x16xf32, #tpu.memory_space<vmem>>, vector<1x1x16x16xf32>
    %133 = vector.shape_cast %132 : vector<1x1x16x16xf32> to vector<16x16xf32>
    %134 = vector.broadcast %131 : f32 to vector<16x16xf32>
    %135 = arith.mulf %134, %133 : vector<16x16xf32>
    %136 = arith.addf %130, %135 : vector<16x16xf32>
    %c1_132 = arith.constant 1 : index
    %c1_133 = arith.constant 1 : index
    %137 = memref.load %arg3[%c1_132, %c1_133] : memref<8x4xf32, #tpu.memory_space<smem>>
    %c0_134 = arith.constant 0 : index
    %c1_135 = arith.constant 1 : index
    %c0_136 = arith.constant 0 : index
    %c0_137 = arith.constant 0 : index
    %138 = vector.load %arg6[%c0_134, %c1_135, %c0_136, %c0_137] : memref<1x4x16x16xf32, #tpu.memory_space<vmem>>, vector<1x1x16x16xf32>
    %139 = vector.shape_cast %138 : vector<1x1x16x16xf32> to vector<16x16xf32>
    %140 = vector.broadcast %137 : f32 to vector<16x16xf32>
    %141 = arith.mulf %140, %139 : vector<16x16xf32>
    %142 = arith.addf %136, %141 : vector<16x16xf32>
    %c1_138 = arith.constant 1 : index
    %c2_139 = arith.constant 2 : index
    %143 = memref.load %arg3[%c1_138, %c2_139] : memref<8x4xf32, #tpu.memory_space<smem>>
    %c0_140 = arith.constant 0 : index
    %c2_141 = arith.constant 2 : index
    %c0_142 = arith.constant 0 : index
    %c0_143 = arith.constant 0 : index
    %144 = vector.load %arg6[%c0_140, %c2_141, %c0_142, %c0_143] : memref<1x4x16x16xf32, #tpu.memory_space<vmem>>, vector<1x1x16x16xf32>
    %145 = vector.shape_cast %144 : vector<1x1x16x16xf32> to vector<16x16xf32>
    %146 = vector.broadcast %143 : f32 to vector<16x16xf32>
    %147 = arith.mulf %146, %145 : vector<16x16xf32>
    %148 = arith.addf %142, %147 : vector<16x16xf32>
    %c1_144 = arith.constant 1 : index
    %c3_145 = arith.constant 3 : index
    %149 = memref.load %arg3[%c1_144, %c3_145] : memref<8x4xf32, #tpu.memory_space<smem>>
    %c0_146 = arith.constant 0 : index
    %c3_147 = arith.constant 3 : index
    %c0_148 = arith.constant 0 : index
    %c0_149 = arith.constant 0 : index
    %150 = vector.load %arg6[%c0_146, %c3_147, %c0_148, %c0_149] : memref<1x4x16x16xf32, #tpu.memory_space<vmem>>, vector<1x1x16x16xf32>
    %151 = vector.shape_cast %150 : vector<1x1x16x16xf32> to vector<16x16xf32>
    %152 = vector.broadcast %149 : f32 to vector<16x16xf32>
    %153 = arith.mulf %152, %151 : vector<16x16xf32>
    %154 = arith.addf %148, %153 : vector<16x16xf32>
    %c1_150 = arith.constant 1 : index
    %155 = memref.load %arg4[%c1_150] : memref<8xf32, #tpu.memory_space<smem>>
    %156 = vector.broadcast %155 : f32 to vector<16x16xf32>
    %157 = arith.addf %154, %156 : vector<16x16xf32>
    %c0_151 = arith.constant 0 : index
    %c1_152 = arith.constant 1 : index
    %c0_153 = arith.constant 0 : index
    %c0_154 = arith.constant 0 : index
    %158 = vector.load %arg9[%c0_151, %c1_152, %c0_153, %c0_154] : memref<1x8x16x16xf32, #tpu.memory_space<vmem>>, vector<1x1x16x16xf32>
    %159 = vector.shape_cast %158 : vector<1x1x16x16xf32> to vector<16x16xf32>
    %160 = vector.shape_cast %157 : vector<16x16xf32> to vector<1x1x16x16xf32>
    tpu.vector_store %arg9[%c0_151, %c1_152, %c0_153, %c0_154], %160 {strides = array<i32>} : memref<1x8x16x16xf32, #tpu.memory_space<vmem>>, vector<1x1x16x16xf32>,
    %cst_155 = arith.constant dense<0.000000e+00> : vector<4x16xf32>
    %161 = tpu.matmul %0, %157, %cst_155 {dimension_numbers = #tpu.dot_dimension_numbers<[1], [0], [0], [1], [0, 0, 1, 1], [], []>} : vector<4x16xf32>, vector<16x16xf32>, vector<4x16xf32> -> vector<4x16xf32>
    %cst_156 = arith.constant dense<0.000000e+00> : vector<4x4xf32>
    %162 = tpu.matmul %161, %1, %cst_156 {dimension_numbers = #tpu.dot_dimension_numbers<[1], [0], [0], [1], [0, 0, 1, 1], [], []>} : vector<4x16xf32>, vector<16x4xf32>, vector<4x4xf32> -> vector<4x4xf32>
    %c0_157 = arith.constant 0 : index
    %c1_158 = arith.constant 1 : index
    %c0_159 = arith.constant 0 : index
    %c0_160 = arith.constant 0 : index
    %163 = vector.load %arg10[%c0_157, %c1_158, %c0_159, %c0_160] : memref<1x8x4x4xf32, #tpu.memory_space<vmem>>, vector<1x1x4x4xf32>
    %164 = vector.shape_cast %163 : vector<1x1x4x4xf32> to vector<4x4xf32>
    %165 = vector.shape_cast %162 : vector<4x4xf32> to vector<1x1x4x4xf32>
    tpu.vector_store %arg10[%c0_157, %c1_158, %c0_159, %c0_160], %165 {strides = array<i32>} : memref<1x8x4x4xf32, #tpu.memory_space<vmem>>, vector<1x1x4x4xf32>,
    %c2_161 = arith.constant 2 : index
    %c0_162 = arith.constant 0 : index
    %166 = memref.load %arg2[%c2_161, %c0_162] : memref<8x8xf32, #tpu.memory_space<smem>>
    %c0_163 = arith.constant 0 : index
    %c0_164 = arith.constant 0 : index
    %c0_165 = arith.constant 0 : index
    %c0_166 = arith.constant 0 : index
    %167 = vector.load %arg5[%c0_163, %c0_164, %c0_165, %c0_166] : memref<1x8x16x16xf32, #tpu.memory_space<vmem>>, vector<1x1x16x16xf32>
    %168 = vector.shape_cast %167 : vector<1x1x16x16xf32> to vector<16x16xf32>
    %169 = vector.broadcast %166 : f32 to vector<16x16xf32>
    %170 = arith.mulf %169, %168 : vector<16x16xf32>
    %c2_167 = arith.constant 2 : index
    %c1_168 = arith.constant 1 : index
    %171 = memref.load %arg2[%c2_167, %c1_168] : memref<8x8xf32, #tpu.memory_space<smem>>
    %c0_169 = arith.constant 0 : index
    %c1_170 = arith.constant 1 : index
    %c0_171 = arith.constant 0 : index
    %c0_172 = arith.constant 0 : index
    %172 = vector.load %arg5[%c0_169, %c1_170, %c0_171, %c0_172] : memref<1x8x16x16xf32, #tpu.memory_space<vmem>>, vector<1x1x16x16xf32>
    %173 = vector.shape_cast %172 : vector<1x1x16x16xf32> to vector<16x16xf32>
    %174 = vector.broadcast %171 : f32 to vector<16x16xf32>
    %175 = arith.mulf %174, %173 : vector<16x16xf32>
    %176 = arith.addf %170, %175 : vector<16x16xf32>
    %c2_173 = arith.constant 2 : index
    %c2_174 = arith.constant 2 : index
    %177 = memref.load %arg2[%c2_173, %c2_174] : memref<8x8xf32, #tpu.memory_space<smem>>
    %c0_175 = arith.constant 0 : index
    %c2_176 = arith.constant 2 : index
    %c0_177 = arith.constant 0 : index
    %c0_178 = arith.constant 0 : index
    %178 = vector.load %arg5[%c0_175, %c2_176, %c0_177, %c0_178] : memref<1x8x16x16xf32, #tpu.memory_space<vmem>>, vector<1x1x16x16xf32>
    %179 = vector.shape_cast %178 : vector<1x1x16x16xf32> to vector<16x16xf32>
    %180 = vector.broadcast %177 : f32 to vector<16x16xf32>
    %181 = arith.mulf %180, %179 : vector<16x16xf32>
    %182 = arith.addf %176, %181 : vector<16x16xf32>
    %c2_179 = arith.constant 2 : index
    %c3_180 = arith.constant 3 : index
    %183 = memref.load %arg2[%c2_179, %c3_180] : memref<8x8xf32, #tpu.memory_space<smem>>
    %c0_181 = arith.constant 0 : index
    %c3_182 = arith.constant 3 : index
    %c0_183 = arith.constant 0 : index
    %c0_184 = arith.constant 0 : index
    %184 = vector.load %arg5[%c0_181, %c3_182, %c0_183, %c0_184] : memref<1x8x16x16xf32, #tpu.memory_space<vmem>>, vector<1x1x16x16xf32>
    %185 = vector.shape_cast %184 : vector<1x1x16x16xf32> to vector<16x16xf32>
    %186 = vector.broadcast %183 : f32 to vector<16x16xf32>
    %187 = arith.mulf %186, %185 : vector<16x16xf32>
    %188 = arith.addf %182, %187 : vector<16x16xf32>
    %c2_185 = arith.constant 2 : index
    %c4_186 = arith.constant 4 : index
    %189 = memref.load %arg2[%c2_185, %c4_186] : memref<8x8xf32, #tpu.memory_space<smem>>
    %c0_187 = arith.constant 0 : index
    %c4_188 = arith.constant 4 : index
    %c0_189 = arith.constant 0 : index
    %c0_190 = arith.constant 0 : index
    %190 = vector.load %arg5[%c0_187, %c4_188, %c0_189, %c0_190] : memref<1x8x16x16xf32, #tpu.memory_space<vmem>>, vector<1x1x16x16xf32>
    %191 = vector.shape_cast %190 : vector<1x1x16x16xf32> to vector<16x16xf32>
    %192 = vector.broadcast %189 : f32 to vector<16x16xf32>
    %193 = arith.mulf %192, %191 : vector<16x16xf32>
    %194 = arith.addf %188, %193 : vector<16x16xf32>
    %c2_191 = arith.constant 2 : index
    %c5_192 = arith.constant 5 : index
    %195 = memref.load %arg2[%c2_191, %c5_192] : memref<8x8xf32, #tpu.memory_space<smem>>
    %c0_193 = arith.constant 0 : index
    %c5_194 = arith.constant 5 : index
    %c0_195 = arith.constant 0 : index
    %c0_196 = arith.constant 0 : index
    %196 = vector.load %arg5[%c0_193, %c5_194, %c0_195, %c0_196] : memref<1x8x16x16xf32, #tpu.memory_space<vmem>>, vector<1x1x16x16xf32>
    %197 = vector.shape_cast %196 : vector<1x1x16x16xf32> to vector<16x16xf32>
    %198 = vector.broadcast %195 : f32 to vector<16x16xf32>
    %199 = arith.mulf %198, %197 : vector<16x16xf32>
    %200 = arith.addf %194, %199 : vector<16x16xf32>
    %c2_197 = arith.constant 2 : index
    %c6_198 = arith.constant 6 : index
    %201 = memref.load %arg2[%c2_197, %c6_198] : memref<8x8xf32, #tpu.memory_space<smem>>
    %c0_199 = arith.constant 0 : index
    %c6_200 = arith.constant 6 : index
    %c0_201 = arith.constant 0 : index
    %c0_202 = arith.constant 0 : index
    %202 = vector.load %arg5[%c0_199, %c6_200, %c0_201, %c0_202] : memref<1x8x16x16xf32, #tpu.memory_space<vmem>>, vector<1x1x16x16xf32>
    %203 = vector.shape_cast %202 : vector<1x1x16x16xf32> to vector<16x16xf32>
    %204 = vector.broadcast %201 : f32 to vector<16x16xf32>
    %205 = arith.mulf %204, %203 : vector<16x16xf32>
    %206 = arith.addf %200, %205 : vector<16x16xf32>
    %c2_203 = arith.constant 2 : index
    %c7_204 = arith.constant 7 : index
    %207 = memref.load %arg2[%c2_203, %c7_204] : memref<8x8xf32, #tpu.memory_space<smem>>
    %c0_205 = arith.constant 0 : index
    %c7_206 = arith.constant 7 : index
    %c0_207 = arith.constant 0 : index
    %c0_208 = arith.constant 0 : index
    %208 = vector.load %arg5[%c0_205, %c7_206, %c0_207, %c0_208] : memref<1x8x16x16xf32, #tpu.memory_space<vmem>>, vector<1x1x16x16xf32>
    %209 = vector.shape_cast %208 : vector<1x1x16x16xf32> to vector<16x16xf32>
    %210 = vector.broadcast %207 : f32 to vector<16x16xf32>
    %211 = arith.mulf %210, %209 : vector<16x16xf32>
    %212 = arith.addf %206, %211 : vector<16x16xf32>
    %c2_209 = arith.constant 2 : index
    %c0_210 = arith.constant 0 : index
    %213 = memref.load %arg3[%c2_209, %c0_210] : memref<8x4xf32, #tpu.memory_space<smem>>
    %c0_211 = arith.constant 0 : index
    %c0_212 = arith.constant 0 : index
    %c0_213 = arith.constant 0 : index
    %c0_214 = arith.constant 0 : index
    %214 = vector.load %arg6[%c0_211, %c0_212, %c0_213, %c0_214] : memref<1x4x16x16xf32, #tpu.memory_space<vmem>>, vector<1x1x16x16xf32>
    %215 = vector.shape_cast %214 : vector<1x1x16x16xf32> to vector<16x16xf32>
    %216 = vector.broadcast %213 : f32 to vector<16x16xf32>
    %217 = arith.mulf %216, %215 : vector<16x16xf32>
    %218 = arith.addf %212, %217 : vector<16x16xf32>
    %c2_215 = arith.constant 2 : index
    %c1_216 = arith.constant 1 : index
    %219 = memref.load %arg3[%c2_215, %c1_216] : memref<8x4xf32, #tpu.memory_space<smem>>
    %c0_217 = arith.constant 0 : index
    %c1_218 = arith.constant 1 : index
    %c0_219 = arith.constant 0 : index
    %c0_220 = arith.constant 0 : index
    %220 = vector.load %arg6[%c0_217, %c1_218, %c0_219, %c0_220] : memref<1x4x16x16xf32, #tpu.memory_space<vmem>>, vector<1x1x16x16xf32>
    %221 = vector.shape_cast %220 : vector<1x1x16x16xf32> to vector<16x16xf32>
    %222 = vector.broadcast %219 : f32 to vector<16x16xf32>
    %223 = arith.mulf %222, %221 : vector<16x16xf32>
    %224 = arith.addf %218, %223 : vector<16x16xf32>
    %c2_221 = arith.constant 2 : index
    %c2_222 = arith.constant 2 : index
    %225 = memref.load %arg3[%c2_221, %c2_222] : memref<8x4xf32, #tpu.memory_space<smem>>
    %c0_223 = arith.constant 0 : index
    %c2_224 = arith.constant 2 : index
    %c0_225 = arith.constant 0 : index
    %c0_226 = arith.constant 0 : index
    %226 = vector.load %arg6[%c0_223, %c2_224, %c0_225, %c0_226] : memref<1x4x16x16xf32, #tpu.memory_space<vmem>>, vector<1x1x16x16xf32>
    %227 = vector.shape_cast %226 : vector<1x1x16x16xf32> to vector<16x16xf32>
    %228 = vector.broadcast %225 : f32 to vector<16x16xf32>
    %229 = arith.mulf %228, %227 : vector<16x16xf32>
    %230 = arith.addf %224, %229 : vector<16x16xf32>
    %c2_227 = arith.constant 2 : index
    %c3_228 = arith.constant 3 : index
    %231 = memref.load %arg3[%c2_227, %c3_228] : memref<8x4xf32, #tpu.memory_space<smem>>
    %c0_229 = arith.constant 0 : index
    %c3_230 = arith.constant 3 : index
    %c0_231 = arith.constant 0 : index
    %c0_232 = arith.constant 0 : index
    %232 = vector.load %arg6[%c0_229, %c3_230, %c0_231, %c0_232] : memref<1x4x16x16xf32, #tpu.memory_space<vmem>>, vector<1x1x16x16xf32>
    %233 = vector.shape_cast %232 : vector<1x1x16x16xf32> to vector<16x16xf32>
    %234 = vector.broadcast %231 : f32 to vector<16x16xf32>
    %235 = arith.mulf %234, %233 : vector<16x16xf32>
    %236 = arith.addf %230, %235 : vector<16x16xf32>
    %c2_233 = arith.constant 2 : index
    %237 = memref.load %arg4[%c2_233] : memref<8xf32, #tpu.memory_space<smem>>
    %238 = vector.broadcast %237 : f32 to vector<16x16xf32>
    %239 = arith.addf %236, %238 : vector<16x16xf32>
    %c0_234 = arith.constant 0 : index
    %c2_235 = arith.constant 2 : index
    %c0_236 = arith.constant 0 : index
    %c0_237 = arith.constant 0 : index
    %240 = vector.load %arg9[%c0_234, %c2_235, %c0_236, %c0_237] : memref<1x8x16x16xf32, #tpu.memory_space<vmem>>, vector<1x1x16x16xf32>
    %241 = vector.shape_cast %240 : vector<1x1x16x16xf32> to vector<16x16xf32>
    %242 = vector.shape_cast %239 : vector<16x16xf32> to vector<1x1x16x16xf32>
    tpu.vector_store %arg9[%c0_234, %c2_235, %c0_236, %c0_237], %242 {strides = array<i32>} : memref<1x8x16x16xf32, #tpu.memory_space<vmem>>, vector<1x1x16x16xf32>,
    %cst_238 = arith.constant dense<0.000000e+00> : vector<4x16xf32>
    %243 = tpu.matmul %0, %239, %cst_238 {dimension_numbers = #tpu.dot_dimension_numbers<[1], [0], [0], [1], [0, 0, 1, 1], [], []>} : vector<4x16xf32>, vector<16x16xf32>, vector<4x16xf32> -> vector<4x16xf32>
    %cst_239 = arith.constant dense<0.000000e+00> : vector<4x4xf32>
    %244 = tpu.matmul %243, %1, %cst_239 {dimension_numbers = #tpu.dot_dimension_numbers<[1], [0], [0], [1], [0, 0, 1, 1], [], []>} : vector<4x16xf32>, vector<16x4xf32>, vector<4x4xf32> -> vector<4x4xf32>
    %c0_240 = arith.constant 0 : index
    %c2_241 = arith.constant 2 : index
    %c0_242 = arith.constant 0 : index
    %c0_243 = arith.constant 0 : index
    %245 = vector.load %arg10[%c0_240, %c2_241, %c0_242, %c0_243] : memref<1x8x4x4xf32, #tpu.memory_space<vmem>>, vector<1x1x4x4xf32>
    %246 = vector.shape_cast %245 : vector<1x1x4x4xf32> to vector<4x4xf32>
    %247 = vector.shape_cast %244 : vector<4x4xf32> to vector<1x1x4x4xf32>
    tpu.vector_store %arg10[%c0_240, %c2_241, %c0_242, %c0_243], %247 {strides = array<i32>} : memref<1x8x4x4xf32, #tpu.memory_space<vmem>>, vector<1x1x4x4xf32>,
    %c3_244 = arith.constant 3 : index
    %c0_245 = arith.constant 0 : index
    %248 = memref.load %arg2[%c3_244, %c0_245] : memref<8x8xf32, #tpu.memory_space<smem>>
    %c0_246 = arith.constant 0 : index
    %c0_247 = arith.constant 0 : index
    %c0_248 = arith.constant 0 : index
    %c0_249 = arith.constant 0 : index
    %249 = vector.load %arg5[%c0_246, %c0_247, %c0_248, %c0_249] : memref<1x8x16x16xf32, #tpu.memory_space<vmem>>, vector<1x1x16x16xf32>
    %250 = vector.shape_cast %249 : vector<1x1x16x16xf32> to vector<16x16xf32>
    %251 = vector.broadcast %248 : f32 to vector<16x16xf32>
    %252 = arith.mulf %251, %250 : vector<16x16xf32>
    %c3_250 = arith.constant 3 : index
    %c1_251 = arith.constant 1 : index
    %253 = memref.load %arg2[%c3_250, %c1_251] : memref<8x8xf32, #tpu.memory_space<smem>>
    %c0_252 = arith.constant 0 : index
    %c1_253 = arith.constant 1 : index
    %c0_254 = arith.constant 0 : index
    %c0_255 = arith.constant 0 : index
    %254 = vector.load %arg5[%c0_252, %c1_253, %c0_254, %c0_255] : memref<1x8x16x16xf32, #tpu.memory_space<vmem>>, vector<1x1x16x16xf32>
    %255 = vector.shape_cast %254 : vector<1x1x16x16xf32> to vector<16x16xf32>
    %256 = vector.broadcast %253 : f32 to vector<16x16xf32>
    %257 = arith.mulf %256, %255 : vector<16x16xf32>
    %258 = arith.addf %252, %257 : vector<16x16xf32>
    %c3_256 = arith.constant 3 : index
    %c2_257 = arith.constant 2 : index
    %259 = memref.load %arg2[%c3_256, %c2_257] : memref<8x8xf32, #tpu.memory_space<smem>>
    %c0_258 = arith.constant 0 : index
    %c2_259 = arith.constant 2 : index
    %c0_260 = arith.constant 0 : index
    %c0_261 = arith.constant 0 : index
    %260 = vector.load %arg5[%c0_258, %c2_259, %c0_260, %c0_261] : memref<1x8x16x16xf32, #tpu.memory_space<vmem>>, vector<1x1x16x16xf32>
    %261 = vector.shape_cast %260 : vector<1x1x16x16xf32> to vector<16x16xf32>
    %262 = vector.broadcast %259 : f32 to vector<16x16xf32>
    %263 = arith.mulf %262, %261 : vector<16x16xf32>
    %264 = arith.addf %258, %263 : vector<16x16xf32>
    %c3_262 = arith.constant 3 : index
    %c3_263 = arith.constant 3 : index
    %265 = memref.load %arg2[%c3_262, %c3_263] : memref<8x8xf32, #tpu.memory_space<smem>>
    %c0_264 = arith.constant 0 : index
    %c3_265 = arith.constant 3 : index
    %c0_266 = arith.constant 0 : index
    %c0_267 = arith.constant 0 : index
    %266 = vector.load %arg5[%c0_264, %c3_265, %c0_266, %c0_267] : memref<1x8x16x16xf32, #tpu.memory_space<vmem>>, vector<1x1x16x16xf32>
    %267 = vector.shape_cast %266 : vector<1x1x16x16xf32> to vector<16x16xf32>
    %268 = vector.broadcast %265 : f32 to vector<16x16xf32>
    %269 = arith.mulf %268, %267 : vector<16x16xf32>
    %270 = arith.addf %264, %269 : vector<16x16xf32>
    %c3_268 = arith.constant 3 : index
    %c4_269 = arith.constant 4 : index
    %271 = memref.load %arg2[%c3_268, %c4_269] : memref<8x8xf32, #tpu.memory_space<smem>>
    %c0_270 = arith.constant 0 : index
    %c4_271 = arith.constant 4 : index
    %c0_272 = arith.constant 0 : index
    %c0_273 = arith.constant 0 : index
    %272 = vector.load %arg5[%c0_270, %c4_271, %c0_272, %c0_273] : memref<1x8x16x16xf32, #tpu.memory_space<vmem>>, vector<1x1x16x16xf32>
    %273 = vector.shape_cast %272 : vector<1x1x16x16xf32> to vector<16x16xf32>
    %274 = vector.broadcast %271 : f32 to vector<16x16xf32>
    %275 = arith.mulf %274, %273 : vector<16x16xf32>
    %276 = arith.addf %270, %275 : vector<16x16xf32>
    %c3_274 = arith.constant 3 : index
    %c5_275 = arith.constant 5 : index
    %277 = memref.load %arg2[%c3_274, %c5_275] : memref<8x8xf32, #tpu.memory_space<smem>>
    %c0_276 = arith.constant 0 : index
    %c5_277 = arith.constant 5 : index
    %c0_278 = arith.constant 0 : index
    %c0_279 = arith.constant 0 : index
    %278 = vector.load %arg5[%c0_276, %c5_277, %c0_278, %c0_279] : memref<1x8x16x16xf32, #tpu.memory_space<vmem>>, vector<1x1x16x16xf32>
    %279 = vector.shape_cast %278 : vector<1x1x16x16xf32> to vector<16x16xf32>
    %280 = vector.broadcast %277 : f32 to vector<16x16xf32>
    %281 = arith.mulf %280, %279 : vector<16x16xf32>
    %282 = arith.addf %276, %281 : vector<16x16xf32>
    %c3_280 = arith.constant 3 : index
    %c6_281 = arith.constant 6 : index
    %283 = memref.load %arg2[%c3_280, %c6_281] : memref<8x8xf32, #tpu.memory_space<smem>>
    %c0_282 = arith.constant 0 : index
    %c6_283 = arith.constant 6 : index
    %c0_284 = arith.constant 0 : index
    %c0_285 = arith.constant 0 : index
    %284 = vector.load %arg5[%c0_282, %c6_283, %c0_284, %c0_285] : memref<1x8x16x16xf32, #tpu.memory_space<vmem>>, vector<1x1x16x16xf32>
    %285 = vector.shape_cast %284 : vector<1x1x16x16xf32> to vector<16x16xf32>
    %286 = vector.broadcast %283 : f32 to vector<16x16xf32>
    %287 = arith.mulf %286, %285 : vector<16x16xf32>
    %288 = arith.addf %282, %287 : vector<16x16xf32>
    %c3_286 = arith.constant 3 : index
    %c7_287 = arith.constant 7 : index
    %289 = memref.load %arg2[%c3_286, %c7_287] : memref<8x8xf32, #tpu.memory_space<smem>>
    %c0_288 = arith.constant 0 : index
    %c7_289 = arith.constant 7 : index
    %c0_290 = arith.constant 0 : index
    %c0_291 = arith.constant 0 : index
    %290 = vector.load %arg5[%c0_288, %c7_289, %c0_290, %c0_291] : memref<1x8x16x16xf32, #tpu.memory_space<vmem>>, vector<1x1x16x16xf32>
    %291 = vector.shape_cast %290 : vector<1x1x16x16xf32> to vector<16x16xf32>
    %292 = vector.broadcast %289 : f32 to vector<16x16xf32>
    %293 = arith.mulf %292, %291 : vector<16x16xf32>
    %294 = arith.addf %288, %293 : vector<16x16xf32>
    %c3_292 = arith.constant 3 : index
    %c0_293 = arith.constant 0 : index
    %295 = memref.load %arg3[%c3_292, %c0_293] : memref<8x4xf32, #tpu.memory_space<smem>>
    %c0_294 = arith.constant 0 : index
    %c0_295 = arith.constant 0 : index
    %c0_296 = arith.constant 0 : index
    %c0_297 = arith.constant 0 : index
    %296 = vector.load %arg6[%c0_294, %c0_295, %c0_296, %c0_297] : memref<1x4x16x16xf32, #tpu.memory_space<vmem>>, vector<1x1x16x16xf32>
    %297 = vector.shape_cast %296 : vector<1x1x16x16xf32> to vector<16x16xf32>
    %298 = vector.broadcast %295 : f32 to vector<16x16xf32>
    %299 = arith.mulf %298, %297 : vector<16x16xf32>
    %300 = arith.addf %294, %299 : vector<16x16xf32>
    %c3_298 = arith.constant 3 : index
    %c1_299 = arith.constant 1 : index
    %301 = memref.load %arg3[%c3_298, %c1_299] : memref<8x4xf32, #tpu.memory_space<smem>>
    %c0_300 = arith.constant 0 : index
    %c1_301 = arith.constant 1 : index
    %c0_302 = arith.constant 0 : index
    %c0_303 = arith.constant 0 : index
    %302 = vector.load %arg6[%c0_300, %c1_301, %c0_302, %c0_303] : memref<1x4x16x16xf32, #tpu.memory_space<vmem>>, vector<1x1x16x16xf32>
    %303 = vector.shape_cast %302 : vector<1x1x16x16xf32> to vector<16x16xf32>
    %304 = vector.broadcast %301 : f32 to vector<16x16xf32>
    %305 = arith.mulf %304, %303 : vector<16x16xf32>
    %306 = arith.addf %300, %305 : vector<16x16xf32>
    %c3_304 = arith.constant 3 : index
    %c2_305 = arith.constant 2 : index
    %307 = memref.load %arg3[%c3_304, %c2_305] : memref<8x4xf32, #tpu.memory_space<smem>>
    %c0_306 = arith.constant 0 : index
    %c2_307 = arith.constant 2 : index
    %c0_308 = arith.constant 0 : index
    %c0_309 = arith.constant 0 : index
    %308 = vector.load %arg6[%c0_306, %c2_307, %c0_308, %c0_309] : memref<1x4x16x16xf32, #tpu.memory_space<vmem>>, vector<1x1x16x16xf32>
    %309 = vector.shape_cast %308 : vector<1x1x16x16xf32> to vector<16x16xf32>
    %310 = vector.broadcast %307 : f32 to vector<16x16xf32>
    %311 = arith.mulf %310, %309 : vector<16x16xf32>
    %312 = arith.addf %306, %311 : vector<16x16xf32>
    %c3_310 = arith.constant 3 : index
    %c3_311 = arith.constant 3 : index
    %313 = memref.load %arg3[%c3_310, %c3_311] : memref<8x4xf32, #tpu.memory_space<smem>>
    %c0_312 = arith.constant 0 : index
    %c3_313 = arith.constant 3 : index
    %c0_314 = arith.constant 0 : index
    %c0_315 = arith.constant 0 : index
    %314 = vector.load %arg6[%c0_312, %c3_313, %c0_314, %c0_315] : memref<1x4x16x16xf32, #tpu.memory_space<vmem>>, vector<1x1x16x16xf32>
    %315 = vector.shape_cast %314 : vector<1x1x16x16xf32> to vector<16x16xf32>
    %316 = vector.broadcast %313 : f32 to vector<16x16xf32>
    %317 = arith.mulf %316, %315 : vector<16x16xf32>
    %318 = arith.addf %312, %317 : vector<16x16xf32>
    %c3_316 = arith.constant 3 : index
    %319 = memref.load %arg4[%c3_316] : memref<8xf32, #tpu.memory_space<smem>>
    %320 = vector.broadcast %319 : f32 to vector<16x16xf32>
    %321 = arith.addf %318, %320 : vector<16x16xf32>
    %c0_317 = arith.constant 0 : index
    %c3_318 = arith.constant 3 : index
    %c0_319 = arith.constant 0 : index
    %c0_320 = arith.constant 0 : index
    %322 = vector.load %arg9[%c0_317, %c3_318, %c0_319, %c0_320] : memref<1x8x16x16xf32, #tpu.memory_space<vmem>>, vector<1x1x16x16xf32>
    %323 = vector.shape_cast %322 : vector<1x1x16x16xf32> to vector<16x16xf32>
    %324 = vector.shape_cast %321 : vector<16x16xf32> to vector<1x1x16x16xf32>
    tpu.vector_store %arg9[%c0_317, %c3_318, %c0_319, %c0_320], %324 {strides = array<i32>} : memref<1x8x16x16xf32, #tpu.memory_space<vmem>>, vector<1x1x16x16xf32>,
    %cst_321 = arith.constant dense<0.000000e+00> : vector<4x16xf32>
    %325 = tpu.matmul %0, %321, %cst_321 {dimension_numbers = #tpu.dot_dimension_numbers<[1], [0], [0], [1], [0, 0, 1, 1], [], []>} : vector<4x16xf32>, vector<16x16xf32>, vector<4x16xf32> -> vector<4x16xf32>
    %cst_322 = arith.constant dense<0.000000e+00> : vector<4x4xf32>
    %326 = tpu.matmul %325, %1, %cst_322 {dimension_numbers = #tpu.dot_dimension_numbers<[1], [0], [0], [1], [0, 0, 1, 1], [], []>} : vector<4x16xf32>, vector<16x4xf32>, vector<4x4xf32> -> vector<4x4xf32>
    %c0_323 = arith.constant 0 : index
    %c3_324 = arith.constant 3 : index
    %c0_325 = arith.constant 0 : index
    %c0_326 = arith.constant 0 : index
    %327 = vector.load %arg10[%c0_323, %c3_324, %c0_325, %c0_326] : memref<1x8x4x4xf32, #tpu.memory_space<vmem>>, vector<1x1x4x4xf32>
    %328 = vector.shape_cast %327 : vector<1x1x4x4xf32> to vector<4x4xf32>
    %329 = vector.shape_cast %326 : vector<4x4xf32> to vector<1x1x4x4xf32>
    tpu.vector_store %arg10[%c0_323, %c3_324, %c0_325, %c0_326], %329 {strides = array<i32>} : memref<1x8x4x4xf32, #tpu.memory_space<vmem>>, vector<1x1x4x4xf32>,
    %c4_327 = arith.constant 4 : index
    %c0_328 = arith.constant 0 : index
    %330 = memref.load %arg2[%c4_327, %c0_328] : memref<8x8xf32, #tpu.memory_space<smem>>
    %c0_329 = arith.constant 0 : index
    %c0_330 = arith.constant 0 : index
    %c0_331 = arith.constant 0 : index
    %c0_332 = arith.constant 0 : index
    %331 = vector.load %arg5[%c0_329, %c0_330, %c0_331, %c0_332] : memref<1x8x16x16xf32, #tpu.memory_space<vmem>>, vector<1x1x16x16xf32>
    %332 = vector.shape_cast %331 : vector<1x1x16x16xf32> to vector<16x16xf32>
    %333 = vector.broadcast %330 : f32 to vector<16x16xf32>
    %334 = arith.mulf %333, %332 : vector<16x16xf32>
    %c4_333 = arith.constant 4 : index
    %c1_334 = arith.constant 1 : index
    %335 = memref.load %arg2[%c4_333, %c1_334] : memref<8x8xf32, #tpu.memory_space<smem>>
    %c0_335 = arith.constant 0 : index
    %c1_336 = arith.constant 1 : index
    %c0_337 = arith.constant 0 : index
    %c0_338 = arith.constant 0 : index
    %336 = vector.load %arg5[%c0_335, %c1_336, %c0_337, %c0_338] : memref<1x8x16x16xf32, #tpu.memory_space<vmem>>, vector<1x1x16x16xf32>
    %337 = vector.shape_cast %336 : vector<1x1x16x16xf32> to vector<16x16xf32>
    %338 = vector.broadcast %335 : f32 to vector<16x16xf32>
    %339 = arith.mulf %338, %337 : vector<16x16xf32>
    %340 = arith.addf %334, %339 : vector<16x16xf32>
    %c4_339 = arith.constant 4 : index
    %c2_340 = arith.constant 2 : index
    %341 = memref.load %arg2[%c4_339, %c2_340] : memref<8x8xf32, #tpu.memory_space<smem>>
    %c0_341 = arith.constant 0 : index
    %c2_342 = arith.constant 2 : index
    %c0_343 = arith.constant 0 : index
    %c0_344 = arith.constant 0 : index
    %342 = vector.load %arg5[%c0_341, %c2_342, %c0_343, %c0_344] : memref<1x8x16x16xf32, #tpu.memory_space<vmem>>, vector<1x1x16x16xf32>
    %343 = vector.shape_cast %342 : vector<1x1x16x16xf32> to vector<16x16xf32>
    %344 = vector.broadcast %341 : f32 to vector<16x16xf32>
    %345 = arith.mulf %344, %343 : vector<16x16xf32>
    %346 = arith.addf %340, %345 : vector<16x16xf32>
    %c4_345 = arith.constant 4 : index
    %c3_346 = arith.constant 3 : index
    %347 = memref.load %arg2[%c4_345, %c3_346] : memref<8x8xf32, #tpu.memory_space<smem>>
    %c0_347 = arith.constant 0 : index
    %c3_348 = arith.constant 3 : index
    %c0_349 = arith.constant 0 : index
    %c0_350 = arith.constant 0 : index
    %348 = vector.load %arg5[%c0_347, %c3_348, %c0_349, %c0_350] : memref<1x8x16x16xf32, #tpu.memory_space<vmem>>, vector<1x1x16x16xf32>
    %349 = vector.shape_cast %348 : vector<1x1x16x16xf32> to vector<16x16xf32>
    %350 = vector.broadcast %347 : f32 to vector<16x16xf32>
    %351 = arith.mulf %350, %349 : vector<16x16xf32>
    %352 = arith.addf %346, %351 : vector<16x16xf32>
    %c4_351 = arith.constant 4 : index
    %c4_352 = arith.constant 4 : index
    %353 = memref.load %arg2[%c4_351, %c4_352] : memref<8x8xf32, #tpu.memory_space<smem>>
    %c0_353 = arith.constant 0 : index
    %c4_354 = arith.constant 4 : index
    %c0_355 = arith.constant 0 : index
    %c0_356 = arith.constant 0 : index
    %354 = vector.load %arg5[%c0_353, %c4_354, %c0_355, %c0_356] : memref<1x8x16x16xf32, #tpu.memory_space<vmem>>, vector<1x1x16x16xf32>
    %355 = vector.shape_cast %354 : vector<1x1x16x16xf32> to vector<16x16xf32>
    %356 = vector.broadcast %353 : f32 to vector<16x16xf32>
    %357 = arith.mulf %356, %355 : vector<16x16xf32>
    %358 = arith.addf %352, %357 : vector<16x16xf32>
    %c4_357 = arith.constant 4 : index
    %c5_358 = arith.constant 5 : index
    %359 = memref.load %arg2[%c4_357, %c5_358] : memref<8x8xf32, #tpu.memory_space<smem>>
    %c0_359 = arith.constant 0 : index
    %c5_360 = arith.constant 5 : index
    %c0_361 = arith.constant 0 : index
    %c0_362 = arith.constant 0 : index
    %360 = vector.load %arg5[%c0_359, %c5_360, %c0_361, %c0_362] : memref<1x8x16x16xf32, #tpu.memory_space<vmem>>, vector<1x1x16x16xf32>
    %361 = vector.shape_cast %360 : vector<1x1x16x16xf32> to vector<16x16xf32>
    %362 = vector.broadcast %359 : f32 to vector<16x16xf32>
    %363 = arith.mulf %362, %361 : vector<16x16xf32>
    %364 = arith.addf %358, %363 : vector<16x16xf32>
    %c4_363 = arith.constant 4 : index
    %c6_364 = arith.constant 6 : index
    %365 = memref.load %arg2[%c4_363, %c6_364] : memref<8x8xf32, #tpu.memory_space<smem>>
    %c0_365 = arith.constant 0 : index
    %c6_366 = arith.constant 6 : index
    %c0_367 = arith.constant 0 : index
    %c0_368 = arith.constant 0 : index
    %366 = vector.load %arg5[%c0_365, %c6_366, %c0_367, %c0_368] : memref<1x8x16x16xf32, #tpu.memory_space<vmem>>, vector<1x1x16x16xf32>
    %367 = vector.shape_cast %366 : vector<1x1x16x16xf32> to vector<16x16xf32>
    %368 = vector.broadcast %365 : f32 to vector<16x16xf32>
    %369 = arith.mulf %368, %367 : vector<16x16xf32>
    %370 = arith.addf %364, %369 : vector<16x16xf32>
    %c4_369 = arith.constant 4 : index
    %c7_370 = arith.constant 7 : index
    %371 = memref.load %arg2[%c4_369, %c7_370] : memref<8x8xf32, #tpu.memory_space<smem>>
    %c0_371 = arith.constant 0 : index
    %c7_372 = arith.constant 7 : index
    %c0_373 = arith.constant 0 : index
    %c0_374 = arith.constant 0 : index
    %372 = vector.load %arg5[%c0_371, %c7_372, %c0_373, %c0_374] : memref<1x8x16x16xf32, #tpu.memory_space<vmem>>, vector<1x1x16x16xf32>
    %373 = vector.shape_cast %372 : vector<1x1x16x16xf32> to vector<16x16xf32>
    %374 = vector.broadcast %371 : f32 to vector<16x16xf32>
    %375 = arith.mulf %374, %373 : vector<16x16xf32>
    %376 = arith.addf %370, %375 : vector<16x16xf32>
    %c4_375 = arith.constant 4 : index
    %c0_376 = arith.constant 0 : index
    %377 = memref.load %arg3[%c4_375, %c0_376] : memref<8x4xf32, #tpu.memory_space<smem>>
    %c0_377 = arith.constant 0 : index
    %c0_378 = arith.constant 0 : index
    %c0_379 = arith.constant 0 : index
    %c0_380 = arith.constant 0 : index
    %378 = vector.load %arg6[%c0_377, %c0_378, %c0_379, %c0_380] : memref<1x4x16x16xf32, #tpu.memory_space<vmem>>, vector<1x1x16x16xf32>
    %379 = vector.shape_cast %378 : vector<1x1x16x16xf32> to vector<16x16xf32>
    %380 = vector.broadcast %377 : f32 to vector<16x16xf32>
    %381 = arith.mulf %380, %379 : vector<16x16xf32>
    %382 = arith.addf %376, %381 : vector<16x16xf32>
    %c4_381 = arith.constant 4 : index
    %c1_382 = arith.constant 1 : index
    %383 = memref.load %arg3[%c4_381, %c1_382] : memref<8x4xf32, #tpu.memory_space<smem>>
    %c0_383 = arith.constant 0 : index
    %c1_384 = arith.constant 1 : index
    %c0_385 = arith.constant 0 : index
    %c0_386 = arith.constant 0 : index
    %384 = vector.load %arg6[%c0_383, %c1_384, %c0_385, %c0_386] : memref<1x4x16x16xf32, #tpu.memory_space<vmem>>, vector<1x1x16x16xf32>
    %385 = vector.shape_cast %384 : vector<1x1x16x16xf32> to vector<16x16xf32>
    %386 = vector.broadcast %383 : f32 to vector<16x16xf32>
    %387 = arith.mulf %386, %385 : vector<16x16xf32>
    %388 = arith.addf %382, %387 : vector<16x16xf32>
    %c4_387 = arith.constant 4 : index
    %c2_388 = arith.constant 2 : index
    %389 = memref.load %arg3[%c4_387, %c2_388] : memref<8x4xf32, #tpu.memory_space<smem>>
    %c0_389 = arith.constant 0 : index
    %c2_390 = arith.constant 2 : index
    %c0_391 = arith.constant 0 : index
    %c0_392 = arith.constant 0 : index
    %390 = vector.load %arg6[%c0_389, %c2_390, %c0_391, %c0_392] : memref<1x4x16x16xf32, #tpu.memory_space<vmem>>, vector<1x1x16x16xf32>
    %391 = vector.shape_cast %390 : vector<1x1x16x16xf32> to vector<16x16xf32>
    %392 = vector.broadcast %389 : f32 to vector<16x16xf32>
    %393 = arith.mulf %392, %391 : vector<16x16xf32>
    %394 = arith.addf %388, %393 : vector<16x16xf32>
    %c4_393 = arith.constant 4 : index
    %c3_394 = arith.constant 3 : index
    %395 = memref.load %arg3[%c4_393, %c3_394] : memref<8x4xf32, #tpu.memory_space<smem>>
    %c0_395 = arith.constant 0 : index
    %c3_396 = arith.constant 3 : index
    %c0_397 = arith.constant 0 : index
    %c0_398 = arith.constant 0 : index
    %396 = vector.load %arg6[%c0_395, %c3_396, %c0_397, %c0_398] : memref<1x4x16x16xf32, #tpu.memory_space<vmem>>, vector<1x1x16x16xf32>
    %397 = vector.shape_cast %396 : vector<1x1x16x16xf32> to vector<16x16xf32>
    %398 = vector.broadcast %395 : f32 to vector<16x16xf32>
    %399 = arith.mulf %398, %397 : vector<16x16xf32>
    %400 = arith.addf %394, %399 : vector<16x16xf32>
    %c4_399 = arith.constant 4 : index
    %401 = memref.load %arg4[%c4_399] : memref<8xf32, #tpu.memory_space<smem>>
    %402 = vector.broadcast %401 : f32 to vector<16x16xf32>
    %403 = arith.addf %400, %402 : vector<16x16xf32>
    %c0_400 = arith.constant 0 : index
    %c4_401 = arith.constant 4 : index
    %c0_402 = arith.constant 0 : index
    %c0_403 = arith.constant 0 : index
    %404 = vector.load %arg9[%c0_400, %c4_401, %c0_402, %c0_403] : memref<1x8x16x16xf32, #tpu.memory_space<vmem>>, vector<1x1x16x16xf32>
    %405 = vector.shape_cast %404 : vector<1x1x16x16xf32> to vector<16x16xf32>
    %406 = vector.shape_cast %403 : vector<16x16xf32> to vector<1x1x16x16xf32>
    tpu.vector_store %arg9[%c0_400, %c4_401, %c0_402, %c0_403], %406 {strides = array<i32>} : memref<1x8x16x16xf32, #tpu.memory_space<vmem>>, vector<1x1x16x16xf32>,
    %cst_404 = arith.constant dense<0.000000e+00> : vector<4x16xf32>
    %407 = tpu.matmul %0, %403, %cst_404 {dimension_numbers = #tpu.dot_dimension_numbers<[1], [0], [0], [1], [0, 0, 1, 1], [], []>} : vector<4x16xf32>, vector<16x16xf32>, vector<4x16xf32> -> vector<4x16xf32>
    %cst_405 = arith.constant dense<0.000000e+00> : vector<4x4xf32>
    %408 = tpu.matmul %407, %1, %cst_405 {dimension_numbers = #tpu.dot_dimension_numbers<[1], [0], [0], [1], [0, 0, 1, 1], [], []>} : vector<4x16xf32>, vector<16x4xf32>, vector<4x4xf32> -> vector<4x4xf32>
    %c0_406 = arith.constant 0 : index
    %c4_407 = arith.constant 4 : index
    %c0_408 = arith.constant 0 : index
    %c0_409 = arith.constant 0 : index
    %409 = vector.load %arg10[%c0_406, %c4_407, %c0_408, %c0_409] : memref<1x8x4x4xf32, #tpu.memory_space<vmem>>, vector<1x1x4x4xf32>
    %410 = vector.shape_cast %409 : vector<1x1x4x4xf32> to vector<4x4xf32>
    %411 = vector.shape_cast %408 : vector<4x4xf32> to vector<1x1x4x4xf32>
    tpu.vector_store %arg10[%c0_406, %c4_407, %c0_408, %c0_409], %411 {strides = array<i32>} : memref<1x8x4x4xf32, #tpu.memory_space<vmem>>, vector<1x1x4x4xf32>,
    %c5_410 = arith.constant 5 : index
    %c0_411 = arith.constant 0 : index
    %412 = memref.load %arg2[%c5_410, %c0_411] : memref<8x8xf32, #tpu.memory_space<smem>>
    %c0_412 = arith.constant 0 : index
    %c0_413 = arith.constant 0 : index
    %c0_414 = arith.constant 0 : index
    %c0_415 = arith.constant 0 : index
    %413 = vector.load %arg5[%c0_412, %c0_413, %c0_414, %c0_415] : memref<1x8x16x16xf32, #tpu.memory_space<vmem>>, vector<1x1x16x16xf32>
    %414 = vector.shape_cast %413 : vector<1x1x16x16xf32> to vector<16x16xf32>
    %415 = vector.broadcast %412 : f32 to vector<16x16xf32>
    %416 = arith.mulf %415, %414 : vector<16x16xf32>
    %c5_416 = arith.constant 5 : index
    %c1_417 = arith.constant 1 : index
    %417 = memref.load %arg2[%c5_416, %c1_417] : memref<8x8xf32, #tpu.memory_space<smem>>
    %c0_418 = arith.constant 0 : index
    %c1_419 = arith.constant 1 : index
    %c0_420 = arith.constant 0 : index
    %c0_421 = arith.constant 0 : index
    %418 = vector.load %arg5[%c0_418, %c1_419, %c0_420, %c0_421] : memref<1x8x16x16xf32, #tpu.memory_space<vmem>>, vector<1x1x16x16xf32>
    %419 = vector.shape_cast %418 : vector<1x1x16x16xf32> to vector<16x16xf32>
    %420 = vector.broadcast %417 : f32 to vector<16x16xf32>
    %421 = arith.mulf %420, %419 : vector<16x16xf32>
    %422 = arith.addf %416, %421 : vector<16x16xf32>
    %c5_422 = arith.constant 5 : index
    %c2_423 = arith.constant 2 : index
    %423 = memref.load %arg2[%c5_422, %c2_423] : memref<8x8xf32, #tpu.memory_space<smem>>
    %c0_424 = arith.constant 0 : index
    %c2_425 = arith.constant 2 : index
    %c0_426 = arith.constant 0 : index
    %c0_427 = arith.constant 0 : index
    %424 = vector.load %arg5[%c0_424, %c2_425, %c0_426, %c0_427] : memref<1x8x16x16xf32, #tpu.memory_space<vmem>>, vector<1x1x16x16xf32>
    %425 = vector.shape_cast %424 : vector<1x1x16x16xf32> to vector<16x16xf32>
    %426 = vector.broadcast %423 : f32 to vector<16x16xf32>
    %427 = arith.mulf %426, %425 : vector<16x16xf32>
    %428 = arith.addf %422, %427 : vector<16x16xf32>
    %c5_428 = arith.constant 5 : index
    %c3_429 = arith.constant 3 : index
    %429 = memref.load %arg2[%c5_428, %c3_429] : memref<8x8xf32, #tpu.memory_space<smem>>
    %c0_430 = arith.constant 0 : index
    %c3_431 = arith.constant 3 : index
    %c0_432 = arith.constant 0 : index
    %c0_433 = arith.constant 0 : index
    %430 = vector.load %arg5[%c0_430, %c3_431, %c0_432, %c0_433] : memref<1x8x16x16xf32, #tpu.memory_space<vmem>>, vector<1x1x16x16xf32>
    %431 = vector.shape_cast %430 : vector<1x1x16x16xf32> to vector<16x16xf32>
    %432 = vector.broadcast %429 : f32 to vector<16x16xf32>
    %433 = arith.mulf %432, %431 : vector<16x16xf32>
    %434 = arith.addf %428, %433 : vector<16x16xf32>
    %c5_434 = arith.constant 5 : index
    %c4_435 = arith.constant 4 : index
    %435 = memref.load %arg2[%c5_434, %c4_435] : memref<8x8xf32, #tpu.memory_space<smem>>
    %c0_436 = arith.constant 0 : index
    %c4_437 = arith.constant 4 : index
    %c0_438 = arith.constant 0 : index
    %c0_439 = arith.constant 0 : index
    %436 = vector.load %arg5[%c0_436, %c4_437, %c0_438, %c0_439] : memref<1x8x16x16xf32, #tpu.memory_space<vmem>>, vector<1x1x16x16xf32>
    %437 = vector.shape_cast %436 : vector<1x1x16x16xf32> to vector<16x16xf32>
    %438 = vector.broadcast %435 : f32 to vector<16x16xf32>
    %439 = arith.mulf %438, %437 : vector<16x16xf32>
    %440 = arith.addf %434, %439 : vector<16x16xf32>
    %c5_440 = arith.constant 5 : index
    %c5_441 = arith.constant 5 : index
    %441 = memref.load %arg2[%c5_440, %c5_441] : memref<8x8xf32, #tpu.memory_space<smem>>
    %c0_442 = arith.constant 0 : index
    %c5_443 = arith.constant 5 : index
    %c0_444 = arith.constant 0 : index
    %c0_445 = arith.constant 0 : index
    %442 = vector.load %arg5[%c0_442, %c5_443, %c0_444, %c0_445] : memref<1x8x16x16xf32, #tpu.memory_space<vmem>>, vector<1x1x16x16xf32>
    %443 = vector.shape_cast %442 : vector<1x1x16x16xf32> to vector<16x16xf32>
    %444 = vector.broadcast %441 : f32 to vector<16x16xf32>
    %445 = arith.mulf %444, %443 : vector<16x16xf32>
    %446 = arith.addf %440, %445 : vector<16x16xf32>
    %c5_446 = arith.constant 5 : index
    %c6_447 = arith.constant 6 : index
    %447 = memref.load %arg2[%c5_446, %c6_447] : memref<8x8xf32, #tpu.memory_space<smem>>
    %c0_448 = arith.constant 0 : index
    %c6_449 = arith.constant 6 : index
    %c0_450 = arith.constant 0 : index
    %c0_451 = arith.constant 0 : index
    %448 = vector.load %arg5[%c0_448, %c6_449, %c0_450, %c0_451] : memref<1x8x16x16xf32, #tpu.memory_space<vmem>>, vector<1x1x16x16xf32>
    %449 = vector.shape_cast %448 : vector<1x1x16x16xf32> to vector<16x16xf32>
    %450 = vector.broadcast %447 : f32 to vector<16x16xf32>
    %451 = arith.mulf %450, %449 : vector<16x16xf32>
    %452 = arith.addf %446, %451 : vector<16x16xf32>
    %c5_452 = arith.constant 5 : index
    %c7_453 = arith.constant 7 : index
    %453 = memref.load %arg2[%c5_452, %c7_453] : memref<8x8xf32, #tpu.memory_space<smem>>
    %c0_454 = arith.constant 0 : index
    %c7_455 = arith.constant 7 : index
    %c0_456 = arith.constant 0 : index
    %c0_457 = arith.constant 0 : index
    %454 = vector.load %arg5[%c0_454, %c7_455, %c0_456, %c0_457] : memref<1x8x16x16xf32, #tpu.memory_space<vmem>>, vector<1x1x16x16xf32>
    %455 = vector.shape_cast %454 : vector<1x1x16x16xf32> to vector<16x16xf32>
    %456 = vector.broadcast %453 : f32 to vector<16x16xf32>
    %457 = arith.mulf %456, %455 : vector<16x16xf32>
    %458 = arith.addf %452, %457 : vector<16x16xf32>
    %c5_458 = arith.constant 5 : index
    %c0_459 = arith.constant 0 : index
    %459 = memref.load %arg3[%c5_458, %c0_459] : memref<8x4xf32, #tpu.memory_space<smem>>
    %c0_460 = arith.constant 0 : index
    %c0_461 = arith.constant 0 : index
    %c0_462 = arith.constant 0 : index
    %c0_463 = arith.constant 0 : index
    %460 = vector.load %arg6[%c0_460, %c0_461, %c0_462, %c0_463] : memref<1x4x16x16xf32, #tpu.memory_space<vmem>>, vector<1x1x16x16xf32>
    %461 = vector.shape_cast %460 : vector<1x1x16x16xf32> to vector<16x16xf32>
    %462 = vector.broadcast %459 : f32 to vector<16x16xf32>
    %463 = arith.mulf %462, %461 : vector<16x16xf32>
    %464 = arith.addf %458, %463 : vector<16x16xf32>
    %c5_464 = arith.constant 5 : index
    %c1_465 = arith.constant 1 : index
    %465 = memref.load %arg3[%c5_464, %c1_465] : memref<8x4xf32, #tpu.memory_space<smem>>
    %c0_466 = arith.constant 0 : index
    %c1_467 = arith.constant 1 : index
    %c0_468 = arith.constant 0 : index
    %c0_469 = arith.constant 0 : index
    %466 = vector.load %arg6[%c0_466, %c1_467, %c0_468, %c0_469] : memref<1x4x16x16xf32, #tpu.memory_space<vmem>>, vector<1x1x16x16xf32>
    %467 = vector.shape_cast %466 : vector<1x1x16x16xf32> to vector<16x16xf32>
    %468 = vector.broadcast %465 : f32 to vector<16x16xf32>
    %469 = arith.mulf %468, %467 : vector<16x16xf32>
    %470 = arith.addf %464, %469 : vector<16x16xf32>
    %c5_470 = arith.constant 5 : index
    %c2_471 = arith.constant 2 : index
    %471 = memref.load %arg3[%c5_470, %c2_471] : memref<8x4xf32, #tpu.memory_space<smem>>
    %c0_472 = arith.constant 0 : index
    %c2_473 = arith.constant 2 : index
    %c0_474 = arith.constant 0 : index
    %c0_475 = arith.constant 0 : index
    %472 = vector.load %arg6[%c0_472, %c2_473, %c0_474, %c0_475] : memref<1x4x16x16xf32, #tpu.memory_space<vmem>>, vector<1x1x16x16xf32>
    %473 = vector.shape_cast %472 : vector<1x1x16x16xf32> to vector<16x16xf32>
    %474 = vector.broadcast %471 : f32 to vector<16x16xf32>
    %475 = arith.mulf %474, %473 : vector<16x16xf32>
    %476 = arith.addf %470, %475 : vector<16x16xf32>
    %c5_476 = arith.constant 5 : index
    %c3_477 = arith.constant 3 : index
    %477 = memref.load %arg3[%c5_476, %c3_477] : memref<8x4xf32, #tpu.memory_space<smem>>
    %c0_478 = arith.constant 0 : index
    %c3_479 = arith.constant 3 : index
    %c0_480 = arith.constant 0 : index
    %c0_481 = arith.constant 0 : index
    %478 = vector.load %arg6[%c0_478, %c3_479, %c0_480, %c0_481] : memref<1x4x16x16xf32, #tpu.memory_space<vmem>>, vector<1x1x16x16xf32>
    %479 = vector.shape_cast %478 : vector<1x1x16x16xf32> to vector<16x16xf32>
    %480 = vector.broadcast %477 : f32 to vector<16x16xf32>
    %481 = arith.mulf %480, %479 : vector<16x16xf32>
    %482 = arith.addf %476, %481 : vector<16x16xf32>
    %c5_482 = arith.constant 5 : index
    %483 = memref.load %arg4[%c5_482] : memref<8xf32, #tpu.memory_space<smem>>
    %484 = vector.broadcast %483 : f32 to vector<16x16xf32>
    %485 = arith.addf %482, %484 : vector<16x16xf32>
    %c0_483 = arith.constant 0 : index
    %c5_484 = arith.constant 5 : index
    %c0_485 = arith.constant 0 : index
    %c0_486 = arith.constant 0 : index
    %486 = vector.load %arg9[%c0_483, %c5_484, %c0_485, %c0_486] : memref<1x8x16x16xf32, #tpu.memory_space<vmem>>, vector<1x1x16x16xf32>
    %487 = vector.shape_cast %486 : vector<1x1x16x16xf32> to vector<16x16xf32>
    %488 = vector.shape_cast %485 : vector<16x16xf32> to vector<1x1x16x16xf32>
    tpu.vector_store %arg9[%c0_483, %c5_484, %c0_485, %c0_486], %488 {strides = array<i32>} : memref<1x8x16x16xf32, #tpu.memory_space<vmem>>, vector<1x1x16x16xf32>,
    %cst_487 = arith.constant dense<0.000000e+00> : vector<4x16xf32>
    %489 = tpu.matmul %0, %485, %cst_487 {dimension_numbers = #tpu.dot_dimension_numbers<[1], [0], [0], [1], [0, 0, 1, 1], [], []>} : vector<4x16xf32>, vector<16x16xf32>, vector<4x16xf32> -> vector<4x16xf32>
    %cst_488 = arith.constant dense<0.000000e+00> : vector<4x4xf32>
    %490 = tpu.matmul %489, %1, %cst_488 {dimension_numbers = #tpu.dot_dimension_numbers<[1], [0], [0], [1], [0, 0, 1, 1], [], []>} : vector<4x16xf32>, vector<16x4xf32>, vector<4x4xf32> -> vector<4x4xf32>
    %c0_489 = arith.constant 0 : index
    %c5_490 = arith.constant 5 : index
    %c0_491 = arith.constant 0 : index
    %c0_492 = arith.constant 0 : index
    %491 = vector.load %arg10[%c0_489, %c5_490, %c0_491, %c0_492] : memref<1x8x4x4xf32, #tpu.memory_space<vmem>>, vector<1x1x4x4xf32>
    %492 = vector.shape_cast %491 : vector<1x1x4x4xf32> to vector<4x4xf32>
    %493 = vector.shape_cast %490 : vector<4x4xf32> to vector<1x1x4x4xf32>
    tpu.vector_store %arg10[%c0_489, %c5_490, %c0_491, %c0_492], %493 {strides = array<i32>} : memref<1x8x4x4xf32, #tpu.memory_space<vmem>>, vector<1x1x4x4xf32>,
    %c6_493 = arith.constant 6 : index
    %c0_494 = arith.constant 0 : index
    %494 = memref.load %arg2[%c6_493, %c0_494] : memref<8x8xf32, #tpu.memory_space<smem>>
    %c0_495 = arith.constant 0 : index
    %c0_496 = arith.constant 0 : index
    %c0_497 = arith.constant 0 : index
    %c0_498 = arith.constant 0 : index
    %495 = vector.load %arg5[%c0_495, %c0_496, %c0_497, %c0_498] : memref<1x8x16x16xf32, #tpu.memory_space<vmem>>, vector<1x1x16x16xf32>
    %496 = vector.shape_cast %495 : vector<1x1x16x16xf32> to vector<16x16xf32>
    %497 = vector.broadcast %494 : f32 to vector<16x16xf32>
    %498 = arith.mulf %497, %496 : vector<16x16xf32>
    %c6_499 = arith.constant 6 : index
    %c1_500 = arith.constant 1 : index
    %499 = memref.load %arg2[%c6_499, %c1_500] : memref<8x8xf32, #tpu.memory_space<smem>>
    %c0_501 = arith.constant 0 : index
    %c1_502 = arith.constant 1 : index
    %c0_503 = arith.constant 0 : index
    %c0_504 = arith.constant 0 : index
    %500 = vector.load %arg5[%c0_501, %c1_502, %c0_503, %c0_504] : memref<1x8x16x16xf32, #tpu.memory_space<vmem>>, vector<1x1x16x16xf32>
    %501 = vector.shape_cast %500 : vector<1x1x16x16xf32> to vector<16x16xf32>
    %502 = vector.broadcast %499 : f32 to vector<16x16xf32>
    %503 = arith.mulf %502, %501 : vector<16x16xf32>
    %504 = arith.addf %498, %503 : vector<16x16xf32>
    %c6_505 = arith.constant 6 : index
    %c2_506 = arith.constant 2 : index
    %505 = memref.load %arg2[%c6_505, %c2_506] : memref<8x8xf32, #tpu.memory_space<smem>>
    %c0_507 = arith.constant 0 : index
    %c2_508 = arith.constant 2 : index
    %c0_509 = arith.constant 0 : index
    %c0_510 = arith.constant 0 : index
    %506 = vector.load %arg5[%c0_507, %c2_508, %c0_509, %c0_510] : memref<1x8x16x16xf32, #tpu.memory_space<vmem>>, vector<1x1x16x16xf32>
    %507 = vector.shape_cast %506 : vector<1x1x16x16xf32> to vector<16x16xf32>
    %508 = vector.broadcast %505 : f32 to vector<16x16xf32>
    %509 = arith.mulf %508, %507 : vector<16x16xf32>
    %510 = arith.addf %504, %509 : vector<16x16xf32>
    %c6_511 = arith.constant 6 : index
    %c3_512 = arith.constant 3 : index
    %511 = memref.load %arg2[%c6_511, %c3_512] : memref<8x8xf32, #tpu.memory_space<smem>>
    %c0_513 = arith.constant 0 : index
    %c3_514 = arith.constant 3 : index
    %c0_515 = arith.constant 0 : index
    %c0_516 = arith.constant 0 : index
    %512 = vector.load %arg5[%c0_513, %c3_514, %c0_515, %c0_516] : memref<1x8x16x16xf32, #tpu.memory_space<vmem>>, vector<1x1x16x16xf32>
    %513 = vector.shape_cast %512 : vector<1x1x16x16xf32> to vector<16x16xf32>
    %514 = vector.broadcast %511 : f32 to vector<16x16xf32>
    %515 = arith.mulf %514, %513 : vector<16x16xf32>
    %516 = arith.addf %510, %515 : vector<16x16xf32>
    %c6_517 = arith.constant 6 : index
    %c4_518 = arith.constant 4 : index
    %517 = memref.load %arg2[%c6_517, %c4_518] : memref<8x8xf32, #tpu.memory_space<smem>>
    %c0_519 = arith.constant 0 : index
    %c4_520 = arith.constant 4 : index
    %c0_521 = arith.constant 0 : index
    %c0_522 = arith.constant 0 : index
    %518 = vector.load %arg5[%c0_519, %c4_520, %c0_521, %c0_522] : memref<1x8x16x16xf32, #tpu.memory_space<vmem>>, vector<1x1x16x16xf32>
    %519 = vector.shape_cast %518 : vector<1x1x16x16xf32> to vector<16x16xf32>
    %520 = vector.broadcast %517 : f32 to vector<16x16xf32>
    %521 = arith.mulf %520, %519 : vector<16x16xf32>
    %522 = arith.addf %516, %521 : vector<16x16xf32>
    %c6_523 = arith.constant 6 : index
    %c5_524 = arith.constant 5 : index
    %523 = memref.load %arg2[%c6_523, %c5_524] : memref<8x8xf32, #tpu.memory_space<smem>>
    %c0_525 = arith.constant 0 : index
    %c5_526 = arith.constant 5 : index
    %c0_527 = arith.constant 0 : index
    %c0_528 = arith.constant 0 : index
    %524 = vector.load %arg5[%c0_525, %c5_526, %c0_527, %c0_528] : memref<1x8x16x16xf32, #tpu.memory_space<vmem>>, vector<1x1x16x16xf32>
    %525 = vector.shape_cast %524 : vector<1x1x16x16xf32> to vector<16x16xf32>
    %526 = vector.broadcast %523 : f32 to vector<16x16xf32>
    %527 = arith.mulf %526, %525 : vector<16x16xf32>
    %528 = arith.addf %522, %527 : vector<16x16xf32>
    %c6_529 = arith.constant 6 : index
    %c6_530 = arith.constant 6 : index
    %529 = memref.load %arg2[%c6_529, %c6_530] : memref<8x8xf32, #tpu.memory_space<smem>>
    %c0_531 = arith.constant 0 : index
    %c6_532 = arith.constant 6 : index
    %c0_533 = arith.constant 0 : index
    %c0_534 = arith.constant 0 : index
    %530 = vector.load %arg5[%c0_531, %c6_532, %c0_533, %c0_534] : memref<1x8x16x16xf32, #tpu.memory_space<vmem>>, vector<1x1x16x16xf32>
    %531 = vector.shape_cast %530 : vector<1x1x16x16xf32> to vector<16x16xf32>
    %532 = vector.broadcast %529 : f32 to vector<16x16xf32>
    %533 = arith.mulf %532, %531 : vector<16x16xf32>
    %534 = arith.addf %528, %533 : vector<16x16xf32>
    %c6_535 = arith.constant 6 : index
    %c7_536 = arith.constant 7 : index
    %535 = memref.load %arg2[%c6_535, %c7_536] : memref<8x8xf32, #tpu.memory_space<smem>>
    %c0_537 = arith.constant 0 : index
    %c7_538 = arith.constant 7 : index
    %c0_539 = arith.constant 0 : index
    %c0_540 = arith.constant 0 : index
    %536 = vector.load %arg5[%c0_537, %c7_538, %c0_539, %c0_540] : memref<1x8x16x16xf32, #tpu.memory_space<vmem>>, vector<1x1x16x16xf32>
    %537 = vector.shape_cast %536 : vector<1x1x16x16xf32> to vector<16x16xf32>
    %538 = vector.broadcast %535 : f32 to vector<16x16xf32>
    %539 = arith.mulf %538, %537 : vector<16x16xf32>
    %540 = arith.addf %534, %539 : vector<16x16xf32>
    %c6_541 = arith.constant 6 : index
    %c0_542 = arith.constant 0 : index
    %541 = memref.load %arg3[%c6_541, %c0_542] : memref<8x4xf32, #tpu.memory_space<smem>>
    %c0_543 = arith.constant 0 : index
    %c0_544 = arith.constant 0 : index
    %c0_545 = arith.constant 0 : index
    %c0_546 = arith.constant 0 : index
    %542 = vector.load %arg6[%c0_543, %c0_544, %c0_545, %c0_546] : memref<1x4x16x16xf32, #tpu.memory_space<vmem>>, vector<1x1x16x16xf32>
    %543 = vector.shape_cast %542 : vector<1x1x16x16xf32> to vector<16x16xf32>
    %544 = vector.broadcast %541 : f32 to vector<16x16xf32>
    %545 = arith.mulf %544, %543 : vector<16x16xf32>
    %546 = arith.addf %540, %545 : vector<16x16xf32>
    %c6_547 = arith.constant 6 : index
    %c1_548 = arith.constant 1 : index
    %547 = memref.load %arg3[%c6_547, %c1_548] : memref<8x4xf32, #tpu.memory_space<smem>>
    %c0_549 = arith.constant 0 : index
    %c1_550 = arith.constant 1 : index
    %c0_551 = arith.constant 0 : index
    %c0_552 = arith.constant 0 : index
    %548 = vector.load %arg6[%c0_549, %c1_550, %c0_551, %c0_552] : memref<1x4x16x16xf32, #tpu.memory_space<vmem>>, vector<1x1x16x16xf32>
    %549 = vector.shape_cast %548 : vector<1x1x16x16xf32> to vector<16x16xf32>
    %550 = vector.broadcast %547 : f32 to vector<16x16xf32>
    %551 = arith.mulf %550, %549 : vector<16x16xf32>
    %552 = arith.addf %546, %551 : vector<16x16xf32>
    %c6_553 = arith.constant 6 : index
    %c2_554 = arith.constant 2 : index
    %553 = memref.load %arg3[%c6_553, %c2_554] : memref<8x4xf32, #tpu.memory_space<smem>>
    %c0_555 = arith.constant 0 : index
    %c2_556 = arith.constant 2 : index
    %c0_557 = arith.constant 0 : index
    %c0_558 = arith.constant 0 : index
    %554 = vector.load %arg6[%c0_555, %c2_556, %c0_557, %c0_558] : memref<1x4x16x16xf32, #tpu.memory_space<vmem>>, vector<1x1x16x16xf32>
    %555 = vector.shape_cast %554 : vector<1x1x16x16xf32> to vector<16x16xf32>
    %556 = vector.broadcast %553 : f32 to vector<16x16xf32>
    %557 = arith.mulf %556, %555 : vector<16x16xf32>
    %558 = arith.addf %552, %557 : vector<16x16xf32>
    %c6_559 = arith.constant 6 : index
    %c3_560 = arith.constant 3 : index
    %559 = memref.load %arg3[%c6_559, %c3_560] : memref<8x4xf32, #tpu.memory_space<smem>>
    %c0_561 = arith.constant 0 : index
    %c3_562 = arith.constant 3 : index
    %c0_563 = arith.constant 0 : index
    %c0_564 = arith.constant 0 : index
    %560 = vector.load %arg6[%c0_561, %c3_562, %c0_563, %c0_564] : memref<1x4x16x16xf32, #tpu.memory_space<vmem>>, vector<1x1x16x16xf32>
    %561 = vector.shape_cast %560 : vector<1x1x16x16xf32> to vector<16x16xf32>
    %562 = vector.broadcast %559 : f32 to vector<16x16xf32>
    %563 = arith.mulf %562, %561 : vector<16x16xf32>
    %564 = arith.addf %558, %563 : vector<16x16xf32>
    %c6_565 = arith.constant 6 : index
    %565 = memref.load %arg4[%c6_565] : memref<8xf32, #tpu.memory_space<smem>>
    %566 = vector.broadcast %565 : f32 to vector<16x16xf32>
    %567 = arith.addf %564, %566 : vector<16x16xf32>
    %c0_566 = arith.constant 0 : index
    %c6_567 = arith.constant 6 : index
    %c0_568 = arith.constant 0 : index
    %c0_569 = arith.constant 0 : index
    %568 = vector.load %arg9[%c0_566, %c6_567, %c0_568, %c0_569] : memref<1x8x16x16xf32, #tpu.memory_space<vmem>>, vector<1x1x16x16xf32>
    %569 = vector.shape_cast %568 : vector<1x1x16x16xf32> to vector<16x16xf32>
    %570 = vector.shape_cast %567 : vector<16x16xf32> to vector<1x1x16x16xf32>
    tpu.vector_store %arg9[%c0_566, %c6_567, %c0_568, %c0_569], %570 {strides = array<i32>} : memref<1x8x16x16xf32, #tpu.memory_space<vmem>>, vector<1x1x16x16xf32>,
    %cst_570 = arith.constant dense<0.000000e+00> : vector<4x16xf32>
    %571 = tpu.matmul %0, %567, %cst_570 {dimension_numbers = #tpu.dot_dimension_numbers<[1], [0], [0], [1], [0, 0, 1, 1], [], []>} : vector<4x16xf32>, vector<16x16xf32>, vector<4x16xf32> -> vector<4x16xf32>
    %cst_571 = arith.constant dense<0.000000e+00> : vector<4x4xf32>
    %572 = tpu.matmul %571, %1, %cst_571 {dimension_numbers = #tpu.dot_dimension_numbers<[1], [0], [0], [1], [0, 0, 1, 1], [], []>} : vector<4x16xf32>, vector<16x4xf32>, vector<4x4xf32> -> vector<4x4xf32>
    %c0_572 = arith.constant 0 : index
    %c6_573 = arith.constant 6 : index
    %c0_574 = arith.constant 0 : index
    %c0_575 = arith.constant 0 : index
    %573 = vector.load %arg10[%c0_572, %c6_573, %c0_574, %c0_575] : memref<1x8x4x4xf32, #tpu.memory_space<vmem>>, vector<1x1x4x4xf32>
    %574 = vector.shape_cast %573 : vector<1x1x4x4xf32> to vector<4x4xf32>
    %575 = vector.shape_cast %572 : vector<4x4xf32> to vector<1x1x4x4xf32>
    tpu.vector_store %arg10[%c0_572, %c6_573, %c0_574, %c0_575], %575 {strides = array<i32>} : memref<1x8x4x4xf32, #tpu.memory_space<vmem>>, vector<1x1x4x4xf32>,
    %c7_576 = arith.constant 7 : index
    %c0_577 = arith.constant 0 : index
    %576 = memref.load %arg2[%c7_576, %c0_577] : memref<8x8xf32, #tpu.memory_space<smem>>
    %c0_578 = arith.constant 0 : index
    %c0_579 = arith.constant 0 : index
    %c0_580 = arith.constant 0 : index
    %c0_581 = arith.constant 0 : index
    %577 = vector.load %arg5[%c0_578, %c0_579, %c0_580, %c0_581] : memref<1x8x16x16xf32, #tpu.memory_space<vmem>>, vector<1x1x16x16xf32>
    %578 = vector.shape_cast %577 : vector<1x1x16x16xf32> to vector<16x16xf32>
    %579 = vector.broadcast %576 : f32 to vector<16x16xf32>
    %580 = arith.mulf %579, %578 : vector<16x16xf32>
    %c7_582 = arith.constant 7 : index
    %c1_583 = arith.constant 1 : index
    %581 = memref.load %arg2[%c7_582, %c1_583] : memref<8x8xf32, #tpu.memory_space<smem>>
    %c0_584 = arith.constant 0 : index
    %c1_585 = arith.constant 1 : index
    %c0_586 = arith.constant 0 : index
    %c0_587 = arith.constant 0 : index
    %582 = vector.load %arg5[%c0_584, %c1_585, %c0_586, %c0_587] : memref<1x8x16x16xf32, #tpu.memory_space<vmem>>, vector<1x1x16x16xf32>
    %583 = vector.shape_cast %582 : vector<1x1x16x16xf32> to vector<16x16xf32>
    %584 = vector.broadcast %581 : f32 to vector<16x16xf32>
    %585 = arith.mulf %584, %583 : vector<16x16xf32>
    %586 = arith.addf %580, %585 : vector<16x16xf32>
    %c7_588 = arith.constant 7 : index
    %c2_589 = arith.constant 2 : index
    %587 = memref.load %arg2[%c7_588, %c2_589] : memref<8x8xf32, #tpu.memory_space<smem>>
    %c0_590 = arith.constant 0 : index
    %c2_591 = arith.constant 2 : index
    %c0_592 = arith.constant 0 : index
    %c0_593 = arith.constant 0 : index
    %588 = vector.load %arg5[%c0_590, %c2_591, %c0_592, %c0_593] : memref<1x8x16x16xf32, #tpu.memory_space<vmem>>, vector<1x1x16x16xf32>
    %589 = vector.shape_cast %588 : vector<1x1x16x16xf32> to vector<16x16xf32>
    %590 = vector.broadcast %587 : f32 to vector<16x16xf32>
    %591 = arith.mulf %590, %589 : vector<16x16xf32>
    %592 = arith.addf %586, %591 : vector<16x16xf32>
    %c7_594 = arith.constant 7 : index
    %c3_595 = arith.constant 3 : index
    %593 = memref.load %arg2[%c7_594, %c3_595] : memref<8x8xf32, #tpu.memory_space<smem>>
    %c0_596 = arith.constant 0 : index
    %c3_597 = arith.constant 3 : index
    %c0_598 = arith.constant 0 : index
    %c0_599 = arith.constant 0 : index
    %594 = vector.load %arg5[%c0_596, %c3_597, %c0_598, %c0_599] : memref<1x8x16x16xf32, #tpu.memory_space<vmem>>, vector<1x1x16x16xf32>
    %595 = vector.shape_cast %594 : vector<1x1x16x16xf32> to vector<16x16xf32>
    %596 = vector.broadcast %593 : f32 to vector<16x16xf32>
    %597 = arith.mulf %596, %595 : vector<16x16xf32>
    %598 = arith.addf %592, %597 : vector<16x16xf32>
    %c7_600 = arith.constant 7 : index
    %c4_601 = arith.constant 4 : index
    %599 = memref.load %arg2[%c7_600, %c4_601] : memref<8x8xf32, #tpu.memory_space<smem>>
    %c0_602 = arith.constant 0 : index
    %c4_603 = arith.constant 4 : index
    %c0_604 = arith.constant 0 : index
    %c0_605 = arith.constant 0 : index
    %600 = vector.load %arg5[%c0_602, %c4_603, %c0_604, %c0_605] : memref<1x8x16x16xf32, #tpu.memory_space<vmem>>, vector<1x1x16x16xf32>
    %601 = vector.shape_cast %600 : vector<1x1x16x16xf32> to vector<16x16xf32>
    %602 = vector.broadcast %599 : f32 to vector<16x16xf32>
    %603 = arith.mulf %602, %601 : vector<16x16xf32>
    %604 = arith.addf %598, %603 : vector<16x16xf32>
    %c7_606 = arith.constant 7 : index
    %c5_607 = arith.constant 5 : index
    %605 = memref.load %arg2[%c7_606, %c5_607] : memref<8x8xf32, #tpu.memory_space<smem>>
    %c0_608 = arith.constant 0 : index
    %c5_609 = arith.constant 5 : index
    %c0_610 = arith.constant 0 : index
    %c0_611 = arith.constant 0 : index
    %606 = vector.load %arg5[%c0_608, %c5_609, %c0_610, %c0_611] : memref<1x8x16x16xf32, #tpu.memory_space<vmem>>, vector<1x1x16x16xf32>
    %607 = vector.shape_cast %606 : vector<1x1x16x16xf32> to vector<16x16xf32>
    %608 = vector.broadcast %605 : f32 to vector<16x16xf32>
    %609 = arith.mulf %608, %607 : vector<16x16xf32>
    %610 = arith.addf %604, %609 : vector<16x16xf32>
    %c7_612 = arith.constant 7 : index
    %c6_613 = arith.constant 6 : index
    %611 = memref.load %arg2[%c7_612, %c6_613] : memref<8x8xf32, #tpu.memory_space<smem>>
    %c0_614 = arith.constant 0 : index
    %c6_615 = arith.constant 6 : index
    %c0_616 = arith.constant 0 : index
    %c0_617 = arith.constant 0 : index
    %612 = vector.load %arg5[%c0_614, %c6_615, %c0_616, %c0_617] : memref<1x8x16x16xf32, #tpu.memory_space<vmem>>, vector<1x1x16x16xf32>
    %613 = vector.shape_cast %612 : vector<1x1x16x16xf32> to vector<16x16xf32>
    %614 = vector.broadcast %611 : f32 to vector<16x16xf32>
    %615 = arith.mulf %614, %613 : vector<16x16xf32>
    %616 = arith.addf %610, %615 : vector<16x16xf32>
    %c7_618 = arith.constant 7 : index
    %c7_619 = arith.constant 7 : index
    %617 = memref.load %arg2[%c7_618, %c7_619] : memref<8x8xf32, #tpu.memory_space<smem>>
    %c0_620 = arith.constant 0 : index
    %c7_621 = arith.constant 7 : index
    %c0_622 = arith.constant 0 : index
    %c0_623 = arith.constant 0 : index
    %618 = vector.load %arg5[%c0_620, %c7_621, %c0_622, %c0_623] : memref<1x8x16x16xf32, #tpu.memory_space<vmem>>, vector<1x1x16x16xf32>
    %619 = vector.shape_cast %618 : vector<1x1x16x16xf32> to vector<16x16xf32>
    %620 = vector.broadcast %617 : f32 to vector<16x16xf32>
    %621 = arith.mulf %620, %619 : vector<16x16xf32>
    %622 = arith.addf %616, %621 : vector<16x16xf32>
    %c7_624 = arith.constant 7 : index
    %c0_625 = arith.constant 0 : index
    %623 = memref.load %arg3[%c7_624, %c0_625] : memref<8x4xf32, #tpu.memory_space<smem>>
    %c0_626 = arith.constant 0 : index
    %c0_627 = arith.constant 0 : index
    %c0_628 = arith.constant 0 : index
    %c0_629 = arith.constant 0 : index
    %624 = vector.load %arg6[%c0_626, %c0_627, %c0_628, %c0_629] : memref<1x4x16x16xf32, #tpu.memory_space<vmem>>, vector<1x1x16x16xf32>
    %625 = vector.shape_cast %624 : vector<1x1x16x16xf32> to vector<16x16xf32>
    %626 = vector.broadcast %623 : f32 to vector<16x16xf32>
    %627 = arith.mulf %626, %625 : vector<16x16xf32>
    %628 = arith.addf %622, %627 : vector<16x16xf32>
    %c7_630 = arith.constant 7 : index
    %c1_631 = arith.constant 1 : index
    %629 = memref.load %arg3[%c7_630, %c1_631] : memref<8x4xf32, #tpu.memory_space<smem>>
    %c0_632 = arith.constant 0 : index
    %c1_633 = arith.constant 1 : index
    %c0_634 = arith.constant 0 : index
    %c0_635 = arith.constant 0 : index
    %630 = vector.load %arg6[%c0_632, %c1_633, %c0_634, %c0_635] : memref<1x4x16x16xf32, #tpu.memory_space<vmem>>, vector<1x1x16x16xf32>
    %631 = vector.shape_cast %630 : vector<1x1x16x16xf32> to vector<16x16xf32>
    %632 = vector.broadcast %629 : f32 to vector<16x16xf32>
    %633 = arith.mulf %632, %631 : vector<16x16xf32>
    %634 = arith.addf %628, %633 : vector<16x16xf32>
    %c7_636 = arith.constant 7 : index
    %c2_637 = arith.constant 2 : index
    %635 = memref.load %arg3[%c7_636, %c2_637] : memref<8x4xf32, #tpu.memory_space<smem>>
    %c0_638 = arith.constant 0 : index
    %c2_639 = arith.constant 2 : index
    %c0_640 = arith.constant 0 : index
    %c0_641 = arith.constant 0 : index
    %636 = vector.load %arg6[%c0_638, %c2_639, %c0_640, %c0_641] : memref<1x4x16x16xf32, #tpu.memory_space<vmem>>, vector<1x1x16x16xf32>
    %637 = vector.shape_cast %636 : vector<1x1x16x16xf32> to vector<16x16xf32>
    %638 = vector.broadcast %635 : f32 to vector<16x16xf32>
    %639 = arith.mulf %638, %637 : vector<16x16xf32>
    %640 = arith.addf %634, %639 : vector<16x16xf32>
    %c7_642 = arith.constant 7 : index
    %c3_643 = arith.constant 3 : index
    %641 = memref.load %arg3[%c7_642, %c3_643] : memref<8x4xf32, #tpu.memory_space<smem>>
    %c0_644 = arith.constant 0 : index
    %c3_645 = arith.constant 3 : index
    %c0_646 = arith.constant 0 : index
    %c0_647 = arith.constant 0 : index
    %642 = vector.load %arg6[%c0_644, %c3_645, %c0_646, %c0_647] : memref<1x4x16x16xf32, #tpu.memory_space<vmem>>, vector<1x1x16x16xf32>
    %643 = vector.shape_cast %642 : vector<1x1x16x16xf32> to vector<16x16xf32>
    %644 = vector.broadcast %641 : f32 to vector<16x16xf32>
    %645 = arith.mulf %644, %643 : vector<16x16xf32>
    %646 = arith.addf %640, %645 : vector<16x16xf32>
    %c7_648 = arith.constant 7 : index
    %647 = memref.load %arg4[%c7_648] : memref<8xf32, #tpu.memory_space<smem>>
    %648 = vector.broadcast %647 : f32 to vector<16x16xf32>
    %649 = arith.addf %646, %648 : vector<16x16xf32>
    %c0_649 = arith.constant 0 : index
    %c7_650 = arith.constant 7 : index
    %c0_651 = arith.constant 0 : index
    %c0_652 = arith.constant 0 : index
    %650 = vector.load %arg9[%c0_649, %c7_650, %c0_651, %c0_652] : memref<1x8x16x16xf32, #tpu.memory_space<vmem>>, vector<1x1x16x16xf32>
    %651 = vector.shape_cast %650 : vector<1x1x16x16xf32> to vector<16x16xf32>
    %652 = vector.shape_cast %649 : vector<16x16xf32> to vector<1x1x16x16xf32>
    tpu.vector_store %arg9[%c0_649, %c7_650, %c0_651, %c0_652], %652 {strides = array<i32>} : memref<1x8x16x16xf32, #tpu.memory_space<vmem>>, vector<1x1x16x16xf32>,
    %cst_653 = arith.constant dense<0.000000e+00> : vector<4x16xf32>
    %653 = tpu.matmul %0, %649, %cst_653 {dimension_numbers = #tpu.dot_dimension_numbers<[1], [0], [0], [1], [0, 0, 1, 1], [], []>} : vector<4x16xf32>, vector<16x16xf32>, vector<4x16xf32> -> vector<4x16xf32>
    %cst_654 = arith.constant dense<0.000000e+00> : vector<4x4xf32>
    %654 = tpu.matmul %653, %1, %cst_654 {dimension_numbers = #tpu.dot_dimension_numbers<[1], [0], [0], [1], [0, 0, 1, 1], [], []>} : vector<4x16xf32>, vector<16x4xf32>, vector<4x4xf32> -> vector<4x4xf32>
    %c0_655 = arith.constant 0 : index
    %c7_656 = arith.constant 7 : index
    %c0_657 = arith.constant 0 : index
    %c0_658 = arith.constant 0 : index
    %655 = vector.load %arg10[%c0_655, %c7_656, %c0_657, %c0_658] : memref<1x8x4x4xf32, #tpu.memory_space<vmem>>, vector<1x1x4x4xf32>
    %656 = vector.shape_cast %655 : vector<1x1x4x4xf32> to vector<4x4xf32>
    %657 = vector.shape_cast %654 : vector<4x4xf32> to vector<1x1x4x4xf32>
    tpu.vector_store %arg10[%c0_655, %c7_656, %c0_657, %c0_658], %657 {strides = array<i32>} : memref<1x8x4x4xf32, #tpu.memory_space<vmem>>, vector<1x1x4x4xf32>,
    return
  }
  func.func @transform_0(%arg0: i32, %arg1: i32) -> (i32, i32) {
    %c0_i32 = arith.constant 0 : i32
    %c0_i32_0 = arith.constant 0 : i32
    %c0_i32_1 = arith.constant 0 : i32
    return %c0_i32, %c0_i32_0 : i32, i32
  }
  func.func @transform_1(%arg0: i32, %arg1: i32) -> (i32, i32) {
    %c0_i32 = arith.constant 0 : i32
    %c0_i32_0 = arith.constant 0 : i32
    %c0_i32_1 = arith.constant 0 : i32
    return %c0_i32, %c0_i32_0 : i32, i32
  }
  func.func @transform_2(%arg0: i32, %arg1: i32) -> i32 {
    %c0_i32 = arith.constant 0 : i32
    %c0_i32_0 = arith.constant 0 : i32
    return %c0_i32 : i32
  }
  func.func @transform_3(%arg0: i32, %arg1: i32) -> (i32, i32, i32, i32) {
    %c0_i32 = arith.constant 0 : i32
    %c0_i32_0 = arith.constant 0 : i32
    %c0_i32_1 = arith.constant 0 : i32
    return %arg0, %c0_i32, %arg1, %c0_i32_0 : i32, i32, i32, i32
  }
  func.func @transform_4(%arg0: i32, %arg1: i32) -> (i32, i32, i32, i32) {
    %c0_i32 = arith.constant 0 : i32
    %c0_i32_0 = arith.constant 0 : i32
    %c0_i32_1 = arith.constant 0 : i32
    return %arg0, %c0_i32, %arg1, %c0_i32_0 : i32, i32, i32, i32
  }
  func.func @transform_5(%arg0: i32, %arg1: i32) -> (i32, i32) {
    %c0_i32 = arith.constant 0 : i32
    %c0_i32_0 = arith.constant 0 : i32
    %c0_i32_1 = arith.constant 0 : i32
    return %c0_i32, %c0_i32_0 : i32, i32
  }
  func.func @transform_6(%arg0: i32, %arg1: i32) -> (i32, i32) {
    %c0_i32 = arith.constant 0 : i32
    %c0_i32_0 = arith.constant 0 : i32
    %c0_i32_1 = arith.constant 0 : i32
    return %c0_i32, %c0_i32_0 : i32, i32
  }
  func.func @transform_7(%arg0: i32, %arg1: i32) -> (i32, i32, i32, i32) {
    %c0_i32 = arith.constant 0 : i32
    %c0_i32_0 = arith.constant 0 : i32
    %c0_i32_1 = arith.constant 0 : i32
    return %arg0, %c0_i32, %arg1, %c0_i32_0 : i32, i32, i32, i32
  }
  func.func @transform_8(%arg0: i32, %arg1: i32) -> (i32, i32, i32, i32) {
    %c0_i32 = arith.constant 0 : i32
    %c0_i32_0 = arith.constant 0 : i32
    %c0_i32_1 = arith.constant 0 : i32
    return %arg0, %c0_i32, %arg1, %c0_i32_0 : i32, i32, i32, i32
  }
}

</mosaic_0001>

<llo_original>
// kernel: tpu_custom_call.1
$region0: #{tpu_custom_call.1}
  #allocation0 [shape = 'u32[]', space=smem, size = 0x4, offset = 0x4, fixed_abs, tag = 'smem constant byte address 0x4 - core index']
  #allocation1 [shape = 'u32[144,128]{1,0:T(1,128)}', space=vmem, size = 0x12000, scoped, tag = 'internal scratch']
  %s0 = inlined_call_operand.vmem [shape: f32[8,8], index: 0, kind: input, shape index: {}]
  %s1 = inlined_call_operand.vmem [shape: f32[8,4], index: 1, kind: input, shape index: {}]
  %s2 = inlined_call_operand.vmem [shape: f32[8], index: 2, kind: input, shape index: {}]
  %s3 = inlined_call_operand.hbm [shape: f32[2,8,16,16], index: 3, kind: input, shape index: {}]
  %s4 = inlined_call_operand.hbm [shape: f32[2,4,16,16], index: 4, kind: input, shape index: {}]
  %s5 = inlined_call_operand.vmem [shape: f32[4,16], index: 5, kind: input, shape index: {}]
  %s6 = inlined_call_operand.vmem [shape: f32[16,4], index: 6, kind: input, shape index: {}]
  %s7 = inlined_call_operand.hbm [shape: f32[2,8,16,16], index: 7, kind: output, shape index: {0}]
  %s8 = inlined_call_operand.vmem [shape: f32[2,8,4,4], index: 8, kind: output, shape index: {1}]
  %9 = xla_tuple %s7, %s8
  %s10 = sld [smem:[#allocation0]]
  $region89: #{tpu_custom_call.1} parent=0
    _
  %s12 = ssub.s32 1, %s10
  %s13 = scalar_select 0, %s12, %s10
  $region1: #{tpu_custom_call.1} parent=0
    #allocation2 [shape = 'u8[4096]{0}', space=smem, size = 0x1000, scoped, tag = 'input window, operand 0, single buffered']
    #allocation3 [shape = 's32[2]{0}', space=sflag, size = 0x8, scoped, tag = 'scoped memory for tpu_custom_call.1']
    #allocation4 [shape = 's32[2]{0}', space=sflag, size = 0x8, scoped, tag = 'scoped memory for tpu_custom_call.1']
    #allocation5 [shape = 's32[2]{0}', space=sflag, size = 0x8, scoped, tag = 'scoped memory for tpu_custom_call.1']
    #allocation6 [shape = 'u8[4096]{0}', space=smem, size = 0x1000, scoped, tag = 'input window, operand 1, single buffered']
    #allocation7 [shape = 's32[1]{0}', space=sflag, size = 0x4, scoped, tag = 'scoped memory for tpu_custom_call.1']
    #allocation8 [shape = 'u8[512]{0}', space=smem, size = 0x200, scoped, tag = 'input window, operand 2, single buffered']
    #allocation9 [shape = 'u8[131072]{0}', space=vmem, size = 0x20000, scoped, tag = 'input window, operand 3']
    #allocation10 [shape = 'u8[65536]{0}', space=vmem, size = 0x10000, scoped, tag = 'input window, operand 4']
    #allocation11 [shape = 's32[2]{0}', space=sflag, size = 0x8, scoped, tag = 'scoped memory for tpu_custom_call.1']
    #allocation12 [shape = 'u8[131072]{0}', space=vmem, size = 0x20000, scoped, tag = 'output window, operand 0']
    %14 = vsyncpa [#allocation5], 0
    %15 = vsyncpa [#allocation7], 0
    %16 = vsyncpa [#allocation3], 0
    %s17 = scalar_lea.sflag [#allocation3], 1
    %18 = vsyncpa %s17, 0
    %19 = vsyncpa [#allocation11], 0
    %s20 = scalar_lea.sflag [#allocation11], 1
    %21 = vsyncpa %s20, 0
    %22 = vsyncpa [#allocation4], 0
    %s23 = scalar_lea.sflag [#allocation4], 1
    %24 = vsyncpa %s23, 0
    loop: start=0, step=1, limit=4
    $region2: #{tpu_custom_call.1} parent=1 // loop_pre_header
      _
    $region3: #{tpu_custom_call.1} parent=1 // loop_header
      %s26 = sphi 0, %s30
      %p27 = scmp.ge.s32.totalorder %s26, 4
      %s33 = sphi 0, %s45
      %s34 = sphi 0, %s41
      %s35 = sphi 0, %s33
      %s36 = sphi 0, %s34
      %s37 = sphi 0, %s35
      %s38 = sphi 0, %s36
      %s46 = sphi 0, %s46
      %s48 = sphi 0, %s46
      %s49 = sphi 0, %s48
      %s63 = sphi 0, %s49
      %s67 = sphi 0, %s67
      %s69 = sphi 0, %s67
      %s70 = sphi 0, %s69
      %s84 = sphi 0, %s70
      %s88 = sphi 0, %s88
      %s90 = sphi 0, %s88
      %s91 = sphi 0, %s90
      %s105 = sphi 0, %s91
      %s113 = sphi 0, %s115
      %s116 = sphi 0, %s113
      %s117 = sphi 0, %s116
      %s133 = sphi 0, %s117
      %s141 = sphi 0, %s143
      %s144 = sphi 0, %s141
      %s145 = sphi 0, %s144
      %s161 = sphi 0, %s145
      %s165 = sphi 0, %s165
      %s167 = sphi 0, %s165
      %s168 = sphi 0, %s167
      %s182 = sphi 0, %s168
      %s186 = sphi 0, %s186
      %s188 = sphi 0, %s186
      %s189 = sphi 0, %s188
      %s203 = sphi 0, %s189
      %s211 = sphi 0, %s213
      %s214 = sphi 0, %s211
      %s215 = sphi 0, %s214
      %s231 = sphi 0, %s215
      %s239 = sphi 0, %s241
      %s242 = sphi 0, %s239
      %s243 = sphi 0, %s242
      %s259 = sphi 0, %s243
    $region4: #{tpu_custom_call.1} parent=1 // loop_header_branch
      %29 = sbr.rel (%p27) target = $region8
    $region5: #{tpu_custom_call.1} parent=1 // loop_body
      %s31 = ssub.s32 %s26, 1
      %s32 = ssub.s32 %s26, 2
      %s39 = sadd.s32 1, %s34
      %p40 = scmp.ge.s32.totalorder %s39, 1
      %s41 = scalar_select %p40, 0, %s39
      %s42 = sadd.s32 1, %s33
      %s43 = scalar_select %p40, %s42, %s33
      %p44 = scmp.ge.s32.totalorder %s43, 2
      %s45 = scalar_select %p44, 0, %s43
      %s47 = sadd.s32 %s46, 1
      %p50 = scmp.eq.s32.totalorder %s26, 1
      %p51 = scmp.ne.s32.totalorder %s46, %s48
      %p52 = scmp.eq.s32.totalorder %s26, 0
      %p53 = por %p51, %p52
      %p54 = scmp.ne.s32.totalorder %s46, %s48
      %p55 = scmp.eq.s32.totalorder %s31, 1
      %p56 = por %p54, %p55
      %p57 = scmp.ne.s32.totalorder %s48, %s49
      %p58 = scmp.eq.s32.totalorder %s31, 0
      %p59 = por %p57, %p58
      %p60 = scmp.ne.s32.totalorder %s48, %s49
      %p61 = scmp.eq.s32.totalorder %s32, 1
      %p62 = por %p60, %p61
      %p64 = scmp.ne.s32.totalorder %s49, %s63
      %p65 = scmp.eq.s32.totalorder %s32, 0
      %p66 = por %p64, %p65
      %s68 = sadd.s32 %s67, 1
      %p71 = scmp.eq.s32.totalorder %s26, 1
      %p72 = scmp.ne.s32.totalorder %s67, %s69
      %p73 = scmp.eq.s32.totalorder %s26, 0
      %p74 = por %p72, %p73
      %p75 = scmp.ne.s32.totalorder %s67, %s69
      %p76 = scmp.eq.s32.totalorder %s31, 1
      %p77 = por %p75, %p76
      %p78 = scmp.ne.s32.totalorder %s69, %s70
      %p79 = scmp.eq.s32.totalorder %s31, 0
      %p80 = por %p78, %p79
      %p81 = scmp.ne.s32.totalorder %s69, %s70
      %p82 = scmp.eq.s32.totalorder %s32, 1
      %p83 = por %p81, %p82
      %p85 = scmp.ne.s32.totalorder %s70, %s84
      %p86 = scmp.eq.s32.totalorder %s32, 0
      %p87 = por %p85, %p86
      %s89 = sadd.s32 %s88, 1
      %p92 = scmp.eq.s32.totalorder %s26, 1
      %p93 = scmp.ne.s32.totalorder %s88, %s90
      %p94 = scmp.eq.s32.totalorder %s26, 0
      %p95 = por %p93, %p94
      %p96 = scmp.ne.s32.totalorder %s88, %s90
      %p97 = scmp.eq.s32.totalorder %s31, 1
      %p98 = por %p96, %p97
      %p99 = scmp.ne.s32.totalorder %s90, %s91
      %p100 = scmp.eq.s32.totalorder %s31, 0
      %p101 = por %p99, %p100
      %p102 = scmp.ne.s32.totalorder %s90, %s91
      %p103 = scmp.eq.s32.totalorder %s32, 1
      %p104 = por %p102, %p103
      %p106 = scmp.ne.s32.totalorder %s91, %s105
      %p107 = scmp.eq.s32.totalorder %s32, 0
      %p108 = por %p106, %p107
      %s109 = ssub.s32 %s33, %s45
      %s110 = ssub.s32 %s34, %s41
      %s111 = sor.u32 %s109, %s110
      %p112 = scmp.eq.s32.totalorder %s111, 0
      %s114 = sadd.s32 %s113, 1
      %s115 = scalar_select %p112, %s113, %s114
      %p118 = pneg %p112
      %p119 = scmp.eq.s32.totalorder %s26, 1
      %p120 = por %p118, %p119
      %p121 = scmp.ne.s32.totalorder %s113, %s116
      %p122 = scmp.eq.s32.totalorder %s26, 0
      %p123 = por %p121, %p122
      %p124 = scmp.ne.s32.totalorder %s113, %s116
      %p125 = scmp.eq.s32.totalorder %s31, 1
      %p126 = por %p124, %p125
      %p127 = scmp.ne.s32.totalorder %s116, %s117
      %p128 = scmp.eq.s32.totalorder %s31, 0
      %p129 = por %p127, %p128
      %p130 = scmp.ne.s32.totalorder %s116, %s117
      %p131 = scmp.eq.s32.totalorder %s32, 1
      %p132 = por %p130, %p131
      %p134 = scmp.ne.s32.totalorder %s117, %s133
      %p135 = scmp.eq.s32.totalorder %s32, 0
      %p136 = por %p134, %p135
      %s137 = ssub.s32 %s33, %s45
      %s138 = ssub.s32 %s34, %s41
      %s139 = sor.u32 %s137, %s138
      %p140 = scmp.eq.s32.totalorder %s139, 0
      %s142 = sadd.s32 %s141, 1
      %s143 = scalar_select %p140, %s141, %s142
      %p146 = pneg %p140
      %p147 = scmp.eq.s32.totalorder %s26, 1
      %p148 = por %p146, %p147
      %p149 = scmp.ne.s32.totalorder %s141, %s144
      %p150 = scmp.eq.s32.totalorder %s26, 0
      %p151 = por %p149, %p150
      %p152 = scmp.ne.s32.totalorder %s141, %s144
      %p153 = scmp.eq.s32.totalorder %s31, 1
      %p154 = por %p152, %p153
      %p155 = scmp.ne.s32.totalorder %s144, %s145
      %p156 = scmp.eq.s32.totalorder %s31, 0
      %p157 = por %p155, %p156
      %p158 = scmp.ne.s32.totalorder %s144, %s145
      %p159 = scmp.eq.s32.totalorder %s32, 1
      %p160 = por %p158, %p159
      %p162 = scmp.ne.s32.totalorder %s145, %s161
      %p163 = scmp.eq.s32.totalorder %s32, 0
      %p164 = por %p162, %p163
      %s166 = sadd.s32 %s165, 1
      %p169 = scmp.eq.s32.totalorder %s26, 1
      %p170 = scmp.ne.s32.totalorder %s165, %s167
      %p171 = scmp.eq.s32.totalorder %s26, 0
      %p172 = por %p170, %p171
      %p173 = scmp.ne.s32.totalorder %s165, %s167
      %p174 = scmp.eq.s32.totalorder %s31, 1
      %p175 = por %p173, %p174
      %p176 = scmp.ne.s32.totalorder %s167, %s168
      %p177 = scmp.eq.s32.totalorder %s31, 0
      %p178 = por %p176, %p177
      %p179 = scmp.ne.s32.totalorder %s167, %s168
      %p180 = scmp.eq.s32.totalorder %s32, 1
      %p181 = por %p179, %p180
      %p183 = scmp.ne.s32.totalorder %s168, %s182
      %p184 = scmp.eq.s32.totalorder %s32, 0
      %p185 = por %p183, %p184
      %s187 = sadd.s32 %s186, 1
      %p190 = scmp.eq.s32.totalorder %s26, 1
      %p191 = scmp.ne.s32.totalorder %s186, %s188
      %p192 = scmp.eq.s32.totalorder %s26, 0
      %p193 = por %p191, %p192
      %p194 = scmp.ne.s32.totalorder %s186, %s188
      %p195 = scmp.eq.s32.totalorder %s31, 1
      %p196 = por %p194, %p195
      %p197 = scmp.ne.s32.totalorder %s188, %s189
      %p198 = scmp.eq.s32.totalorder %s31, 0
      %p199 = por %p197, %p198
      %p200 = scmp.ne.s32.totalorder %s188, %s189
      %p201 = scmp.eq.s32.totalorder %s32, 1
      %p202 = por %p200, %p201
      %p204 = scmp.ne.s32.totalorder %s189, %s203
      %p205 = scmp.eq.s32.totalorder %s32, 0
      %p206 = por %p204, %p205
      %s207 = ssub.s32 %s33, %s45
      %s208 = ssub.s32 %s34, %s41
      %s209 = sor.u32 %s207, %s208
      %p210 = scmp.eq.s32.totalorder %s209, 0
      %s212 = sadd.s32 %s211, 1
      %s213 = scalar_select %p210, %s211, %s212
      %p216 = pneg %p210
      %p217 = scmp.eq.s32.totalorder %s26, 1
      %p218 = por %p216, %p217
      %p219 = scmp.ne.s32.totalorder %s211, %s214
      %p220 = scmp.eq.s32.totalorder %s26, 0
      %p221 = por %p219, %p220
      %p222 = scmp.ne.s32.totalorder %s211, %s214
      %p223 = scmp.eq.s32.totalorder %s31, 1
      %p224 = por %p222, %p223
      %p225 = scmp.ne.s32.totalorder %s214, %s215
      %p226 = scmp.eq.s32.totalorder %s31, 0
      %p227 = por %p225, %p226
      %p228 = scmp.ne.s32.totalorder %s214, %s215
      %p229 = scmp.eq.s32.totalorder %s32, 1
      %p230 = por %p228, %p229
      %p232 = scmp.ne.s32.totalorder %s215, %s231
      %p233 = scmp.eq.s32.totalorder %s32, 0
      %p234 = por %p232, %p233
      %s235 = ssub.s32 %s33, %s45
      %s236 = ssub.s32 %s34, %s41
      %s237 = sor.u32 %s235, %s236
      %p238 = scmp.eq.s32.totalorder %s237, 0
      %s240 = sadd.s32 %s239, 1
      %s241 = scalar_select %p238, %s239, %s240
      %p244 = pneg %p238
      %p245 = scmp.eq.s32.totalorder %s26, 1
      %p246 = por %p244, %p245
      %p247 = scmp.ne.s32.totalorder %s239, %s242
      %p248 = scmp.eq.s32.totalorder %s26, 0
      %p249 = por %p247, %p248
      %p250 = scmp.ne.s32.totalorder %s239, %s242
      %p251 = scmp.eq.s32.totalorder %s31, 1
      %p252 = por %p250, %p251
      %p253 = scmp.ne.s32.totalorder %s242, %s243
      %p254 = scmp.eq.s32.totalorder %s31, 0
      %p255 = por %p253, %p254
      %p256 = scmp.ne.s32.totalorder %s242, %s243
      %p257 = scmp.eq.s32.totalorder %s32, 1
      %p258 = por %p256, %p257
      %p260 = scmp.ne.s32.totalorder %s243, %s259
      %p261 = scmp.eq.s32.totalorder %s32, 0
      %p262 = por %p260, %p261
      %p263 = scmp.le.s32.totalorder 1, %s26
      %p264 = scmp.lt.s32.totalorder %s26, 3
      %p265 = pnand %p263, %p264
      %p266 = pneg %p265
      // Predicated region
      $region9: #{tpu_custom_call.1} parent=5 // pred_check
        _
      $region10: #{tpu_custom_call.1} parent=5 // pred_check_branch
        %268 = sbr.rel (%p265) target = $region12
      $region11: #{tpu_custom_call.1} parent=5 // pred_region
        %s269 = ssub.s32 %s26, 1
        // Predicated region
        $region13: #{tpu_custom_call.1} parent=11 // pred_check
          %p270 = pneg %p59
        $region14: #{tpu_custom_call.1} parent=11 // pred_check_branch
          %272 = sbr.rel (%p270) target = $region16
        $region15: #{tpu_custom_call.1} parent=11 // pred_region
          %s274 = ssub.s32 128, 128
          %275 = vsyncadd [#allocation5], %s274
          %s277 = sshll.u32 %s0, 4
          %s278 = int_to_ptr.vmem [resolvable:$true] %s277
          %280 = dma.vmem_to_smem %s278, 128, [#allocation2], [#allocation5]
        $region16: #{tpu_custom_call.1} parent=11 // pred_fallthru
          _
        // Predicated region
        $region17: #{tpu_custom_call.1} parent=11 // pred_check
          %p281 = pneg %p80
        $region18: #{tpu_custom_call.1} parent=11 // pred_check_branch
          %283 = sbr.rel (%p281) target = $region20
        $region19: #{tpu_custom_call.1} parent=11 // pred_region
          %s285 = ssub.s32 128, 128
          %286 = vsyncadd [#allocation7], %s285
          %s288 = sshll.u32 %s1, 4
          %s289 = int_to_ptr.vmem [resolvable:$true] %s288
          %291 = dma.vmem_to_smem %s289, 128, [#allocation6], [#allocation7]
        $region20: #{tpu_custom_call.1} parent=11 // pred_fallthru
          _
        // Predicated region
        $region21: #{tpu_custom_call.1} parent=11 // pred_check
          %p292 = pneg %p101
        $region22: #{tpu_custom_call.1} parent=11 // pred_check_branch
          %294 = sbr.rel (%p292) target = $region24
        $region23: #{tpu_custom_call.1} parent=11 // pred_region
          %s296 = ssub.s32 16, 16
          %297 = vsyncadd [#allocation7], %s296
          %s299 = sshll.u32 %s2, 4
          %s300 = int_to_ptr.vmem [resolvable:$true] %s299
          %302 = dma.vmem_to_smem %s300, 16, [#allocation8], [#allocation7]
        $region24: #{tpu_custom_call.1} parent=11 // pred_fallthru
          _
        // Predicated region
        $region25: #{tpu_custom_call.1} parent=11 // pred_check
          %p303 = pneg %p178
        $region26: #{tpu_custom_call.1} parent=11 // pred_check_branch
          %305 = sbr.rel (%p303) target = $region28
        $region27: #{tpu_custom_call.1} parent=11 // pred_region
          _
        $region28: #{tpu_custom_call.1} parent=11 // pred_fallthru
          _
        // Predicated region
        $region29: #{tpu_custom_call.1} parent=11 // pred_check
          %p306 = pneg %p199
        $region30: #{tpu_custom_call.1} parent=11 // pred_check_branch
          %308 = sbr.rel (%p306) target = $region32
        $region31: #{tpu_custom_call.1} parent=11 // pred_region
          _
        $region32: #{tpu_custom_call.1} parent=11 // pred_fallthru
          _
      $region12: #{tpu_custom_call.1} parent=5 // pred_fallthru
        _
      %p309 = scmp.lt.s32.totalorder %s26, 2
      // Predicated region
      $region33: #{tpu_custom_call.1} parent=5 // pred_check
        %p310 = pneg %p309
      $region34: #{tpu_custom_call.1} parent=5 // pred_check_branch
        %312 = sbr.rel (%p310) target = $region36
      $region35: #{tpu_custom_call.1} parent=5 // pred_region
        // Predicated region
        $region37: #{tpu_custom_call.1} parent=35 // pred_check
          %p313 = pneg %p123
        $region38: #{tpu_custom_call.1} parent=35 // pred_check_branch
          %315 = sbr.rel (%p313) target = $region40
        $region39: #{tpu_custom_call.1} parent=35 // pred_region
          %s316 = sand.u32 %s113, 1
          %s317 = scalar_lea.sflag [#allocation3], %s316
          %s318 = sand.u32 %s113, 1
          %s319 = smul.addr %s318, 128
          %s320 = scalar_lea.vmem [#allocation9], %s319
          %s321 = smul.u32 2, %s34
          %s323 = ssub.s32 2048, 2048
          %324 = vsyncadd %s317, %s323
          %s325 = smul.addr %s33, 16
          %s326 = sadd.s32 %s321, %s325
          %s327 = smul.addr %s326, 128
          %s328 = scalar_lea.hbm %s3, %s327
          %s329 = sshll.u32 %s320, 4
          %s330 = int_to_ptr.vmem [resolvable:$true] %s329
          %335 = dma.hbm_to_vmem [thread:$0]  %s328, 2048, %s330, %s317, 128, 128, 8
        $region40: #{tpu_custom_call.1} parent=35 // pred_fallthru
          _
        // Predicated region
        $region41: #{tpu_custom_call.1} parent=35 // pred_check
          %p336 = pneg %p151
        $region42: #{tpu_custom_call.1} parent=35 // pred_check_branch
          %338 = sbr.rel (%p336) target = $region44
        $region43: #{tpu_custom_call.1} parent=35 // pred_region
          %s339 = sand.u32 %s141, 1
          %s340 = scalar_lea.sflag [#allocation11], %s339
          %s341 = sand.u32 %s141, 1
          %s342 = smul.addr %s341, 64
          %s343 = scalar_lea.vmem [#allocation10], %s342
          %s344 = smul.u32 2, %s34
          %s346 = ssub.s32 1024, 1024
          %347 = vsyncadd %s340, %s346
          %s348 = smul.addr %s33, 8
          %s349 = sadd.s32 %s344, %s348
          %s350 = smul.addr %s349, 128
          %s351 = scalar_lea.hbm %s4, %s350
          %s352 = sshll.u32 %s343, 4
          %s353 = int_to_ptr.vmem [resolvable:$true] %s352
          %358 = dma.hbm_to_vmem [thread:$0]  %s351, 1024, %s353, %s340, 128, 128, 8
        $region44: #{tpu_custom_call.1} parent=35 // pred_fallthru
          _
      $region36: #{tpu_custom_call.1} parent=5 // pred_fallthru
        _
      %p359 = scmp.le.s32.totalorder 1, %s26
      %p360 = scmp.lt.s32.totalorder %s26, 3
      %p361 = pnand %p359, %p360
      %p362 = pneg %p361
      // Predicated region
      $region45: #{tpu_custom_call.1} parent=5 // pred_check
        _
      $region46: #{tpu_custom_call.1} parent=5 // pred_check_branch
        %364 = sbr.rel (%p361) target = $region48
      $region47: #{tpu_custom_call.1} parent=5 // pred_region
        %s365 = ssub.s32 %s26, 1
        // Predicated region
        $region49: #{tpu_custom_call.1} parent=47 // pred_check
          %p366 = pneg %p59
        $region50: #{tpu_custom_call.1} parent=47 // pred_check_branch
          %368 = sbr.rel (%p366) target = $region52
        $region51: #{tpu_custom_call.1} parent=47 // pred_region
          %369 = dma.done [#allocation5], 128
        $region52: #{tpu_custom_call.1} parent=47 // pred_fallthru
          _
        // Predicated region
        $region53: #{tpu_custom_call.1} parent=47 // pred_check
          %p370 = pneg %p80
        $region54: #{tpu_custom_call.1} parent=47 // pred_check_branch
          %372 = sbr.rel (%p370) target = $region56
        $region55: #{tpu_custom_call.1} parent=47 // pred_region
          %373 = dma.done [#allocation7], 128
        $region56: #{tpu_custom_call.1} parent=47 // pred_fallthru
          _
        // Predicated region
        $region57: #{tpu_custom_call.1} parent=47 // pred_check
          %p374 = pneg %p101
        $region58: #{tpu_custom_call.1} parent=47 // pred_check_branch
          %376 = sbr.rel (%p374) target = $region60
        $region59: #{tpu_custom_call.1} parent=47 // pred_region
          %377 = dma.done [#allocation7], 16
        $region60: #{tpu_custom_call.1} parent=47 // pred_fallthru
          _
        %s378 = sand.u32 %s116, 1
        %s379 = scalar_lea.sflag [#allocation3], %s378
        %s380 = sand.u32 %s116, 1
        %s381 = smul.addr %s380, 128
        %s382 = scalar_lea.vmem [#allocation9], %s381
        // Predicated region
        $region61: #{tpu_custom_call.1} parent=47 // pred_check
          %p383 = pneg %p129
        $region62: #{tpu_custom_call.1} parent=47 // pred_check_branch
          %385 = sbr.rel (%p383) target = $region64
        $region63: #{tpu_custom_call.1} parent=47 // pred_region
          %386 = dma.done %s379, 2048
        $region64: #{tpu_custom_call.1} parent=47 // pred_fallthru
          _
        %s387 = sand.u32 %s144, 1
        %s388 = scalar_lea.sflag [#allocation11], %s387
        %s389 = sand.u32 %s144, 1
        %s390 = smul.addr %s389, 64
        %s391 = scalar_lea.vmem [#allocation10], %s390
        // Predicated region
        $region65: #{tpu_custom_call.1} parent=47 // pred_check
          %p392 = pneg %p157
        $region66: #{tpu_custom_call.1} parent=47 // pred_check_branch
          %394 = sbr.rel (%p392) target = $region68
        $region67: #{tpu_custom_call.1} parent=47 // pred_region
          %395 = dma.done %s388, 1024
        $region68: #{tpu_custom_call.1} parent=47 // pred_fallthru
          _
        %396 = sfence
        %p397 = pneg %p59
        %p398 = pneg %p56
        %p399 = pneg %p80
        %p400 = pneg %p77
        %p401 = pneg %p101
        %p402 = pneg %p98
        %s403 = sand.u32 %s116, 1
        %s404 = scalar_lea.sflag [#allocation3], %s403
        %s405 = sand.u32 %s116, 1
        %s406 = smul.addr %s405, 128
        %s407 = scalar_lea.vmem [#allocation9], %s406
        %p408 = pneg %p129
        %p409 = pneg %p126
        %s410 = sand.u32 %s144, 1
        %s411 = scalar_lea.sflag [#allocation11], %s410
        %s412 = sand.u32 %s144, 1
        %s413 = smul.addr %s412, 64
        %s414 = scalar_lea.vmem [#allocation10], %s413
        %p415 = pneg %p157
        %p416 = pneg %p154
        %p417 = pneg %p178
        %p418 = pneg %p175
        %p419 = pneg %p199
        %p420 = pneg %p196
        %p421 = pneg %p227
        %p422 = pneg %p224
        %s423 = sand.u32 %s214, 1
        %s424 = scalar_lea.sflag [#allocation4], %s423
        %s425 = sand.u32 %s214, 1
        %s426 = smul.addr %s425, 128
        %s427 = scalar_lea.vmem [#allocation12], %s426
        %p428 = pneg %p255
        %p429 = pneg %p252
        %p430 = scmp.lt.s32.totalorder %s35, 1
        %s431 = scalar_select %p430, %s35, 1
        %p432 = scmp.lt.s32.totalorder %s36, 0
        %s433 = scalar_select %p432, %s36, 0
        %s434 = smul.addr %s431, 8
        %s435 = sadd.s32 %s433, %s434
        %s436 = smul.addr %s435, 4
        %s437 = scalar_lea.vmem %s8, %s436
        %s438 = smul.u32 2, %s36
        %s439 = smul.u32 2, %s36
        %s440 = smul.u32 2, %s36
        %p441 = scmp.lt.s32.totalorder %s35, 1
        %s442 = scalar_select %p441, %s35, 1
        %p443 = scmp.lt.s32.totalorder %s36, 0
        %s444 = scalar_select %p443, %s36, 0
        %s445 = smul.addr %s442, 8
        %s446 = sadd.s32 %s444, %s445
        %s447 = smul.addr %s446, 4
        %s448 = scalar_lea.vmem %s8, %s447
        %v449 = vld [vmem:[%s5] sm:$0xf]
        %v450 = vld [vmem:[%s6] sm:$0xff]
        %v451 = vld [vmem:[%s6 + $0x8] sm:$0xff]
        %s452 = sld [smem:[#allocation2]]
        %v453 = vld [vmem:[%s382] sm:$0xff]
        %v454 = vld [vmem:[%s382 + $0x8] sm:$0xff]
        %v455 = vstv %s452
        %v456 = vmul.f32 %v455, %v453
        %v457 = vmul.f32 %v455, %v454
        %s458 = sld [smem:[#allocation2 + $0x1]]
        %s459 = scalar_lea.vmem %s382, 16 [#allocation9]
        %v460 = vld [vmem:[%s459] sm:$0xff]
        %v461 = vld [vmem:[%s459 + $0x8] sm:$0xff]
        %v462 = vstv %s458
        %v463 = vmul.f32 %v462, %v460
        %v464 = vmul.f32 %v462, %v461
        %v465 = vadd.f32 %v456, %v463
        %v466 = vadd.f32 %v457, %v464
        %s467 = sld [smem:[#allocation2 + $0x2]]
        %s468 = scalar_lea.vmem %s382, 32 [#allocation9]
        %v469 = vld [vmem:[%s468] sm:$0xff]
        %v470 = vld [vmem:[%s468 + $0x8] sm:$0xff]
        %v471 = vstv %s467
        %v472 = vmul.f32 %v471, %v469
        %v473 = vmul.f32 %v471, %v470
        %v474 = vadd.f32 %v465, %v472
        %v475 = vadd.f32 %v466, %v473
        %s476 = sld [smem:[#allocation2 + $0x3]]
        %s477 = scalar_lea.vmem %s382, 48 [#allocation9]
        %v478 = vld [vmem:[%s477] sm:$0xff]
        %v479 = vld [vmem:[%s477 + $0x8] sm:$0xff]
        %v480 = vstv %s476
        %v481 = vmul.f32 %v480, %v478
        %v482 = vmul.f32 %v480, %v479
        %v483 = vadd.f32 %v474, %v481
        %v484 = vadd.f32 %v475, %v482
        %s485 = sld [smem:[#allocation2 + $0x4]]
        %s486 = scalar_lea.vmem %s382, 64 [#allocation9]
        %v487 = vld [vmem:[%s486] sm:$0xff]
        %v488 = vld [vmem:[%s486 + $0x8] sm:$0xff]
        %v489 = vstv %s485
        %v490 = vmul.f32 %v489, %v487
        %v491 = vmul.f32 %v489, %v488
        %v492 = vadd.f32 %v483, %v490
        %v493 = vadd.f32 %v484, %v491
        %s494 = sld [smem:[#allocation2 + $0x5]]
        %s495 = scalar_lea.vmem %s382, 80 [#allocation9]
        %v496 = vld [vmem:[%s495] sm:$0xff]
        %v497 = vld [vmem:[%s495 + $0x8] sm:$0xff]
        %v498 = vstv %s494
        %v499 = vmul.f32 %v498, %v496
        %v500 = vmul.f32 %v498, %v497
        %v501 = vadd.f32 %v492, %v499
        %v502 = vadd.f32 %v493, %v500
        %s503 = sld [smem:[#allocation2 + $0x6]]
        %s504 = scalar_lea.vmem %s382, 96 [#allocation9]
        %v505 = vld [vmem:[%s504] sm:$0xff]
        %v506 = vld [vmem:[%s504 + $0x8] sm:$0xff]
        %v507 = vstv %s503
        %v508 = vmul.f32 %v507, %v505
        %v509 = vmul.f32 %v507, %v506
        %v510 = vadd.f32 %v501, %v508
        %v511 = vadd.f32 %v502, %v509
        %s512 = sld [smem:[#allocation2 + $0x7]]
        %s513 = scalar_lea.vmem %s382, 112 [#allocation9]
        %v514 = vld [vmem:[%s513] sm:$0xff]
        %v515 = vld [vmem:[%s513 + $0x8] sm:$0xff]
        %v516 = vstv %s512
        %v517 = vmul.f32 %v516, %v514
        %v518 = vmul.f32 %v516, %v515
        %v519 = vadd.f32 %v510, %v517
        %v520 = vadd.f32 %v511, %v518
        %s521 = sld [smem:[#allocation6]]
        %v522 = vld [vmem:[%s391] sm:$0xff]
        %v523 = vld [vmem:[%s391 + $0x8] sm:$0xff]
        %v524 = vstv %s521
        %v525 = vmul.f32 %v524, %v522
        %v526 = vmul.f32 %v524, %v523
        %v527 = vadd.f32 %v519, %v525
        %v528 = vadd.f32 %v520, %v526
        %s529 = sld [smem:[#allocation6 + $0x1]]
        %s530 = scalar_lea.vmem %s391, 16 [#allocation10]
        %v531 = vld [vmem:[%s530] sm:$0xff]
        %v532 = vld [vmem:[%s530 + $0x8] sm:$0xff]
        %v533 = vstv %s529
        %v534 = vmul.f32 %v533, %v531
        %v535 = vmul.f32 %v533, %v532
        %v536 = vadd.f32 %v527, %v534
        %v537 = vadd.f32 %v528, %v535
        %s538 = sld [smem:[#allocation6 + $0x2]]
        %s539 = scalar_lea.vmem %s391, 32 [#allocation10]
        %v540 = vld [vmem:[%s539] sm:$0xff]
        %v541 = vld [vmem:[%s539 + $0x8] sm:$0xff]
        %v542 = vstv %s538
        %v543 = vmul.f32 %v542, %v540
        %v544 = vmul.f32 %v542, %v541
        %v545 = vadd.f32 %v536, %v543
        %v546 = vadd.f32 %v537, %v544
        %s547 = sld [smem:[#allocation6 + $0x3]]
        %s548 = scalar_lea.vmem %s391, 48 [#allocation10]
        %v549 = vld [vmem:[%s548] sm:$0xff]
        %v550 = vld [vmem:[%s548 + $0x8] sm:$0xff]
        %v551 = vstv %s547
        %v552 = vmul.f32 %v551, %v549
        %v553 = vmul.f32 %v551, %v550
        %v554 = vadd.f32 %v545, %v552
        %v555 = vadd.f32 %v546, %v553
        %s556 = sld [smem:[#allocation8]]
        %v557 = vstv %s556
        %v558 = vadd.f32 %v554, %v557
        %v559 = vadd.f32 %v555, %v557
        %vm560 = vcmask 130048
        %561 = vst.msk [vmem:[%s427] sm:$0xff] %vm560, %v558
        %562 = vst.msk [vmem:[%s427 + $0x8] sm:$0xff] %vm560, %v559
        %v564 = vsel %vm560, %v449, 0
        %566 = vmatprep.subr.mxu0 0.0
        %567 = vmatpush1.msra.mxu0 %v558
        %568 = vmatprep.subr.mxu0 0.0
        %569 = vmatpush1.msra.mxu0 %v559
        %570 = vmatprep.subr.mxu0 0.0
        %571 = vmatpush1.msra.mxu0 0.0
        %572 = vmatprep.subr.mxu0 0.0
        %573 = vmatpush1.msra.mxu0 0.0
        %574 = vmatprep.subr.mxu0 0.0
        %575 = vmatpush1.msra.mxu0 0.0
        %576 = vmatprep.subr.mxu0 0.0
        %577 = vmatpush1.msra.mxu0 0.0
        %578 = vmatprep.subr.mxu0 0.0
        %579 = vmatpush1.msra.mxu0 0.0
        %580 = vmatprep.subr.mxu0 0.0
        %581 = vmatpush1.msra.mxu0 0.0
        %582 = vmatprep.subr.mxu0 0.0
        %583 = vmatpush1.msra.mxu0 0.0
        %584 = vmatprep.subr.mxu0 0.0
        %585 = vmatpush1.msra.mxu0 0.0
        %586 = vmatprep.subr.mxu0 0.0
        %587 = vmatpush1.msra.mxu0 0.0
        %588 = vmatprep.subr.mxu0 0.0
        %589 = vmatpush1.msra.mxu0 0.0
        %590 = vmatprep.subr.mxu0 0.0
        %591 = vmatpush1.msra.mxu0 0.0
        %592 = vmatprep.subr.mxu0 0.0
        %593 = vmatpush1.msra.mxu0 0.0
        %594 = vmatprep.subr.mxu0 0.0
        %595 = vmatpush1.msra.mxu0 0.0
        %596 = vmatprep.subr.mxu0 0.0
        %597 = vmatpush1.msra.mxu0 0.0
        %598 = vmatprep.subr.mxu0 0.0
        %599 = vmatpush1.msra.mxu0 0.0
        %600 = vmatprep.subr.mxu0 0.0
        %601 = vmatpush1.msra.mxu0 0.0
        %602 = vmatprep.subr.mxu0 0.0
        %603 = vmatpush1.msra.mxu0 0.0
        %604 = vmatprep.subr.mxu0 0.0
        %605 = vmatpush1.msra.mxu0 0.0
        %606 = vmatprep.subr.mxu0 0.0
        %607 = vmatpush1.msra.mxu0 0.0
        %608 = vmatprep.subr.mxu0 0.0
        %609 = vmatpush1.msra.mxu0 0.0
        %610 = vmatprep.subr.mxu0 0.0
        %611 = vmatpush1.msra.mxu0 0.0
        %612 = vmatprep.subr.mxu0 0.0
        %613 = vmatpush1.msra.mxu0 0.0
        %614 = vmatprep.subr.mxu0 0.0
        %615 = vmatpush1.msra.mxu0 0.0
        %616 = vmatprep.subr.mxu0 0.0
        %617 = vmatpush1.msra.mxu0 0.0
        %618 = vmatprep.subr.mxu0 0.0
        %619 = vmatpush1.msra.mxu0 0.0
        %620 = vmatprep.subr.mxu0 0.0
        %621 = vmatpush1.msra.mxu0 0.0
        %622 = vmatprep.subr.mxu0 0.0
        %623 = vmatpush1.msra.mxu0 0.0
        %624 = vmatprep.subr.mxu0 0.0
        %625 = vmatpush1.msra.mxu0 0.0
        %626 = vmatprep.subr.mxu0 0.0
        %627 = vmatpush1.msra.mxu0 0.0
        %628 = vmatprep.subr.mxu0 0.0
        %629 = vmatpush1.msra.mxu0 0.0
        %630 = vmatprep.mubr.f32.mxu0 0.0
        %631 = vmatmul.mubr.f32.gmra.mrb[0].mxu0 %v564
        %v632 = vpop.f32.mrb[0].mxu0
        %v633 = vadd.f32 0.0, %v632
        %v634 = vpop.f32.mrb[0].mxu0
        %635 = vdwg.mxu0
        %v637 = vsel %vm560, %v633, 0
        %639 = vmatprep.subr.mxu0 0.0
        %640 = vmatpush1.msra.mxu0 %v450
        %641 = vmatprep.subr.mxu0 0.0
        %642 = vmatpush1.msra.mxu0 %v451
        %643 = vmatprep.subr.mxu0 0.0
        %644 = vmatpush1.msra.mxu0 0.0
        %645 = vmatprep.subr.mxu0 0.0
        %646 = vmatpush1.msra.mxu0 0.0
        %647 = vmatprep.subr.mxu0 0.0
        %648 = vmatpush1.msra.mxu0 0.0
        %649 = vmatprep.subr.mxu0 0.0
        %650 = vmatpush1.msra.mxu0 0.0
        %651 = vmatprep.subr.mxu0 0.0
        %652 = vmatpush1.msra.mxu0 0.0
        %653 = vmatprep.subr.mxu0 0.0
        %654 = vmatpush1.msra.mxu0 0.0
        %655 = vmatprep.subr.mxu0 0.0
        %656 = vmatpush1.msra.mxu0 0.0
        %657 = vmatprep.subr.mxu0 0.0
        %658 = vmatpush1.msra.mxu0 0.0
        %659 = vmatprep.subr.mxu0 0.0
        %660 = vmatpush1.msra.mxu0 0.0
        %661 = vmatprep.subr.mxu0 0.0
        %662 = vmatpush1.msra.mxu0 0.0
        %663 = vmatprep.subr.mxu0 0.0
        %664 = vmatpush1.msra.mxu0 0.0
        %665 = vmatprep.subr.mxu0 0.0
        %666 = vmatpush1.msra.mxu0 0.0
        %667 = vmatprep.subr.mxu0 0.0
        %668 = vmatpush1.msra.mxu0 0.0
        %669 = vmatprep.subr.mxu0 0.0
        %670 = vmatpush1.msra.mxu0 0.0
        %671 = vmatprep.subr.mxu0 0.0
        %672 = vmatpush1.msra.mxu0 0.0
        %673 = vmatprep.subr.mxu0 0.0
        %674 = vmatpush1.msra.mxu0 0.0
        %675 = vmatprep.subr.mxu0 0.0
        %676 = vmatpush1.msra.mxu0 0.0
        %677 = vmatprep.subr.mxu0 0.0
        %678 = vmatpush1.msra.mxu0 0.0
        %679 = vmatprep.subr.mxu0 0.0
        %680 = vmatpush1.msra.mxu0 0.0
        %681 = vmatprep.subr.mxu0 0.0
        %682 = vmatpush1.msra.mxu0 0.0
        %683 = vmatprep.subr.mxu0 0.0
        %684 = vmatpush1.msra.mxu0 0.0
        %685 = vmatprep.subr.mxu0 0.0
        %686 = vmatpush1.msra.mxu0 0.0
        %687 = vmatprep.subr.mxu0 0.0
        %688 = vmatpush1.msra.mxu0 0.0
        %689 = vmatprep.subr.mxu0 0.0
        %690 = vmatpush1.msra.mxu0 0.0
        %691 = vmatprep.subr.mxu0 0.0
        %692 = vmatpush1.msra.mxu0 0.0
        %693 = vmatprep.subr.mxu0 0.0
        %694 = vmatpush1.msra.mxu0 0.0
        %695 = vmatprep.subr.mxu0 0.0
        %696 = vmatpush1.msra.mxu0 0.0
        %697 = vmatprep.subr.mxu0 0.0
        %698 = vmatpush1.msra.mxu0 0.0
        %699 = vmatprep.subr.mxu0 0.0
        %700 = vmatpush1.msra.mxu0 0.0
        %701 = vmatprep.subr.mxu0 0.0
        %702 = vmatpush1.msra.mxu0 0.0
        %703 = vmatprep.mubr.f32.mxu0 0.0
        %704 = vmatmul.mubr.f32.gmra.mrb[0].mxu0 %v637
        %v705 = vpop.f32.mrb[0].mxu0
        %v706 = vadd.f32 0.0, %v705
        %v707 = vpop.f32.mrb[0].mxu0
        %708 = vdwg.mxu0
        %vm709 = vcmask 27648
        %710 = vst.msk [vmem:[%s448] sm:$0xf] %vm709, %v706
        %s711 = sld [smem:[#allocation2 + $0x80]]
        %v712 = vld [vmem:[%s382] sm:$0xff]
        %v713 = vld [vmem:[%s382 + $0x8] sm:$0xff]
        %v714 = vstv %s711
        %v715 = vmul.f32 %v714, %v712
        %v716 = vmul.f32 %v714, %v713
        %s717 = sld [smem:[#allocation2 + $0x81]]
        %v718 = vld [vmem:[%s459] sm:$0xff]
        %v719 = vld [vmem:[%s459 + $0x8] sm:$0xff]
        %v720 = vstv %s717
        %v721 = vmul.f32 %v720, %v718
        %v722 = vmul.f32 %v720, %v719
        %v723 = vadd.f32 %v715, %v721
        %v724 = vadd.f32 %v716, %v722
        %s725 = sld [smem:[#allocation2 + $0x82]]
        %v726 = vld [vmem:[%s468] sm:$0xff]
        %v727 = vld [vmem:[%s468 + $0x8] sm:$0xff]
        %v728 = vstv %s725
        %v729 = vmul.f32 %v728, %v726
        %v730 = vmul.f32 %v728, %v727
        %v731 = vadd.f32 %v723, %v729
        %v732 = vadd.f32 %v724, %v730
        %s733 = sld [smem:[#allocation2 + $0x83]]
        %v734 = vld [vmem:[%s477] sm:$0xff]
        %v735 = vld [vmem:[%s477 + $0x8] sm:$0xff]
        %v736 = vstv %s733
        %v737 = vmul.f32 %v736, %v734
        %v738 = vmul.f32 %v736, %v735
        %v739 = vadd.f32 %v731, %v737
        %v740 = vadd.f32 %v732, %v738
        %s741 = sld [smem:[#allocation2 + $0x84]]
        %v742 = vld [vmem:[%s486] sm:$0xff]
        %v743 = vld [vmem:[%s486 + $0x8] sm:$0xff]
        %v744 = vstv %s741
        %v745 = vmul.f32 %v744, %v742
        %v746 = vmul.f32 %v744, %v743
        %v747 = vadd.f32 %v739, %v745
        %v748 = vadd.f32 %v740, %v746
        %s749 = sld [smem:[#allocation2 + $0x85]]
        %v750 = vld [vmem:[%s495] sm:$0xff]
        %v751 = vld [vmem:[%s495 + $0x8] sm:$0xff]
        %v752 = vstv %s749
        %v753 = vmul.f32 %v752, %v750
        %v754 = vmul.f32 %v752, %v751
        %v755 = vadd.f32 %v747, %v753
        %v756 = vadd.f32 %v748, %v754
        %s757 = sld [smem:[#allocation2 + $0x86]]
        %v758 = vld [vmem:[%s504] sm:$0xff]
        %v759 = vld [vmem:[%s504 + $0x8] sm:$0xff]
        %v760 = vstv %s757
        %v761 = vmul.f32 %v760, %v758
        %v762 = vmul.f32 %v760, %v759
        %v763 = vadd.f32 %v755, %v761
        %v764 = vadd.f32 %v756, %v762
        %s765 = sld [smem:[#allocation2 + $0x87]]
        %v766 = vld [vmem:[%s513] sm:$0xff]
        %v767 = vld [vmem:[%s513 + $0x8] sm:$0xff]
        %v768 = vstv %s765
        %v769 = vmul.f32 %v768, %v766
        %v770 = vmul.f32 %v768, %v767
        %v771 = vadd.f32 %v763, %v769
        %v772 = vadd.f32 %v764, %v770
        %s773 = sld [smem:[#allocation6 + $0x80]]
        %v774 = vld [vmem:[%s391] sm:$0xff]
        %v775 = vld [vmem:[%s391 + $0x8] sm:$0xff]
        %v776 = vstv %s773
        %v777 = vmul.f32 %v776, %v774
        %v778 = vmul.f32 %v776, %v775
        %v779 = vadd.f32 %v771, %v777
        %v780 = vadd.f32 %v772, %v778
        %s781 = sld [smem:[#allocation6 + $0x81]]
        %v782 = vld [vmem:[%s530] sm:$0xff]
        %v783 = vld [vmem:[%s530 + $0x8] sm:$0xff]
        %v784 = vstv %s781
        %v785 = vmul.f32 %v784, %v782
        %v786 = vmul.f32 %v784, %v783
        %v787 = vadd.f32 %v779, %v785
        %v788 = vadd.f32 %v780, %v786
        %s789 = sld [smem:[#allocation6 + $0x82]]
        %v790 = vld [vmem:[%s539] sm:$0xff]
        %v791 = vld [vmem:[%s539 + $0x8] sm:$0xff]
        %v792 = vstv %s789
        %v793 = vmul.f32 %v792, %v790
        %v794 = vmul.f32 %v792, %v791
        %v795 = vadd.f32 %v787, %v793
        %v796 = vadd.f32 %v788, %v794
        %s797 = sld [smem:[#allocation6 + $0x83]]
        %v798 = vld [vmem:[%s548] sm:$0xff]
        %v799 = vld [vmem:[%s548 + $0x8] sm:$0xff]
        %v800 = vstv %s797
        %v801 = vmul.f32 %v800, %v798
        %v802 = vmul.f32 %v800, %v799
        %v803 = vadd.f32 %v795, %v801
        %v804 = vadd.f32 %v796, %v802
        %s805 = sld [smem:[#allocation8 + $0x1]]
        %v806 = vstv %s805
        %v807 = vadd.f32 %v803, %v806
        %v808 = vadd.f32 %v804, %v806
        %s809 = scalar_lea.vmem %s427, 16 [#allocation12]
        %810 = vst.msk [vmem:[%s809] sm:$0xff] %vm560, %v807
        %811 = vst.msk [vmem:[%s809 + $0x8] sm:$0xff] %vm560, %v808
        %812 = vmatprep.subr.mxu0 0.0
        %813 = vmatpush1.msra.mxu0 %v807
        %814 = vmatprep.subr.mxu0 0.0
        %815 = vmatpush1.msra.mxu0 %v808
        %816 = vmatprep.subr.mxu0 0.0
        %817 = vmatpush1.msra.mxu0 0.0
        %818 = vmatprep.subr.mxu0 0.0
        %819 = vmatpush1.msra.mxu0 0.0
        %820 = vmatprep.subr.mxu0 0.0
        %821 = vmatpush1.msra.mxu0 0.0
        %822 = vmatprep.subr.mxu0 0.0
        %823 = vmatpush1.msra.mxu0 0.0
        %824 = vmatprep.subr.mxu0 0.0
        %825 = vmatpush1.msra.mxu0 0.0
        %826 = vmatprep.subr.mxu0 0.0
        %827 = vmatpush1.msra.mxu0 0.0
        %828 = vmatprep.subr.mxu0 0.0
        %829 = vmatpush1.msra.mxu0 0.0
        %830 = vmatprep.subr.mxu0 0.0
        %831 = vmatpush1.msra.mxu0 0.0
        %832 = vmatprep.subr.mxu0 0.0
        %833 = vmatpush1.msra.mxu0 0.0
        %834 = vmatprep.subr.mxu0 0.0
        %835 = vmatpush1.msra.mxu0 0.0
        %836 = vmatprep.subr.mxu0 0.0
        %837 = vmatpush1.msra.mxu0 0.0
        %838 = vmatprep.subr.mxu0 0.0
        %839 = vmatpush1.msra.mxu0 0.0
        %840 = vmatprep.subr.mxu0 0.0
        %841 = vmatpush1.msra.mxu0 0.0
        %842 = vmatprep.subr.mxu0 0.0
        %843 = vmatpush1.msra.mxu0 0.0
        %844 = vmatprep.subr.mxu0 0.0
        %845 = vmatpush1.msra.mxu0 0.0
        %846 = vmatprep.subr.mxu0 0.0
        %847 = vmatpush1.msra.mxu0 0.0
        %848 = vmatprep.subr.mxu0 0.0
        %849 = vmatpush1.msra.mxu0 0.0
        %850 = vmatprep.subr.mxu0 0.0
        %851 = vmatpush1.msra.mxu0 0.0
        %852 = vmatprep.subr.mxu0 0.0
        %853 = vmatpush1.msra.mxu0 0.0
        %854 = vmatprep.subr.mxu0 0.0
        %855 = vmatpush1.msra.mxu0 0.0
        %856 = vmatprep.subr.mxu0 0.0
        %857 = vmatpush1.msra.mxu0 0.0
        %858 = vmatprep.subr.mxu0 0.0
        %859 = vmatpush1.msra.mxu0 0.0
        %860 = vmatprep.subr.mxu0 0.0
        %861 = vmatpush1.msra.mxu0 0.0
        %862 = vmatprep.subr.mxu0 0.0
        %863 = vmatpush1.msra.mxu0 0.0
        %864 = vmatprep.subr.mxu0 0.0
        %865 = vmatpush1.msra.mxu0 0.0
        %866 = vmatprep.subr.mxu0 0.0
        %867 = vmatpush1.msra.mxu0 0.0
        %868 = vmatprep.subr.mxu0 0.0
        %869 = vmatpush1.msra.mxu0 0.0
        %870 = vmatprep.subr.mxu0 0.0
        %871 = vmatpush1.msra.mxu0 0.0
        %872 = vmatprep.subr.mxu0 0.0
        %873 = vmatpush1.msra.mxu0 0.0
        %874 = vmatprep.subr.mxu0 0.0
        %875 = vmatpush1.msra.mxu0 0.0
        %876 = vmatprep.mubr.f32.mxu0 0.0
        %877 = vmatmul.mubr.f32.gmra.mrb[0].mxu0 %v564
        %v878 = vpop.f32.mrb[0].mxu0
        %v879 = vadd.f32 0.0, %v878
        %v880 = vpop.f32.mrb[0].mxu0
        %881 = vdwg.mxu0
        %v883 = vsel %vm560, %v879, 0
        %885 = vmatprep.subr.mxu0 0.0
        %886 = vmatpush1.msra.mxu0 %v450
        %887 = vmatprep.subr.mxu0 0.0
        %888 = vmatpush1.msra.mxu0 %v451
        %889 = vmatprep.subr.mxu0 0.0
        %890 = vmatpush1.msra.mxu0 0.0
        %891 = vmatprep.subr.mxu0 0.0
        %892 = vmatpush1.msra.mxu0 0.0
        %893 = vmatprep.subr.mxu0 0.0
        %894 = vmatpush1.msra.mxu0 0.0
        %895 = vmatprep.subr.mxu0 0.0
        %896 = vmatpush1.msra.mxu0 0.0
        %897 = vmatprep.subr.mxu0 0.0
        %898 = vmatpush1.msra.mxu0 0.0
        %899 = vmatprep.subr.mxu0 0.0
        %900 = vmatpush1.msra.mxu0 0.0
        %901 = vmatprep.subr.mxu0 0.0
        %902 = vmatpush1.msra.mxu0 0.0
        %903 = vmatprep.subr.mxu0 0.0
        %904 = vmatpush1.msra.mxu0 0.0
        %905 = vmatprep.subr.mxu0 0.0
        %906 = vmatpush1.msra.mxu0 0.0
        %907 = vmatprep.subr.mxu0 0.0
        %908 = vmatpush1.msra.mxu0 0.0
        %909 = vmatprep.subr.mxu0 0.0
        %910 = vmatpush1.msra.mxu0 0.0
        %911 = vmatprep.subr.mxu0 0.0
        %912 = vmatpush1.msra.mxu0 0.0
        %913 = vmatprep.subr.mxu0 0.0
        %914 = vmatpush1.msra.mxu0 0.0
        %915 = vmatprep.subr.mxu0 0.0
        %916 = vmatpush1.msra.mxu0 0.0
        %917 = vmatprep.subr.mxu0 0.0
        %918 = vmatpush1.msra.mxu0 0.0
        %919 = vmatprep.subr.mxu0 0.0
        %920 = vmatpush1.msra.mxu0 0.0
        %921 = vmatprep.subr.mxu0 0.0
        %922 = vmatpush1.msra.mxu0 0.0
        %923 = vmatprep.subr.mxu0 0.0
        %924 = vmatpush1.msra.mxu0 0.0
        %925 = vmatprep.subr.mxu0 0.0
        %926 = vmatpush1.msra.mxu0 0.0
        %927 = vmatprep.subr.mxu0 0.0
        %928 = vmatpush1.msra.mxu0 0.0
        %929 = vmatprep.subr.mxu0 0.0
        %930 = vmatpush1.msra.mxu0 0.0
        %931 = vmatprep.subr.mxu0 0.0
        %932 = vmatpush1.msra.mxu0 0.0
        %933 = vmatprep.subr.mxu0 0.0
        %934 = vmatpush1.msra.mxu0 0.0
        %935 = vmatprep.subr.mxu0 0.0
        %936 = vmatpush1.msra.mxu0 0.0
        %937 = vmatprep.subr.mxu0 0.0
        %938 = vmatpush1.msra.mxu0 0.0
        %939 = vmatprep.subr.mxu0 0.0
        %940 = vmatpush1.msra.mxu0 0.0
        %941 = vmatprep.subr.mxu0 0.0
        %942 = vmatpush1.msra.mxu0 0.0
        %943 = vmatprep.subr.mxu0 0.0
        %944 = vmatpush1.msra.mxu0 0.0
        %945 = vmatprep.subr.mxu0 0.0
        %946 = vmatpush1.msra.mxu0 0.0
        %947 = vmatprep.subr.mxu0 0.0
        %948 = vmatpush1.msra.mxu0 0.0
        %949 = vmatprep.mubr.f32.mxu0 0.0
        %950 = vmatmul.mubr.f32.gmra.mrb[0].mxu0 %v883
        %v951 = vpop.f32.mrb[0].mxu0
        %v952 = vadd.f32 0.0, %v951
        %v953 = vpop.f32.mrb[0].mxu0
        %954 = vdwg.mxu0
        %s955 = scalar_lea.vmem %s448, 4
        %956 = vst.msk [vmem:[%s955] sm:$0xf] %vm709, %v952
        %s957 = sld [smem:[#allocation2 + $0x100]]
        %v958 = vld [vmem:[%s382] sm:$0xff]
        %v959 = vld [vmem:[%s382 + $0x8] sm:$0xff]
        %v960 = vstv %s957
        %v961 = vmul.f32 %v960, %v958
        %v962 = vmul.f32 %v960, %v959
        %s963 = sld [smem:[#allocation2 + $0x101]]
        %v964 = vld [vmem:[%s459] sm:$0xff]
        %v965 = vld [vmem:[%s459 + $0x8] sm:$0xff]
        %v966 = vstv %s963
        %v967 = vmul.f32 %v966, %v964
        %v968 = vmul.f32 %v966, %v965
        %v969 = vadd.f32 %v961, %v967
        %v970 = vadd.f32 %v962, %v968
        %s971 = sld [smem:[#allocation2 + $0x102]]
        %v972 = vld [vmem:[%s468] sm:$0xff]
        %v973 = vld [vmem:[%s468 + $0x8] sm:$0xff]
        %v974 = vstv %s971
        %v975 = vmul.f32 %v974, %v972
        %v976 = vmul.f32 %v974, %v973
        %v977 = vadd.f32 %v969, %v975
        %v978 = vadd.f32 %v970, %v976
        %s979 = sld [smem:[#allocation2 + $0x103]]
        %v980 = vld [vmem:[%s477] sm:$0xff]
        %v981 = vld [vmem:[%s477 + $0x8] sm:$0xff]
        %v982 = vstv %s979
        %v983 = vmul.f32 %v982, %v980
        %v984 = vmul.f32 %v982, %v981
        %v985 = vadd.f32 %v977, %v983
        %v986 = vadd.f32 %v978, %v984
        %s987 = sld [smem:[#allocation2 + $0x104]]
        %v988 = vld [vmem:[%s486] sm:$0xff]
        %v989 = vld [vmem:[%s486 + $0x8] sm:$0xff]
        %v990 = vstv %s987
        %v991 = vmul.f32 %v990, %v988
        %v992 = vmul.f32 %v990, %v989
        %v993 = vadd.f32 %v985, %v991
        %v994 = vadd.f32 %v986, %v992
        %s995 = sld [smem:[#allocation2 + $0x105]]
        %v996 = vld [vmem:[%s495] sm:$0xff]
        %v997 = vld [vmem:[%s495 + $0x8] sm:$0xff]
        %v998 = vstv %s995
        %v999 = vmul.f32 %v998, %v996
        %v1000 = vmul.f32 %v998, %v997
        %v1001 = vadd.f32 %v993, %v999
        %v1002 = vadd.f32 %v994, %v1000
        %s1003 = sld [smem:[#allocation2 + $0x106]]
        %v1004 = vld [vmem:[%s504] sm:$0xff]
        %v1005 = vld [vmem:[%s504 + $0x8] sm:$0xff]
        %v1006 = vstv %s1003
        %v1007 = vmul.f32 %v1006, %v1004
        %v1008 = vmul.f32 %v1006, %v1005
        %v1009 = vadd.f32 %v1001, %v1007
        %v1010 = vadd.f32 %v1002, %v1008
        %s1011 = sld [smem:[#allocation2 + $0x107]]
        %v1012 = vld [vmem:[%s513] sm:$0xff]
        %v1013 = vld [vmem:[%s513 + $0x8] sm:$0xff]
        %v1014 = vstv %s1011
        %v1015 = vmul.f32 %v1014, %v1012
        %v1016 = vmul.f32 %v1014, %v1013
        %v1017 = vadd.f32 %v1009, %v1015
        %v1018 = vadd.f32 %v1010, %v1016
        %s1019 = sld [smem:[#allocation6 + $0x100]]
        %v1020 = vld [vmem:[%s391] sm:$0xff]
        %v1021 = vld [vmem:[%s391 + $0x8] sm:$0xff]
        %v1022 = vstv %s1019
        %v1023 = vmul.f32 %v1022, %v1020
        %v1024 = vmul.f32 %v1022, %v1021
        %v1025 = vadd.f32 %v1017, %v1023
        %v1026 = vadd.f32 %v1018, %v1024
        %s1027 = sld [smem:[#allocation6 + $0x101]]
        %v1028 = vld [vmem:[%s530] sm:$0xff]
        %v1029 = vld [vmem:[%s530 + $0x8] sm:$0xff]
        %v1030 = vstv %s1027
        %v1031 = vmul.f32 %v1030, %v1028
        %v1032 = vmul.f32 %v1030, %v1029
        %v1033 = vadd.f32 %v1025, %v1031
        %v1034 = vadd.f32 %v1026, %v1032
        %s1035 = sld [smem:[#allocation6 + $0x102]]
        %v1036 = vld [vmem:[%s539] sm:$0xff]
        %v1037 = vld [vmem:[%s539 + $0x8] sm:$0xff]
        %v1038 = vstv %s1035
        %v1039 = vmul.f32 %v1038, %v1036
        %v1040 = vmul.f32 %v1038, %v1037
        %v1041 = vadd.f32 %v1033, %v1039
        %v1042 = vadd.f32 %v1034, %v1040
        %s1043 = sld [smem:[#allocation6 + $0x103]]
        %v1044 = vld [vmem:[%s548] sm:$0xff]
        %v1045 = vld [vmem:[%s548 + $0x8] sm:$0xff]
        %v1046 = vstv %s1043
        %v1047 = vmul.f32 %v1046, %v1044
        %v1048 = vmul.f32 %v1046, %v1045
        %v1049 = vadd.f32 %v1041, %v1047
        %v1050 = vadd.f32 %v1042, %v1048
        %s1051 = sld [smem:[#allocation8 + $0x2]]
        %v1052 = vstv %s1051
        %v1053 = vadd.f32 %v1049, %v1052
        %v1054 = vadd.f32 %v1050, %v1052
        %s1055 = scalar_lea.vmem %s427, 32 [#allocation12]
        %1056 = vst.msk [vmem:[%s1055] sm:$0xff] %vm560, %v1053
        %1057 = vst.msk [vmem:[%s1055 + $0x8] sm:$0xff] %vm560, %v1054
        %1058 = vmatprep.subr.mxu0 0.0
        %1059 = vmatpush1.msra.mxu0 %v1053
        %1060 = vmatprep.subr.mxu0 0.0
        %1061 = vmatpush1.msra.mxu0 %v1054
        %1062 = vmatprep.subr.mxu0 0.0
        %1063 = vmatpush1.msra.mxu0 0.0
        %1064 = vmatprep.subr.mxu0 0.0
        %1065 = vmatpush1.msra.mxu0 0.0
        %1066 = vmatprep.subr.mxu0 0.0
        %1067 = vmatpush1.msra.mxu0 0.0
        %1068 = vmatprep.subr.mxu0 0.0
        %1069 = vmatpush1.msra.mxu0 0.0
        %1070 = vmatprep.subr.mxu0 0.0
        %1071 = vmatpush1.msra.mxu0 0.0
        %1072 = vmatprep.subr.mxu0 0.0
        %1073 = vmatpush1.msra.mxu0 0.0
        %1074 = vmatprep.subr.mxu0 0.0
        %1075 = vmatpush1.msra.mxu0 0.0
        %1076 = vmatprep.subr.mxu0 0.0
        %1077 = vmatpush1.msra.mxu0 0.0
        %1078 = vmatprep.subr.mxu0 0.0
        %1079 = vmatpush1.msra.mxu0 0.0
        %1080 = vmatprep.subr.mxu0 0.0
        %1081 = vmatpush1.msra.mxu0 0.0
        %1082 = vmatprep.subr.mxu0 0.0
        %1083 = vmatpush1.msra.mxu0 0.0
        %1084 = vmatprep.subr.mxu0 0.0
        %1085 = vmatpush1.msra.mxu0 0.0
        %1086 = vmatprep.subr.mxu0 0.0
        %1087 = vmatpush1.msra.mxu0 0.0
        %1088 = vmatprep.subr.mxu0 0.0
        %1089 = vmatpush1.msra.mxu0 0.0
        %1090 = vmatprep.subr.mxu0 0.0
        %1091 = vmatpush1.msra.mxu0 0.0
        %1092 = vmatprep.subr.mxu0 0.0
        %1093 = vmatpush1.msra.mxu0 0.0
        %1094 = vmatprep.subr.mxu0 0.0
        %1095 = vmatpush1.msra.mxu0 0.0
        %1096 = vmatprep.subr.mxu0 0.0
        %1097 = vmatpush1.msra.mxu0 0.0
        %1098 = vmatprep.subr.mxu0 0.0
        %1099 = vmatpush1.msra.mxu0 0.0
        %1100 = vmatprep.subr.mxu0 0.0
        %1101 = vmatpush1.msra.mxu0 0.0
        %1102 = vmatprep.subr.mxu0 0.0
        %1103 = vmatpush1.msra.mxu0 0.0
        %1104 = vmatprep.subr.mxu0 0.0
        %1105 = vmatpush1.msra.mxu0 0.0
        %1106 = vmatprep.subr.mxu0 0.0
        %1107 = vmatpush1.msra.mxu0 0.0
        %1108 = vmatprep.subr.mxu0 0.0
        %1109 = vmatpush1.msra.mxu0 0.0
        %1110 = vmatprep.subr.mxu0 0.0
        %1111 = vmatpush1.msra.mxu0 0.0
        %1112 = vmatprep.subr.mxu0 0.0
        %1113 = vmatpush1.msra.mxu0 0.0
        %1114 = vmatprep.subr.mxu0 0.0
        %1115 = vmatpush1.msra.mxu0 0.0
        %1116 = vmatprep.subr.mxu0 0.0
        %1117 = vmatpush1.msra.mxu0 0.0
        %1118 = vmatprep.subr.mxu0 0.0
        %1119 = vmatpush1.msra.mxu0 0.0
        %1120 = vmatprep.subr.mxu0 0.0
        %1121 = vmatpush1.msra.mxu0 0.0
        %1122 = vmatprep.mubr.f32.mxu0 0.0
        %1123 = vmatmul.mubr.f32.gmra.mrb[0].mxu0 %v564
        %v1124 = vpop.f32.mrb[0].mxu0
        %v1125 = vadd.f32 0.0, %v1124
        %v1126 = vpop.f32.mrb[0].mxu0
        %1127 = vdwg.mxu0
        %v1129 = vsel %vm560, %v1125, 0
        %1131 = vmatprep.subr.mxu0 0.0
        %1132 = vmatpush1.msra.mxu0 %v450
        %1133 = vmatprep.subr.mxu0 0.0
        %1134 = vmatpush1.msra.mxu0 %v451
        %1135 = vmatprep.subr.mxu0 0.0
        %1136 = vmatpush1.msra.mxu0 0.0
        %1137 = vmatprep.subr.mxu0 0.0
        %1138 = vmatpush1.msra.mxu0 0.0
        %1139 = vmatprep.subr.mxu0 0.0
        %1140 = vmatpush1.msra.mxu0 0.0
        %1141 = vmatprep.subr.mxu0 0.0
        %1142 = vmatpush1.msra.mxu0 0.0
        %1143 = vmatprep.subr.mxu0 0.0
        %1144 = vmatpush1.msra.mxu0 0.0
        %1145 = vmatprep.subr.mxu0 0.0
        %1146 = vmatpush1.msra.mxu0 0.0
        %1147 = vmatprep.subr.mxu0 0.0
        %1148 = vmatpush1.msra.mxu0 0.0
        %1149 = vmatprep.subr.mxu0 0.0
        %1150 = vmatpush1.msra.mxu0 0.0
        %1151 = vmatprep.subr.mxu0 0.0
        %1152 = vmatpush1.msra.mxu0 0.0
        %1153 = vmatprep.subr.mxu0 0.0
        %1154 = vmatpush1.msra.mxu0 0.0
        %1155 = vmatprep.subr.mxu0 0.0
        %1156 = vmatpush1.msra.mxu0 0.0
        %1157 = vmatprep.subr.mxu0 0.0
        %1158 = vmatpush1.msra.mxu0 0.0
        %1159 = vmatprep.subr.mxu0 0.0
        %1160 = vmatpush1.msra.mxu0 0.0
        %1161 = vmatprep.subr.mxu0 0.0
        %1162 = vmatpush1.msra.mxu0 0.0
        %1163 = vmatprep.subr.mxu0 0.0
        %1164 = vmatpush1.msra.mxu0 0.0
        %1165 = vmatprep.subr.mxu0 0.0
        %1166 = vmatpush1.msra.mxu0 0.0
        %1167 = vmatprep.subr.mxu0 0.0
        %1168 = vmatpush1.msra.mxu0 0.0
        %1169 = vmatprep.subr.mxu0 0.0
        %1170 = vmatpush1.msra.mxu0 0.0
        %1171 = vmatprep.subr.mxu0 0.0
        %1172 = vmatpush1.msra.mxu0 0.0
        %1173 = vmatprep.subr.mxu0 0.0
        %1174 = vmatpush1.msra.mxu0 0.0
        %1175 = vmatprep.subr.mxu0 0.0
        %1176 = vmatpush1.msra.mxu0 0.0
        %1177 = vmatprep.subr.mxu0 0.0
        %1178 = vmatpush1.msra.mxu0 0.0
        %1179 = vmatprep.subr.mxu0 0.0
        %1180 = vmatpush1.msra.mxu0 0.0
        %1181 = vmatprep.subr.mxu0 0.0
        %1182 = vmatpush1.msra.mxu0 0.0
        %1183 = vmatprep.subr.mxu0 0.0
        %1184 = vmatpush1.msra.mxu0 0.0
        %1185 = vmatprep.subr.mxu0 0.0
        %1186 = vmatpush1.msra.mxu0 0.0
        %1187 = vmatprep.subr.mxu0 0.0
        %1188 = vmatpush1.msra.mxu0 0.0
        %1189 = vmatprep.subr.mxu0 0.0
        %1190 = vmatpush1.msra.mxu0 0.0
        %1191 = vmatprep.subr.mxu0 0.0
        %1192 = vmatpush1.msra.mxu0 0.0
        %1193 = vmatprep.subr.mxu0 0.0
        %1194 = vmatpush1.msra.mxu0 0.0
        %1195 = vmatprep.mubr.f32.mxu0 0.0
        %1196 = vmatmul.mubr.f32.gmra.mrb[0].mxu0 %v1129
        %v1197 = vpop.f32.mrb[0].mxu0
        %v1198 = vadd.f32 0.0, %v1197
        %v1199 = vpop.f32.mrb[0].mxu0
        %1200 = vdwg.mxu0
        %s1201 = scalar_lea.vmem %s448, 8
        %1202 = vst.msk [vmem:[%s1201] sm:$0xf] %vm709, %v1198
        %s1203 = sld [smem:[#allocation2 + $0x180]]
        %v1204 = vld [vmem:[%s382] sm:$0xff]
        %v1205 = vld [vmem:[%s382 + $0x8] sm:$0xff]
        %v1206 = vstv %s1203
        %v1207 = vmul.f32 %v1206, %v1204
        %v1208 = vmul.f32 %v1206, %v1205
        %s1209 = sld [smem:[#allocation2 + $0x181]]
        %v1210 = vld [vmem:[%s459] sm:$0xff]
        %v1211 = vld [vmem:[%s459 + $0x8] sm:$0xff]
        %v1212 = vstv %s1209
        %v1213 = vmul.f32 %v1212, %v1210
        %v1214 = vmul.f32 %v1212, %v1211
        %v1215 = vadd.f32 %v1207, %v1213
        %v1216 = vadd.f32 %v1208, %v1214
        %s1217 = sld [smem:[#allocation2 + $0x182]]
        %v1218 = vld [vmem:[%s468] sm:$0xff]
        %v1219 = vld [vmem:[%s468 + $0x8] sm:$0xff]
        %v1220 = vstv %s1217
        %v1221 = vmul.f32 %v1220, %v1218
        %v1222 = vmul.f32 %v1220, %v1219
        %v1223 = vadd.f32 %v1215, %v1221
        %v1224 = vadd.f32 %v1216, %v1222
        %s1225 = sld [smem:[#allocation2 + $0x183]]
        %v1226 = vld [vmem:[%s477] sm:$0xff]
        %v1227 = vld [vmem:[%s477 + $0x8] sm:$0xff]
        %v1228 = vstv %s1225
        %v1229 = vmul.f32 %v1228, %v1226
        %v1230 = vmul.f32 %v1228, %v1227
        %v1231 = vadd.f32 %v1223, %v1229
        %v1232 = vadd.f32 %v1224, %v1230
        %s1233 = sld [smem:[#allocation2 + $0x184]]
        %v1234 = vld [vmem:[%s486] sm:$0xff]
        %v1235 = vld [vmem:[%s486 + $0x8] sm:$0xff]
        %v1236 = vstv %s1233
        %v1237 = vmul.f32 %v1236, %v1234
        %v1238 = vmul.f32 %v1236, %v1235
        %v1239 = vadd.f32 %v1231, %v1237
        %v1240 = vadd.f32 %v1232, %v1238
        %s1241 = sld [smem:[#allocation2 + $0x185]]
        %v1242 = vld [vmem:[%s495] sm:$0xff]
        %v1243 = vld [vmem:[%s495 + $0x8] sm:$0xff]
        %v1244 = vstv %s1241
        %v1245 = vmul.f32 %v1244, %v1242
        %v1246 = vmul.f32 %v1244, %v1243
        %v1247 = vadd.f32 %v1239, %v1245
        %v1248 = vadd.f32 %v1240, %v1246
        %s1249 = sld [smem:[#allocation2 + $0x186]]
        %v1250 = vld [vmem:[%s504] sm:$0xff]
        %v1251 = vld [vmem:[%s504 + $0x8] sm:$0xff]
        %v1252 = vstv %s1249
        %v1253 = vmul.f32 %v1252, %v1250
        %v1254 = vmul.f32 %v1252, %v1251
        %v1255 = vadd.f32 %v1247, %v1253
        %v1256 = vadd.f32 %v1248, %v1254
        %s1257 = sld [smem:[#allocation2 + $0x187]]
        %v1258 = vld [vmem:[%s513] sm:$0xff]
        %v1259 = vld [vmem:[%s513 + $0x8] sm:$0xff]
        %v1260 = vstv %s1257
        %v1261 = vmul.f32 %v1260, %v1258
        %v1262 = vmul.f32 %v1260, %v1259
        %v1263 = vadd.f32 %v1255, %v1261
        %v1264 = vadd.f32 %v1256, %v1262
        %s1265 = sld [smem:[#allocation6 + $0x180]]
        %v1266 = vld [vmem:[%s391] sm:$0xff]
        %v1267 = vld [vmem:[%s391 + $0x8] sm:$0xff]
        %v1268 = vstv %s1265
        %v1269 = vmul.f32 %v1268, %v1266
        %v1270 = vmul.f32 %v1268, %v1267
        %v1271 = vadd.f32 %v1263, %v1269
        %v1272 = vadd.f32 %v1264, %v1270
        %s1273 = sld [smem:[#allocation6 + $0x181]]
        %v1274 = vld [vmem:[%s530] sm:$0xff]
        %v1275 = vld [vmem:[%s530 + $0x8] sm:$0xff]
        %v1276 = vstv %s1273
        %v1277 = vmul.f32 %v1276, %v1274
        %v1278 = vmul.f32 %v1276, %v1275
        %v1279 = vadd.f32 %v1271, %v1277
        %v1280 = vadd.f32 %v1272, %v1278
        %s1281 = sld [smem:[#allocation6 + $0x182]]
        %v1282 = vld [vmem:[%s539] sm:$0xff]
        %v1283 = vld [vmem:[%s539 + $0x8] sm:$0xff]
        %v1284 = vstv %s1281
        %v1285 = vmul.f32 %v1284, %v1282
        %v1286 = vmul.f32 %v1284, %v1283
        %v1287 = vadd.f32 %v1279, %v1285
        %v1288 = vadd.f32 %v1280, %v1286
        %s1289 = sld [smem:[#allocation6 + $0x183]]
        %v1290 = vld [vmem:[%s548] sm:$0xff]
        %v1291 = vld [vmem:[%s548 + $0x8] sm:$0xff]
        %v1292 = vstv %s1289
        %v1293 = vmul.f32 %v1292, %v1290
        %v1294 = vmul.f32 %v1292, %v1291
        %v1295 = vadd.f32 %v1287, %v1293
        %v1296 = vadd.f32 %v1288, %v1294
        %s1297 = sld [smem:[#allocation8 + $0x3]]
        %v1298 = vstv %s1297
        %v1299 = vadd.f32 %v1295, %v1298
        %v1300 = vadd.f32 %v1296, %v1298
        %s1301 = scalar_lea.vmem %s427, 48 [#allocation12]
        %1302 = vst.msk [vmem:[%s1301] sm:$0xff] %vm560, %v1299
        %1303 = vst.msk [vmem:[%s1301 + $0x8] sm:$0xff] %vm560, %v1300
        %1304 = vmatprep.subr.mxu0 0.0
        %1305 = vmatpush1.msra.mxu0 %v1299
        %1306 = vmatprep.subr.mxu0 0.0
        %1307 = vmatpush1.msra.mxu0 %v1300
        %1308 = vmatprep.subr.mxu0 0.0
        %1309 = vmatpush1.msra.mxu0 0.0
        %1310 = vmatprep.subr.mxu0 0.0
        %1311 = vmatpush1.msra.mxu0 0.0
        %1312 = vmatprep.subr.mxu0 0.0
        %1313 = vmatpush1.msra.mxu0 0.0
        %1314 = vmatprep.subr.mxu0 0.0
        %1315 = vmatpush1.msra.mxu0 0.0
        %1316 = vmatprep.subr.mxu0 0.0
        %1317 = vmatpush1.msra.mxu0 0.0
        %1318 = vmatprep.subr.mxu0 0.0
        %1319 = vmatpush1.msra.mxu0 0.0
        %1320 = vmatprep.subr.mxu0 0.0
        %1321 = vmatpush1.msra.mxu0 0.0
        %1322 = vmatprep.subr.mxu0 0.0
        %1323 = vmatpush1.msra.mxu0 0.0
        %1324 = vmatprep.subr.mxu0 0.0
        %1325 = vmatpush1.msra.mxu0 0.0
        %1326 = vmatprep.subr.mxu0 0.0
        %1327 = vmatpush1.msra.mxu0 0.0
        %1328 = vmatprep.subr.mxu0 0.0
        %1329 = vmatpush1.msra.mxu0 0.0
        %1330 = vmatprep.subr.mxu0 0.0
        %1331 = vmatpush1.msra.mxu0 0.0
        %1332 = vmatprep.subr.mxu0 0.0
        %1333 = vmatpush1.msra.mxu0 0.0
        %1334 = vmatprep.subr.mxu0 0.0
        %1335 = vmatpush1.msra.mxu0 0.0
        %1336 = vmatprep.subr.mxu0 0.0
        %1337 = vmatpush1.msra.mxu0 0.0
        %1338 = vmatprep.subr.mxu0 0.0
        %1339 = vmatpush1.msra.mxu0 0.0
        %1340 = vmatprep.subr.mxu0 0.0
        %1341 = vmatpush1.msra.mxu0 0.0
        %1342 = vmatprep.subr.mxu0 0.0
        %1343 = vmatpush1.msra.mxu0 0.0
        %1344 = vmatprep.subr.mxu0 0.0
        %1345 = vmatpush1.msra.mxu0 0.0
        %1346 = vmatprep.subr.mxu0 0.0
        %1347 = vmatpush1.msra.mxu0 0.0
        %1348 = vmatprep.subr.mxu0 0.0
        %1349 = vmatpush1.msra.mxu0 0.0
        %1350 = vmatprep.subr.mxu0 0.0
        %1351 = vmatpush1.msra.mxu0 0.0
        %1352 = vmatprep.subr.mxu0 0.0
        %1353 = vmatpush1.msra.mxu0 0.0
        %1354 = vmatprep.subr.mxu0 0.0
        %1355 = vmatpush1.msra.mxu0 0.0
        %1356 = vmatprep.subr.mxu0 0.0
        %1357 = vmatpush1.msra.mxu0 0.0
        %1358 = vmatprep.subr.mxu0 0.0
        %1359 = vmatpush1.msra.mxu0 0.0
        %1360 = vmatprep.subr.mxu0 0.0
        %1361 = vmatpush1.msra.mxu0 0.0
        %1362 = vmatprep.subr.mxu0 0.0
        %1363 = vmatpush1.msra.mxu0 0.0
        %1364 = vmatprep.subr.mxu0 0.0
        %1365 = vmatpush1.msra.mxu0 0.0
        %1366 = vmatprep.subr.mxu0 0.0
        %1367 = vmatpush1.msra.mxu0 0.0
        %1368 = vmatprep.mubr.f32.mxu0 0.0
        %1369 = vmatmul.mubr.f32.gmra.mrb[0].mxu0 %v564
        %v1370 = vpop.f32.mrb[0].mxu0
        %v1371 = vadd.f32 0.0, %v1370
        %v1372 = vpop.f32.mrb[0].mxu0
        %1373 = vdwg.mxu0
        %v1375 = vsel %vm560, %v1371, 0
        %1377 = vmatprep.subr.mxu0 0.0
        %1378 = vmatpush1.msra.mxu0 %v450
        %1379 = vmatprep.subr.mxu0 0.0
        %1380 = vmatpush1.msra.mxu0 %v451
        %1381 = vmatprep.subr.mxu0 0.0
        %1382 = vmatpush1.msra.mxu0 0.0
        %1383 = vmatprep.subr.mxu0 0.0
        %1384 = vmatpush1.msra.mxu0 0.0
        %1385 = vmatprep.subr.mxu0 0.0
        %1386 = vmatpush1.msra.mxu0 0.0
        %1387 = vmatprep.subr.mxu0 0.0
        %1388 = vmatpush1.msra.mxu0 0.0
        %1389 = vmatprep.subr.mxu0 0.0
        %1390 = vmatpush1.msra.mxu0 0.0
        %1391 = vmatprep.subr.mxu0 0.0
        %1392 = vmatpush1.msra.mxu0 0.0
        %1393 = vmatprep.subr.mxu0 0.0
        %1394 = vmatpush1.msra.mxu0 0.0
        %1395 = vmatprep.subr.mxu0 0.0
        %1396 = vmatpush1.msra.mxu0 0.0
        %1397 = vmatprep.subr.mxu0 0.0
        %1398 = vmatpush1.msra.mxu0 0.0
        %1399 = vmatprep.subr.mxu0 0.0
        %1400 = vmatpush1.msra.mxu0 0.0
        %1401 = vmatprep.subr.mxu0 0.0
        %1402 = vmatpush1.msra.mxu0 0.0
        %1403 = vmatprep.subr.mxu0 0.0
        %1404 = vmatpush1.msra.mxu0 0.0
        %1405 = vmatprep.subr.mxu0 0.0
        %1406 = vmatpush1.msra.mxu0 0.0
        %1407 = vmatprep.subr.mxu0 0.0
        %1408 = vmatpush1.msra.mxu0 0.0
        %1409 = vmatprep.subr.mxu0 0.0
        %1410 = vmatpush1.msra.mxu0 0.0
        %1411 = vmatprep.subr.mxu0 0.0
        %1412 = vmatpush1.msra.mxu0 0.0
        %1413 = vmatprep.subr.mxu0 0.0
        %1414 = vmatpush1.msra.mxu0 0.0
        %1415 = vmatprep.subr.mxu0 0.0
        %1416 = vmatpush1.msra.mxu0 0.0
        %1417 = vmatprep.subr.mxu0 0.0
        %1418 = vmatpush1.msra.mxu0 0.0
        %1419 = vmatprep.subr.mxu0 0.0
        %1420 = vmatpush1.msra.mxu0 0.0
        %1421 = vmatprep.subr.mxu0 0.0
        %1422 = vmatpush1.msra.mxu0 0.0
        %1423 = vmatprep.subr.mxu0 0.0
        %1424 = vmatpush1.msra.mxu0 0.0
        %1425 = vmatprep.subr.mxu0 0.0
        %1426 = vmatpush1.msra.mxu0 0.0
        %1427 = vmatprep.subr.mxu0 0.0
        %1428 = vmatpush1.msra.mxu0 0.0
        %1429 = vmatprep.subr.mxu0 0.0
        %1430 = vmatpush1.msra.mxu0 0.0
        %1431 = vmatprep.subr.mxu0 0.0
        %1432 = vmatpush1.msra.mxu0 0.0
        %1433 = vmatprep.subr.mxu0 0.0
        %1434 = vmatpush1.msra.mxu0 0.0
        %1435 = vmatprep.subr.mxu0 0.0
        %1436 = vmatpush1.msra.mxu0 0.0
        %1437 = vmatprep.subr.mxu0 0.0
        %1438 = vmatpush1.msra.mxu0 0.0
        %1439 = vmatprep.subr.mxu0 0.0
        %1440 = vmatpush1.msra.mxu0 0.0
        %1441 = vmatprep.mubr.f32.mxu0 0.0
        %1442 = vmatmul.mubr.f32.gmra.mrb[0].mxu0 %v1375
        %v1443 = vpop.f32.mrb[0].mxu0
        %v1444 = vadd.f32 0.0, %v1443
        %v1445 = vpop.f32.mrb[0].mxu0
        %1446 = vdwg.mxu0
        %s1447 = scalar_lea.vmem %s448, 12
        %1448 = vst.msk [vmem:[%s1447] sm:$0xf] %vm709, %v1444
        %s1449 = sld [smem:[#allocation2 + $0x200]]
        %v1450 = vld [vmem:[%s382] sm:$0xff]
        %v1451 = vld [vmem:[%s382 + $0x8] sm:$0xff]
        %v1452 = vstv %s1449
        %v1453 = vmul.f32 %v1452, %v1450
        %v1454 = vmul.f32 %v1452, %v1451
        %s1455 = sld [smem:[#allocation2 + $0x201]]
        %v1456 = vld [vmem:[%s459] sm:$0xff]
        %v1457 = vld [vmem:[%s459 + $0x8] sm:$0xff]
        %v1458 = vstv %s1455
        %v1459 = vmul.f32 %v1458, %v1456
        %v1460 = vmul.f32 %v1458, %v1457
        %v1461 = vadd.f32 %v1453, %v1459
        %v1462 = vadd.f32 %v1454, %v1460
        %s1463 = sld [smem:[#allocation2 + $0x202]]
        %v1464 = vld [vmem:[%s468] sm:$0xff]
        %v1465 = vld [vmem:[%s468 + $0x8] sm:$0xff]
        %v1466 = vstv %s1463
        %v1467 = vmul.f32 %v1466, %v1464
        %v1468 = vmul.f32 %v1466, %v1465
        %v1469 = vadd.f32 %v1461, %v1467
        %v1470 = vadd.f32 %v1462, %v1468
        %s1471 = sld [smem:[#allocation2 + $0x203]]
        %v1472 = vld [vmem:[%s477] sm:$0xff]
        %v1473 = vld [vmem:[%s477 + $0x8] sm:$0xff]
        %v1474 = vstv %s1471
        %v1475 = vmul.f32 %v1474, %v1472
        %v1476 = vmul.f32 %v1474, %v1473
        %v1477 = vadd.f32 %v1469, %v1475
        %v1478 = vadd.f32 %v1470, %v1476
        %s1479 = sld [smem:[#allocation2 + $0x204]]
        %v1480 = vld [vmem:[%s486] sm:$0xff]
        %v1481 = vld [vmem:[%s486 + $0x8] sm:$0xff]
        %v1482 = vstv %s1479
        %v1483 = vmul.f32 %v1482, %v1480
        %v1484 = vmul.f32 %v1482, %v1481
        %v1485 = vadd.f32 %v1477, %v1483
        %v1486 = vadd.f32 %v1478, %v1484
        %s1487 = sld [smem:[#allocation2 + $0x205]]
        %v1488 = vld [vmem:[%s495] sm:$0xff]
        %v1489 = vld [vmem:[%s495 + $0x8] sm:$0xff]
        %v1490 = vstv %s1487
        %v1491 = vmul.f32 %v1490, %v1488
        %v1492 = vmul.f32 %v1490, %v1489
        %v1493 = vadd.f32 %v1485, %v1491
        %v1494 = vadd.f32 %v1486, %v1492
        %s1495 = sld [smem:[#allocation2 + $0x206]]
        %v1496 = vld [vmem:[%s504] sm:$0xff]
        %v1497 = vld [vmem:[%s504 + $0x8] sm:$0xff]
        %v1498 = vstv %s1495
        %v1499 = vmul.f32 %v1498, %v1496
        %v1500 = vmul.f32 %v1498, %v1497
        %v1501 = vadd.f32 %v1493, %v1499
        %v1502 = vadd.f32 %v1494, %v1500
        %s1503 = sld [smem:[#allocation2 + $0x207]]
        %v1504 = vld [vmem:[%s513] sm:$0xff]
        %v1505 = vld [vmem:[%s513 + $0x8] sm:$0xff]
        %v1506 = vstv %s1503
        %v1507 = vmul.f32 %v1506, %v1504
        %v1508 = vmul.f32 %v1506, %v1505
        %v1509 = vadd.f32 %v1501, %v1507
        %v1510 = vadd.f32 %v1502, %v1508
        %s1511 = sld [smem:[#allocation6 + $0x200]]
        %v1512 = vld [vmem:[%s391] sm:$0xff]
        %v1513 = vld [vmem:[%s391 + $0x8] sm:$0xff]
        %v1514 = vstv %s1511
        %v1515 = vmul.f32 %v1514, %v1512
        %v1516 = vmul.f32 %v1514, %v1513
        %v1517 = vadd.f32 %v1509, %v1515
        %v1518 = vadd.f32 %v1510, %v1516
        %s1519 = sld [smem:[#allocation6 + $0x201]]
        %v1520 = vld [vmem:[%s530] sm:$0xff]
        %v1521 = vld [vmem:[%s530 + $0x8] sm:$0xff]
        %v1522 = vstv %s1519
        %v1523 = vmul.f32 %v1522, %v1520
        %v1524 = vmul.f32 %v1522, %v1521
        %v1525 = vadd.f32 %v1517, %v1523
        %v1526 = vadd.f32 %v1518, %v1524
        %s1527 = sld [smem:[#allocation6 + $0x202]]
        %v1528 = vld [vmem:[%s539] sm:$0xff]
        %v1529 = vld [vmem:[%s539 + $0x8] sm:$0xff]
        %v1530 = vstv %s1527
        %v1531 = vmul.f32 %v1530, %v1528
        %v1532 = vmul.f32 %v1530, %v1529
        %v1533 = vadd.f32 %v1525, %v1531
        %v1534 = vadd.f32 %v1526, %v1532
        %s1535 = sld [smem:[#allocation6 + $0x203]]
        %v1536 = vld [vmem:[%s548] sm:$0xff]
        %v1537 = vld [vmem:[%s548 + $0x8] sm:$0xff]
        %v1538 = vstv %s1535
        %v1539 = vmul.f32 %v1538, %v1536
        %v1540 = vmul.f32 %v1538, %v1537
        %v1541 = vadd.f32 %v1533, %v1539
        %v1542 = vadd.f32 %v1534, %v1540
        %s1543 = sld [smem:[#allocation8 + $0x4]]
        %v1544 = vstv %s1543
        %v1545 = vadd.f32 %v1541, %v1544
        %v1546 = vadd.f32 %v1542, %v1544
        %s1547 = scalar_lea.vmem %s427, 64 [#allocation12]
        %1548 = vst.msk [vmem:[%s1547] sm:$0xff] %vm560, %v1545
        %1549 = vst.msk [vmem:[%s1547 + $0x8] sm:$0xff] %vm560, %v1546
        %1550 = vmatprep.subr.mxu0 0.0
        %1551 = vmatpush1.msra.mxu0 %v1545
        %1552 = vmatprep.subr.mxu0 0.0
        %1553 = vmatpush1.msra.mxu0 %v1546
        %1554 = vmatprep.subr.mxu0 0.0
        %1555 = vmatpush1.msra.mxu0 0.0
        %1556 = vmatprep.subr.mxu0 0.0
        %1557 = vmatpush1.msra.mxu0 0.0
        %1558 = vmatprep.subr.mxu0 0.0
        %1559 = vmatpush1.msra.mxu0 0.0
        %1560 = vmatprep.subr.mxu0 0.0
        %1561 = vmatpush1.msra.mxu0 0.0
        %1562 = vmatprep.subr.mxu0 0.0
        %1563 = vmatpush1.msra.mxu0 0.0
        %1564 = vmatprep.subr.mxu0 0.0
        %1565 = vmatpush1.msra.mxu0 0.0
        %1566 = vmatprep.subr.mxu0 0.0
        %1567 = vmatpush1.msra.mxu0 0.0
        %1568 = vmatprep.subr.mxu0 0.0
        %1569 = vmatpush1.msra.mxu0 0.0
        %1570 = vmatprep.subr.mxu0 0.0
        %1571 = vmatpush1.msra.mxu0 0.0
        %1572 = vmatprep.subr.mxu0 0.0
        %1573 = vmatpush1.msra.mxu0 0.0
        %1574 = vmatprep.subr.mxu0 0.0
        %1575 = vmatpush1.msra.mxu0 0.0
        %1576 = vmatprep.subr.mxu0 0.0
        %1577 = vmatpush1.msra.mxu0 0.0
        %1578 = vmatprep.subr.mxu0 0.0
        %1579 = vmatpush1.msra.mxu0 0.0
        %1580 = vmatprep.subr.mxu0 0.0
        %1581 = vmatpush1.msra.mxu0 0.0
        %1582 = vmatprep.subr.mxu0 0.0
        %1583 = vmatpush1.msra.mxu0 0.0
        %1584 = vmatprep.subr.mxu0 0.0
        %1585 = vmatpush1.msra.mxu0 0.0
        %1586 = vmatprep.subr.mxu0 0.0
        %1587 = vmatpush1.msra.mxu0 0.0
        %1588 = vmatprep.subr.mxu0 0.0
        %1589 = vmatpush1.msra.mxu0 0.0
        %1590 = vmatprep.subr.mxu0 0.0
        %1591 = vmatpush1.msra.mxu0 0.0
        %1592 = vmatprep.subr.mxu0 0.0
        %1593 = vmatpush1.msra.mxu0 0.0
        %1594 = vmatprep.subr.mxu0 0.0
        %1595 = vmatpush1.msra.mxu0 0.0
        %1596 = vmatprep.subr.mxu0 0.0
        %1597 = vmatpush1.msra.mxu0 0.0
        %1598 = vmatprep.subr.mxu0 0.0
        %1599 = vmatpush1.msra.mxu0 0.0
        %1600 = vmatprep.subr.mxu0 0.0
        %1601 = vmatpush1.msra.mxu0 0.0
        %1602 = vmatprep.subr.mxu0 0.0
        %1603 = vmatpush1.msra.mxu0 0.0
        %1604 = vmatprep.subr.mxu0 0.0
        %1605 = vmatpush1.msra.mxu0 0.0
        %1606 = vmatprep.subr.mxu0 0.0
        %1607 = vmatpush1.msra.mxu0 0.0
        %1608 = vmatprep.subr.mxu0 0.0
        %1609 = vmatpush1.msra.mxu0 0.0
        %1610 = vmatprep.subr.mxu0 0.0
        %1611 = vmatpush1.msra.mxu0 0.0
        %1612 = vmatprep.subr.mxu0 0.0
        %1613 = vmatpush1.msra.mxu0 0.0
        %1614 = vmatprep.mubr.f32.mxu0 0.0
        %1615 = vmatmul.mubr.f32.gmra.mrb[0].mxu0 %v564
        %v1616 = vpop.f32.mrb[0].mxu0
        %v1617 = vadd.f32 0.0, %v1616
        %v1618 = vpop.f32.mrb[0].mxu0
        %1619 = vdwg.mxu0
        %v1621 = vsel %vm560, %v1617, 0
        %1623 = vmatprep.subr.mxu0 0.0
        %1624 = vmatpush1.msra.mxu0 %v450
        %1625 = vmatprep.subr.mxu0 0.0
        %1626 = vmatpush1.msra.mxu0 %v451
        %1627 = vmatprep.subr.mxu0 0.0
        %1628 = vmatpush1.msra.mxu0 0.0
        %1629 = vmatprep.subr.mxu0 0.0
        %1630 = vmatpush1.msra.mxu0 0.0
        %1631 = vmatprep.subr.mxu0 0.0
        %1632 = vmatpush1.msra.mxu0 0.0
        %1633 = vmatprep.subr.mxu0 0.0
        %1634 = vmatpush1.msra.mxu0 0.0
        %1635 = vmatprep.subr.mxu0 0.0
        %1636 = vmatpush1.msra.mxu0 0.0
        %1637 = vmatprep.subr.mxu0 0.0
        %1638 = vmatpush1.msra.mxu0 0.0
        %1639 = vmatprep.subr.mxu0 0.0
        %1640 = vmatpush1.msra.mxu0 0.0
        %1641 = vmatprep.subr.mxu0 0.0
        %1642 = vmatpush1.msra.mxu0 0.0
        %1643 = vmatprep.subr.mxu0 0.0
        %1644 = vmatpush1.msra.mxu0 0.0
        %1645 = vmatprep.subr.mxu0 0.0
        %1646 = vmatpush1.msra.mxu0 0.0
        %1647 = vmatprep.subr.mxu0 0.0
        %1648 = vmatpush1.msra.mxu0 0.0
        %1649 = vmatprep.subr.mxu0 0.0
        %1650 = vmatpush1.msra.mxu0 0.0
        %1651 = vmatprep.subr.mxu0 0.0
        %1652 = vmatpush1.msra.mxu0 0.0
        %1653 = vmatprep.subr.mxu0 0.0
        %1654 = vmatpush1.msra.mxu0 0.0
        %1655 = vmatprep.subr.mxu0 0.0
        %1656 = vmatpush1.msra.mxu0 0.0
        %1657 = vmatprep.subr.mxu0 0.0
        %1658 = vmatpush1.msra.mxu0 0.0
        %1659 = vmatprep.subr.mxu0 0.0
        %1660 = vmatpush1.msra.mxu0 0.0
        %1661 = vmatprep.subr.mxu0 0.0
        %1662 = vmatpush1.msra.mxu0 0.0
        %1663 = vmatprep.subr.mxu0 0.0
        %1664 = vmatpush1.msra.mxu0 0.0
        %1665 = vmatprep.subr.mxu0 0.0
        %1666 = vmatpush1.msra.mxu0 0.0
        %1667 = vmatprep.subr.mxu0 0.0
        %1668 = vmatpush1.msra.mxu0 0.0
        %1669 = vmatprep.subr.mxu0 0.0
        %1670 = vmatpush1.msra.mxu0 0.0
        %1671 = vmatprep.subr.mxu0 0.0
        %1672 = vmatpush1.msra.mxu0 0.0
        %1673 = vmatprep.subr.mxu0 0.0
        %1674 = vmatpush1.msra.mxu0 0.0
        %1675 = vmatprep.subr.mxu0 0.0
        %1676 = vmatpush1.msra.mxu0 0.0
        %1677 = vmatprep.subr.mxu0 0.0
        %1678 = vmatpush1.msra.mxu0 0.0
        %1679 = vmatprep.subr.mxu0 0.0
        %1680 = vmatpush1.msra.mxu0 0.0
        %1681 = vmatprep.subr.mxu0 0.0
        %1682 = vmatpush1.msra.mxu0 0.0
        %1683 = vmatprep.subr.mxu0 0.0
        %1684 = vmatpush1.msra.mxu0 0.0
        %1685 = vmatprep.subr.mxu0 0.0
        %1686 = vmatpush1.msra.mxu0 0.0
        %1687 = vmatprep.mubr.f32.mxu0 0.0
        %1688 = vmatmul.mubr.f32.gmra.mrb[0].mxu0 %v1621
        %v1689 = vpop.f32.mrb[0].mxu0
        %v1690 = vadd.f32 0.0, %v1689
        %v1691 = vpop.f32.mrb[0].mxu0
        %1692 = vdwg.mxu0
        %s1693 = scalar_lea.vmem %s448, 16
        %1694 = vst.msk [vmem:[%s1693] sm:$0xf] %vm709, %v1690
        %s1695 = sld [smem:[#allocation2 + $0x280]]
        %v1696 = vld [vmem:[%s382] sm:$0xff]
        %v1697 = vld [vmem:[%s382 + $0x8] sm:$0xff]
        %v1698 = vstv %s1695
        %v1699 = vmul.f32 %v1698, %v1696
        %v1700 = vmul.f32 %v1698, %v1697
        %s1701 = sld [smem:[#allocation2 + $0x281]]
        %v1702 = vld [vmem:[%s459] sm:$0xff]
        %v1703 = vld [vmem:[%s459 + $0x8] sm:$0xff]
        %v1704 = vstv %s1701
        %v1705 = vmul.f32 %v1704, %v1702
        %v1706 = vmul.f32 %v1704, %v1703
        %v1707 = vadd.f32 %v1699, %v1705
        %v1708 = vadd.f32 %v1700, %v1706
        %s1709 = sld [smem:[#allocation2 + $0x282]]
        %v1710 = vld [vmem:[%s468] sm:$0xff]
        %v1711 = vld [vmem:[%s468 + $0x8] sm:$0xff]
        %v1712 = vstv %s1709
        %v1713 = vmul.f32 %v1712, %v1710
        %v1714 = vmul.f32 %v1712, %v1711
        %v1715 = vadd.f32 %v1707, %v1713
        %v1716 = vadd.f32 %v1708, %v1714
        %s1717 = sld [smem:[#allocation2 + $0x283]]
        %v1718 = vld [vmem:[%s477] sm:$0xff]
        %v1719 = vld [vmem:[%s477 + $0x8] sm:$0xff]
        %v1720 = vstv %s1717
        %v1721 = vmul.f32 %v1720, %v1718
        %v1722 = vmul.f32 %v1720, %v1719
        %v1723 = vadd.f32 %v1715, %v1721
        %v1724 = vadd.f32 %v1716, %v1722
        %s1725 = sld [smem:[#allocation2 + $0x284]]
        %v1726 = vld [vmem:[%s486] sm:$0xff]
        %v1727 = vld [vmem:[%s486 + $0x8] sm:$0xff]
        %v1728 = vstv %s1725
        %v1729 = vmul.f32 %v1728, %v1726
        %v1730 = vmul.f32 %v1728, %v1727
        %v1731 = vadd.f32 %v1723, %v1729
        %v1732 = vadd.f32 %v1724, %v1730
        %s1733 = sld [smem:[#allocation2 + $0x285]]
        %v1734 = vld [vmem:[%s495] sm:$0xff]
        %v1735 = vld [vmem:[%s495 + $0x8] sm:$0xff]
        %v1736 = vstv %s1733
        %v1737 = vmul.f32 %v1736, %v1734
        %v1738 = vmul.f32 %v1736, %v1735
        %v1739 = vadd.f32 %v1731, %v1737
        %v1740 = vadd.f32 %v1732, %v1738
        %s1741 = sld [smem:[#allocation2 + $0x286]]
        %v1742 = vld [vmem:[%s504] sm:$0xff]
        %v1743 = vld [vmem:[%s504 + $0x8] sm:$0xff]
        %v1744 = vstv %s1741
        %v1745 = vmul.f32 %v1744, %v1742
        %v1746 = vmul.f32 %v1744, %v1743
        %v1747 = vadd.f32 %v1739, %v1745
        %v1748 = vadd.f32 %v1740, %v1746
        %s1749 = sld [smem:[#allocation2 + $0x287]]
        %v1750 = vld [vmem:[%s513] sm:$0xff]
        %v1751 = vld [vmem:[%s513 + $0x8] sm:$0xff]
        %v1752 = vstv %s1749
        %v1753 = vmul.f32 %v1752, %v1750
        %v1754 = vmul.f32 %v1752, %v1751
        %v1755 = vadd.f32 %v1747, %v1753
        %v1756 = vadd.f32 %v1748, %v1754
        %s1757 = sld [smem:[#allocation6 + $0x280]]
        %v1758 = vld [vmem:[%s391] sm:$0xff]
        %v1759 = vld [vmem:[%s391 + $0x8] sm:$0xff]
        %v1760 = vstv %s1757
        %v1761 = vmul.f32 %v1760, %v1758
        %v1762 = vmul.f32 %v1760, %v1759
        %v1763 = vadd.f32 %v1755, %v1761
        %v1764 = vadd.f32 %v1756, %v1762
        %s1765 = sld [smem:[#allocation6 + $0x281]]
        %v1766 = vld [vmem:[%s530] sm:$0xff]
        %v1767 = vld [vmem:[%s530 + $0x8] sm:$0xff]
        %v1768 = vstv %s1765
        %v1769 = vmul.f32 %v1768, %v1766
        %v1770 = vmul.f32 %v1768, %v1767
        %v1771 = vadd.f32 %v1763, %v1769
        %v1772 = vadd.f32 %v1764, %v1770
        %s1773 = sld [smem:[#allocation6 + $0x282]]
        %v1774 = vld [vmem:[%s539] sm:$0xff]
        %v1775 = vld [vmem:[%s539 + $0x8] sm:$0xff]
        %v1776 = vstv %s1773
        %v1777 = vmul.f32 %v1776, %v1774
        %v1778 = vmul.f32 %v1776, %v1775
        %v1779 = vadd.f32 %v1771, %v1777
        %v1780 = vadd.f32 %v1772, %v1778
        %s1781 = sld [smem:[#allocation6 + $0x283]]
        %v1782 = vld [vmem:[%s548] sm:$0xff]
        %v1783 = vld [vmem:[%s548 + $0x8] sm:$0xff]
        %v1784 = vstv %s1781
        %v1785 = vmul.f32 %v1784, %v1782
        %v1786 = vmul.f32 %v1784, %v1783
        %v1787 = vadd.f32 %v1779, %v1785
        %v1788 = vadd.f32 %v1780, %v1786
        %s1789 = sld [smem:[#allocation8 + $0x5]]
        %v1790 = vstv %s1789
        %v1791 = vadd.f32 %v1787, %v1790
        %v1792 = vadd.f32 %v1788, %v1790
        %s1793 = scalar_lea.vmem %s427, 80 [#allocation12]
        %1794 = vst.msk [vmem:[%s1793] sm:$0xff] %vm560, %v1791
        %1795 = vst.msk [vmem:[%s1793 + $0x8] sm:$0xff] %vm560, %v1792
        %1796 = vmatprep.subr.mxu0 0.0
        %1797 = vmatpush1.msra.mxu0 %v1791
        %1798 = vmatprep.subr.mxu0 0.0
        %1799 = vmatpush1.msra.mxu0 %v1792
        %1800 = vmatprep.subr.mxu0 0.0
        %1801 = vmatpush1.msra.mxu0 0.0
        %1802 = vmatprep.subr.mxu0 0.0
        %1803 = vmatpush1.msra.mxu0 0.0
        %1804 = vmatprep.subr.mxu0 0.0
        %1805 = vmatpush1.msra.mxu0 0.0
        %1806 = vmatprep.subr.mxu0 0.0
        %1807 = vmatpush1.msra.mxu0 0.0
        %1808 = vmatprep.subr.mxu0 0.0
        %1809 = vmatpush1.msra.mxu0 0.0
        %1810 = vmatprep.subr.mxu0 0.0
        %1811 = vmatpush1.msra.mxu0 0.0
        %1812 = vmatprep.subr.mxu0 0.0
        %1813 = vmatpush1.msra.mxu0 0.0
        %1814 = vmatprep.subr.mxu0 0.0
        %1815 = vmatpush1.msra.mxu0 0.0
        %1816 = vmatprep.subr.mxu0 0.0
        %1817 = vmatpush1.msra.mxu0 0.0
        %1818 = vmatprep.subr.mxu0 0.0
        %1819 = vmatpush1.msra.mxu0 0.0
        %1820 = vmatprep.subr.mxu0 0.0
        %1821 = vmatpush1.msra.mxu0 0.0
        %1822 = vmatprep.subr.mxu0 0.0
        %1823 = vmatpush1.msra.mxu0 0.0
        %1824 = vmatprep.subr.mxu0 0.0
        %1825 = vmatpush1.msra.mxu0 0.0
        %1826 = vmatprep.subr.mxu0 0.0
        %1827 = vmatpush1.msra.mxu0 0.0
        %1828 = vmatprep.subr.mxu0 0.0
        %1829 = vmatpush1.msra.mxu0 0.0
        %1830 = vmatprep.subr.mxu0 0.0
        %1831 = vmatpush1.msra.mxu0 0.0
        %1832 = vmatprep.subr.mxu0 0.0
        %1833 = vmatpush1.msra.mxu0 0.0
        %1834 = vmatprep.subr.mxu0 0.0
        %1835 = vmatpush1.msra.mxu0 0.0
        %1836 = vmatprep.subr.mxu0 0.0
        %1837 = vmatpush1.msra.mxu0 0.0
        %1838 = vmatprep.subr.mxu0 0.0
        %1839 = vmatpush1.msra.mxu0 0.0
        %1840 = vmatprep.subr.mxu0 0.0
        %1841 = vmatpush1.msra.mxu0 0.0
        %1842 = vmatprep.subr.mxu0 0.0
        %1843 = vmatpush1.msra.mxu0 0.0
        %1844 = vmatprep.subr.mxu0 0.0
        %1845 = vmatpush1.msra.mxu0 0.0
        %1846 = vmatprep.subr.mxu0 0.0
        %1847 = vmatpush1.msra.mxu0 0.0
        %1848 = vmatprep.subr.mxu0 0.0
        %1849 = vmatpush1.msra.mxu0 0.0
        %1850 = vmatprep.subr.mxu0 0.0
        %1851 = vmatpush1.msra.mxu0 0.0
        %1852 = vmatprep.subr.mxu0 0.0
        %1853 = vmatpush1.msra.mxu0 0.0
        %1854 = vmatprep.subr.mxu0 0.0
        %1855 = vmatpush1.msra.mxu0 0.0
        %1856 = vmatprep.subr.mxu0 0.0
        %1857 = vmatpush1.msra.mxu0 0.0
        %1858 = vmatprep.subr.mxu0 0.0
        %1859 = vmatpush1.msra.mxu0 0.0
        %1860 = vmatprep.mubr.f32.mxu0 0.0
        %1861 = vmatmul.mubr.f32.gmra.mrb[0].mxu0 %v564
        %v1862 = vpop.f32.mrb[0].mxu0
        %v1863 = vadd.f32 0.0, %v1862
        %v1864 = vpop.f32.mrb[0].mxu0
        %1865 = vdwg.mxu0
        %v1867 = vsel %vm560, %v1863, 0
        %1869 = vmatprep.subr.mxu0 0.0
        %1870 = vmatpush1.msra.mxu0 %v450
        %1871 = vmatprep.subr.mxu0 0.0
        %1872 = vmatpush1.msra.mxu0 %v451
        %1873 = vmatprep.subr.mxu0 0.0
        %1874 = vmatpush1.msra.mxu0 0.0
        %1875 = vmatprep.subr.mxu0 0.0
        %1876 = vmatpush1.msra.mxu0 0.0
        %1877 = vmatprep.subr.mxu0 0.0
        %1878 = vmatpush1.msra.mxu0 0.0
        %1879 = vmatprep.subr.mxu0 0.0
        %1880 = vmatpush1.msra.mxu0 0.0
        %1881 = vmatprep.subr.mxu0 0.0
        %1882 = vmatpush1.msra.mxu0 0.0
        %1883 = vmatprep.subr.mxu0 0.0
        %1884 = vmatpush1.msra.mxu0 0.0
        %1885 = vmatprep.subr.mxu0 0.0
        %1886 = vmatpush1.msra.mxu0 0.0
        %1887 = vmatprep.subr.mxu0 0.0
        %1888 = vmatpush1.msra.mxu0 0.0
        %1889 = vmatprep.subr.mxu0 0.0
        %1890 = vmatpush1.msra.mxu0 0.0
        %1891 = vmatprep.subr.mxu0 0.0
        %1892 = vmatpush1.msra.mxu0 0.0
        %1893 = vmatprep.subr.mxu0 0.0
        %1894 = vmatpush1.msra.mxu0 0.0
        %1895 = vmatprep.subr.mxu0 0.0
        %1896 = vmatpush1.msra.mxu0 0.0
        %1897 = vmatprep.subr.mxu0 0.0
        %1898 = vmatpush1.msra.mxu0 0.0
        %1899 = vmatprep.subr.mxu0 0.0
        %1900 = vmatpush1.msra.mxu0 0.0
        %1901 = vmatprep.subr.mxu0 0.0
        %1902 = vmatpush1.msra.mxu0 0.0
        %1903 = vmatprep.subr.mxu0 0.0
        %1904 = vmatpush1.msra.mxu0 0.0
        %1905 = vmatprep.subr.mxu0 0.0
        %1906 = vmatpush1.msra.mxu0 0.0
        %1907 = vmatprep.subr.mxu0 0.0
        %1908 = vmatpush1.msra.mxu0 0.0
        %1909 = vmatprep.subr.mxu0 0.0
        %1910 = vmatpush1.msra.mxu0 0.0
        %1911 = vmatprep.subr.mxu0 0.0
        %1912 = vmatpush1.msra.mxu0 0.0
        %1913 = vmatprep.subr.mxu0 0.0
        %1914 = vmatpush1.msra.mxu0 0.0
        %1915 = vmatprep.subr.mxu0 0.0
        %1916 = vmatpush1.msra.mxu0 0.0
        %1917 = vmatprep.subr.mxu0 0.0
        %1918 = vmatpush1.msra.mxu0 0.0
        %1919 = vmatprep.subr.mxu0 0.0
        %1920 = vmatpush1.msra.mxu0 0.0
        %1921 = vmatprep.subr.mxu0 0.0
        %1922 = vmatpush1.msra.mxu0 0.0
        %1923 = vmatprep.subr.mxu0 0.0
        %1924 = vmatpush1.msra.mxu0 0.0
        %1925 = vmatprep.subr.mxu0 0.0
        %1926 = vmatpush1.msra.mxu0 0.0
        %1927 = vmatprep.subr.mxu0 0.0
        %1928 = vmatpush1.msra.mxu0 0.0
        %1929 = vmatprep.subr.mxu0 0.0
        %1930 = vmatpush1.msra.mxu0 0.0
        %1931 = vmatprep.subr.mxu0 0.0
        %1932 = vmatpush1.msra.mxu0 0.0
        %1933 = vmatprep.mubr.f32.mxu0 0.0
        %1934 = vmatmul.mubr.f32.gmra.mrb[0].mxu0 %v1867
        %v1935 = vpop.f32.mrb[0].mxu0
        %v1936 = vadd.f32 0.0, %v1935
        %v1937 = vpop.f32.mrb[0].mxu0
        %1938 = vdwg.mxu0
        %s1939 = scalar_lea.vmem %s448, 20
        %1940 = vst.msk [vmem:[%s1939] sm:$0xf] %vm709, %v1936
        %s1941 = sld [smem:[#allocation2 + $0x300]]
        %v1942 = vld [vmem:[%s382] sm:$0xff]
        %v1943 = vld [vmem:[%s382 + $0x8] sm:$0xff]
        %v1944 = vstv %s1941
        %v1945 = vmul.f32 %v1944, %v1942
        %v1946 = vmul.f32 %v1944, %v1943
        %s1947 = sld [smem:[#allocation2 + $0x301]]
        %v1948 = vld [vmem:[%s459] sm:$0xff]
        %v1949 = vld [vmem:[%s459 + $0x8] sm:$0xff]
        %v1950 = vstv %s1947
        %v1951 = vmul.f32 %v1950, %v1948
        %v1952 = vmul.f32 %v1950, %v1949
        %v1953 = vadd.f32 %v1945, %v1951
        %v1954 = vadd.f32 %v1946, %v1952
        %s1955 = sld [smem:[#allocation2 + $0x302]]
        %v1956 = vld [vmem:[%s468] sm:$0xff]
        %v1957 = vld [vmem:[%s468 + $0x8] sm:$0xff]
        %v1958 = vstv %s1955
        %v1959 = vmul.f32 %v1958, %v1956
        %v1960 = vmul.f32 %v1958, %v1957
        %v1961 = vadd.f32 %v1953, %v1959
        %v1962 = vadd.f32 %v1954, %v1960
        %s1963 = sld [smem:[#allocation2 + $0x303]]
        %v1964 = vld [vmem:[%s477] sm:$0xff]
        %v1965 = vld [vmem:[%s477 + $0x8] sm:$0xff]
        %v1966 = vstv %s1963
        %v1967 = vmul.f32 %v1966, %v1964
        %v1968 = vmul.f32 %v1966, %v1965
        %v1969 = vadd.f32 %v1961, %v1967
        %v1970 = vadd.f32 %v1962, %v1968
        %s1971 = sld [smem:[#allocation2 + $0x304]]
        %v1972 = vld [vmem:[%s486] sm:$0xff]
        %v1973 = vld [vmem:[%s486 + $0x8] sm:$0xff]
        %v1974 = vstv %s1971
        %v1975 = vmul.f32 %v1974, %v1972
        %v1976 = vmul.f32 %v1974, %v1973
        %v1977 = vadd.f32 %v1969, %v1975
        %v1978 = vadd.f32 %v1970, %v1976
        %s1979 = sld [smem:[#allocation2 + $0x305]]
        %v1980 = vld [vmem:[%s495] sm:$0xff]
        %v1981 = vld [vmem:[%s495 + $0x8] sm:$0xff]
        %v1982 = vstv %s1979
        %v1983 = vmul.f32 %v1982, %v1980
        %v1984 = vmul.f32 %v1982, %v1981
        %v1985 = vadd.f32 %v1977, %v1983
        %v1986 = vadd.f32 %v1978, %v1984
        %s1987 = sld [smem:[#allocation2 + $0x306]]
        %v1988 = vld [vmem:[%s504] sm:$0xff]
        %v1989 = vld [vmem:[%s504 + $0x8] sm:$0xff]
        %v1990 = vstv %s1987
        %v1991 = vmul.f32 %v1990, %v1988
        %v1992 = vmul.f32 %v1990, %v1989
        %v1993 = vadd.f32 %v1985, %v1991
        %v1994 = vadd.f32 %v1986, %v1992
        %s1995 = sld [smem:[#allocation2 + $0x307]]
        %v1996 = vld [vmem:[%s513] sm:$0xff]
        %v1997 = vld [vmem:[%s513 + $0x8] sm:$0xff]
        %v1998 = vstv %s1995
        %v1999 = vmul.f32 %v1998, %v1996
        %v2000 = vmul.f32 %v1998, %v1997
        %v2001 = vadd.f32 %v1993, %v1999
        %v2002 = vadd.f32 %v1994, %v2000
        %s2003 = sld [smem:[#allocation6 + $0x300]]
        %v2004 = vld [vmem:[%s391] sm:$0xff]
        %v2005 = vld [vmem:[%s391 + $0x8] sm:$0xff]
        %v2006 = vstv %s2003
        %v2007 = vmul.f32 %v2006, %v2004
        %v2008 = vmul.f32 %v2006, %v2005
        %v2009 = vadd.f32 %v2001, %v2007
        %v2010 = vadd.f32 %v2002, %v2008
        %s2011 = sld [smem:[#allocation6 + $0x301]]
        %v2012 = vld [vmem:[%s530] sm:$0xff]
        %v2013 = vld [vmem:[%s530 + $0x8] sm:$0xff]
        %v2014 = vstv %s2011
        %v2015 = vmul.f32 %v2014, %v2012
        %v2016 = vmul.f32 %v2014, %v2013
        %v2017 = vadd.f32 %v2009, %v2015
        %v2018 = vadd.f32 %v2010, %v2016
        %s2019 = sld [smem:[#allocation6 + $0x302]]
        %v2020 = vld [vmem:[%s539] sm:$0xff]
        %v2021 = vld [vmem:[%s539 + $0x8] sm:$0xff]
        %v2022 = vstv %s2019
        %v2023 = vmul.f32 %v2022, %v2020
        %v2024 = vmul.f32 %v2022, %v2021
        %v2025 = vadd.f32 %v2017, %v2023
        %v2026 = vadd.f32 %v2018, %v2024
        %s2027 = sld [smem:[#allocation6 + $0x303]]
        %v2028 = vld [vmem:[%s548] sm:$0xff]
        %v2029 = vld [vmem:[%s548 + $0x8] sm:$0xff]
        %v2030 = vstv %s2027
        %v2031 = vmul.f32 %v2030, %v2028
        %v2032 = vmul.f32 %v2030, %v2029
        %v2033 = vadd.f32 %v2025, %v2031
        %v2034 = vadd.f32 %v2026, %v2032
        %s2035 = sld [smem:[#allocation8 + $0x6]]
        %v2036 = vstv %s2035
        %v2037 = vadd.f32 %v2033, %v2036
        %v2038 = vadd.f32 %v2034, %v2036
        %s2039 = scalar_lea.vmem %s427, 96 [#allocation12]
        %2040 = vst.msk [vmem:[%s2039] sm:$0xff] %vm560, %v2037
        %2041 = vst.msk [vmem:[%s2039 + $0x8] sm:$0xff] %vm560, %v2038
        %2042 = vmatprep.subr.mxu0 0.0
        %2043 = vmatpush1.msra.mxu0 %v2037
        %2044 = vmatprep.subr.mxu0 0.0
        %2045 = vmatpush1.msra.mxu0 %v2038
        %2046 = vmatprep.subr.mxu0 0.0
        %2047 = vmatpush1.msra.mxu0 0.0
        %2048 = vmatprep.subr.mxu0 0.0
        %2049 = vmatpush1.msra.mxu0 0.0
        %2050 = vmatprep.subr.mxu0 0.0
        %2051 = vmatpush1.msra.mxu0 0.0
        %2052 = vmatprep.subr.mxu0 0.0
        %2053 = vmatpush1.msra.mxu0 0.0
        %2054 = vmatprep.subr.mxu0 0.0
        %2055 = vmatpush1.msra.mxu0 0.0
        %2056 = vmatprep.subr.mxu0 0.0
        %2057 = vmatpush1.msra.mxu0 0.0
        %2058 = vmatprep.subr.mxu0 0.0
        %2059 = vmatpush1.msra.mxu0 0.0
        %2060 = vmatprep.subr.mxu0 0.0
        %2061 = vmatpush1.msra.mxu0 0.0
        %2062 = vmatprep.subr.mxu0 0.0
        %2063 = vmatpush1.msra.mxu0 0.0
        %2064 = vmatprep.subr.mxu0 0.0
        %2065 = vmatpush1.msra.mxu0 0.0
        %2066 = vmatprep.subr.mxu0 0.0
        %2067 = vmatpush1.msra.mxu0 0.0
        %2068 = vmatprep.subr.mxu0 0.0
        %2069 = vmatpush1.msra.mxu0 0.0
        %2070 = vmatprep.subr.mxu0 0.0
        %2071 = vmatpush1.msra.mxu0 0.0
        %2072 = vmatprep.subr.mxu0 0.0
        %2073 = vmatpush1.msra.mxu0 0.0
        %2074 = vmatprep.subr.mxu0 0.0
        %2075 = vmatpush1.msra.mxu0 0.0
        %2076 = vmatprep.subr.mxu0 0.0
        %2077 = vmatpush1.msra.mxu0 0.0
        %2078 = vmatprep.subr.mxu0 0.0
        %2079 = vmatpush1.msra.mxu0 0.0
        %2080 = vmatprep.subr.mxu0 0.0
        %2081 = vmatpush1.msra.mxu0 0.0
        %2082 = vmatprep.subr.mxu0 0.0
        %2083 = vmatpush1.msra.mxu0 0.0
        %2084 = vmatprep.subr.mxu0 0.0
        %2085 = vmatpush1.msra.mxu0 0.0
        %2086 = vmatprep.subr.mxu0 0.0
        %2087 = vmatpush1.msra.mxu0 0.0
        %2088 = vmatprep.subr.mxu0 0.0
        %2089 = vmatpush1.msra.mxu0 0.0
        %2090 = vmatprep.subr.mxu0 0.0
        %2091 = vmatpush1.msra.mxu0 0.0
        %2092 = vmatprep.subr.mxu0 0.0
        %2093 = vmatpush1.msra.mxu0 0.0
        %2094 = vmatprep.subr.mxu0 0.0
        %2095 = vmatpush1.msra.mxu0 0.0
        %2096 = vmatprep.subr.mxu0 0.0
        %2097 = vmatpush1.msra.mxu0 0.0
        %2098 = vmatprep.subr.mxu0 0.0
        %2099 = vmatpush1.msra.mxu0 0.0
        %2100 = vmatprep.subr.mxu0 0.0
        %2101 = vmatpush1.msra.mxu0 0.0
        %2102 = vmatprep.subr.mxu0 0.0
        %2103 = vmatpush1.msra.mxu0 0.0
        %2104 = vmatprep.subr.mxu0 0.0
        %2105 = vmatpush1.msra.mxu0 0.0
        %2106 = vmatprep.mubr.f32.mxu0 0.0
        %2107 = vmatmul.mubr.f32.gmra.mrb[0].mxu0 %v564
        %v2108 = vpop.f32.mrb[0].mxu0
        %v2109 = vadd.f32 0.0, %v2108
        %v2110 = vpop.f32.mrb[0].mxu0
        %2111 = vdwg.mxu0
        %v2113 = vsel %vm560, %v2109, 0
        %2115 = vmatprep.subr.mxu0 0.0
        %2116 = vmatpush1.msra.mxu0 %v450
        %2117 = vmatprep.subr.mxu0 0.0
        %2118 = vmatpush1.msra.mxu0 %v451
        %2119 = vmatprep.subr.mxu0 0.0
        %2120 = vmatpush1.msra.mxu0 0.0
        %2121 = vmatprep.subr.mxu0 0.0
        %2122 = vmatpush1.msra.mxu0 0.0
        %2123 = vmatprep.subr.mxu0 0.0
        %2124 = vmatpush1.msra.mxu0 0.0
        %2125 = vmatprep.subr.mxu0 0.0
        %2126 = vmatpush1.msra.mxu0 0.0
        %2127 = vmatprep.subr.mxu0 0.0
        %2128 = vmatpush1.msra.mxu0 0.0
        %2129 = vmatprep.subr.mxu0 0.0
        %2130 = vmatpush1.msra.mxu0 0.0
        %2131 = vmatprep.subr.mxu0 0.0
        %2132 = vmatpush1.msra.mxu0 0.0
        %2133 = vmatprep.subr.mxu0 0.0
        %2134 = vmatpush1.msra.mxu0 0.0
        %2135 = vmatprep.subr.mxu0 0.0
        %2136 = vmatpush1.msra.mxu0 0.0
        %2137 = vmatprep.subr.mxu0 0.0
        %2138 = vmatpush1.msra.mxu0 0.0
        %2139 = vmatprep.subr.mxu0 0.0
        %2140 = vmatpush1.msra.mxu0 0.0
        %2141 = vmatprep.subr.mxu0 0.0
        %2142 = vmatpush1.msra.mxu0 0.0
        %2143 = vmatprep.subr.mxu0 0.0
        %2144 = vmatpush1.msra.mxu0 0.0
        %2145 = vmatprep.subr.mxu0 0.0
        %2146 = vmatpush1.msra.mxu0 0.0
        %2147 = vmatprep.subr.mxu0 0.0
        %2148 = vmatpush1.msra.mxu0 0.0
        %2149 = vmatprep.subr.mxu0 0.0
        %2150 = vmatpush1.msra.mxu0 0.0
        %2151 = vmatprep.subr.mxu0 0.0
        %2152 = vmatpush1.msra.mxu0 0.0
        %2153 = vmatprep.subr.mxu0 0.0
        %2154 = vmatpush1.msra.mxu0 0.0
        %2155 = vmatprep.subr.mxu0 0.0
        %2156 = vmatpush1.msra.mxu0 0.0
        %2157 = vmatprep.subr.mxu0 0.0
        %2158 = vmatpush1.msra.mxu0 0.0
        %2159 = vmatprep.subr.mxu0 0.0
        %2160 = vmatpush1.msra.mxu0 0.0
        %2161 = vmatprep.subr.mxu0 0.0
        %2162 = vmatpush1.msra.mxu0 0.0
        %2163 = vmatprep.subr.mxu0 0.0
        %2164 = vmatpush1.msra.mxu0 0.0
        %2165 = vmatprep.subr.mxu0 0.0
        %2166 = vmatpush1.msra.mxu0 0.0
        %2167 = vmatprep.subr.mxu0 0.0
        %2168 = vmatpush1.msra.mxu0 0.0
        %2169 = vmatprep.subr.mxu0 0.0
        %2170 = vmatpush1.msra.mxu0 0.0
        %2171 = vmatprep.subr.mxu0 0.0
        %2172 = vmatpush1.msra.mxu0 0.0
        %2173 = vmatprep.subr.mxu0 0.0
        %2174 = vmatpush1.msra.mxu0 0.0
        %2175 = vmatprep.subr.mxu0 0.0
        %2176 = vmatpush1.msra.mxu0 0.0
        %2177 = vmatprep.subr.mxu0 0.0
        %2178 = vmatpush1.msra.mxu0 0.0
        %2179 = vmatprep.mubr.f32.mxu0 0.0
        %2180 = vmatmul.mubr.f32.gmra.mrb[0].mxu0 %v2113
        %v2181 = vpop.f32.mrb[0].mxu0
        %v2182 = vadd.f32 0.0, %v2181
        %v2183 = vpop.f32.mrb[0].mxu0
        %2184 = vdwg.mxu0
        %s2185 = scalar_lea.vmem %s448, 24
        %2186 = vst.msk [vmem:[%s2185] sm:$0xf] %vm709, %v2182
        %s2187 = sld [smem:[#allocation2 + $0x380]]
        %v2188 = vld [vmem:[%s382] sm:$0xff]
        %v2189 = vld [vmem:[%s382 + $0x8] sm:$0xff]
        %v2190 = vstv %s2187
        %v2191 = vmul.f32 %v2190, %v2188
        %v2192 = vmul.f32 %v2190, %v2189
        %s2193 = sld [smem:[#allocation2 + $0x381]]
        %v2194 = vld [vmem:[%s459] sm:$0xff]
        %v2195 = vld [vmem:[%s459 + $0x8] sm:$0xff]
        %v2196 = vstv %s2193
        %v2197 = vmul.f32 %v2196, %v2194
        %v2198 = vmul.f32 %v2196, %v2195
        %v2199 = vadd.f32 %v2191, %v2197
        %v2200 = vadd.f32 %v2192, %v2198
        %s2201 = sld [smem:[#allocation2 + $0x382]]
        %v2202 = vld [vmem:[%s468] sm:$0xff]
        %v2203 = vld [vmem:[%s468 + $0x8] sm:$0xff]
        %v2204 = vstv %s2201
        %v2205 = vmul.f32 %v2204, %v2202
        %v2206 = vmul.f32 %v2204, %v2203
        %v2207 = vadd.f32 %v2199, %v2205
        %v2208 = vadd.f32 %v2200, %v2206
        %s2209 = sld [smem:[#allocation2 + $0x383]]
        %v2210 = vld [vmem:[%s477] sm:$0xff]
        %v2211 = vld [vmem:[%s477 + $0x8] sm:$0xff]
        %v2212 = vstv %s2209
        %v2213 = vmul.f32 %v2212, %v2210
        %v2214 = vmul.f32 %v2212, %v2211
        %v2215 = vadd.f32 %v2207, %v2213
        %v2216 = vadd.f32 %v2208, %v2214
        %s2217 = sld [smem:[#allocation2 + $0x384]]
        %v2218 = vld [vmem:[%s486] sm:$0xff]
        %v2219 = vld [vmem:[%s486 + $0x8] sm:$0xff]
        %v2220 = vstv %s2217
        %v2221 = vmul.f32 %v2220, %v2218
        %v2222 = vmul.f32 %v2220, %v2219
        %v2223 = vadd.f32 %v2215, %v2221
        %v2224 = vadd.f32 %v2216, %v2222
        %s2225 = sld [smem:[#allocation2 + $0x385]]
        %v2226 = vld [vmem:[%s495] sm:$0xff]
        %v2227 = vld [vmem:[%s495 + $0x8] sm:$0xff]
        %v2228 = vstv %s2225
        %v2229 = vmul.f32 %v2228, %v2226
        %v2230 = vmul.f32 %v2228, %v2227
        %v2231 = vadd.f32 %v2223, %v2229
        %v2232 = vadd.f32 %v2224, %v2230
        %s2233 = sld [smem:[#allocation2 + $0x386]]
        %v2234 = vld [vmem:[%s504] sm:$0xff]
        %v2235 = vld [vmem:[%s504 + $0x8] sm:$0xff]
        %v2236 = vstv %s2233
        %v2237 = vmul.f32 %v2236, %v2234
        %v2238 = vmul.f32 %v2236, %v2235
        %v2239 = vadd.f32 %v2231, %v2237
        %v2240 = vadd.f32 %v2232, %v2238
        %s2241 = sld [smem:[#allocation2 + $0x387]]
        %v2242 = vld [vmem:[%s513] sm:$0xff]
        %v2243 = vld [vmem:[%s513 + $0x8] sm:$0xff]
        %v2244 = vstv %s2241
        %v2245 = vmul.f32 %v2244, %v2242
        %v2246 = vmul.f32 %v2244, %v2243
        %v2247 = vadd.f32 %v2239, %v2245
        %v2248 = vadd.f32 %v2240, %v2246
        %s2249 = sld [smem:[#allocation6 + $0x380]]
        %v2250 = vld [vmem:[%s391] sm:$0xff]
        %v2251 = vld [vmem:[%s391 + $0x8] sm:$0xff]
        %v2252 = vstv %s2249
        %v2253 = vmul.f32 %v2252, %v2250
        %v2254 = vmul.f32 %v2252, %v2251
        %v2255 = vadd.f32 %v2247, %v2253
        %v2256 = vadd.f32 %v2248, %v2254
        %s2257 = sld [smem:[#allocation6 + $0x381]]
        %v2258 = vld [vmem:[%s530] sm:$0xff]
        %v2259 = vld [vmem:[%s530 + $0x8] sm:$0xff]
        %v2260 = vstv %s2257
        %v2261 = vmul.f32 %v2260, %v2258
        %v2262 = vmul.f32 %v2260, %v2259
        %v2263 = vadd.f32 %v2255, %v2261
        %v2264 = vadd.f32 %v2256, %v2262
        %s2265 = sld [smem:[#allocation6 + $0x382]]
        %v2266 = vld [vmem:[%s539] sm:$0xff]
        %v2267 = vld [vmem:[%s539 + $0x8] sm:$0xff]
        %v2268 = vstv %s2265
        %v2269 = vmul.f32 %v2268, %v2266
        %v2270 = vmul.f32 %v2268, %v2267
        %v2271 = vadd.f32 %v2263, %v2269
        %v2272 = vadd.f32 %v2264, %v2270
        %s2273 = sld [smem:[#allocation6 + $0x383]]
        %v2274 = vld [vmem:[%s548] sm:$0xff]
        %v2275 = vld [vmem:[%s548 + $0x8] sm:$0xff]
        %v2276 = vstv %s2273
        %v2277 = vmul.f32 %v2276, %v2274
        %v2278 = vmul.f32 %v2276, %v2275
        %v2279 = vadd.f32 %v2271, %v2277
        %v2280 = vadd.f32 %v2272, %v2278
        %s2281 = sld [smem:[#allocation8 + $0x7]]
        %v2282 = vstv %s2281
        %v2283 = vadd.f32 %v2279, %v2282
        %v2284 = vadd.f32 %v2280, %v2282
        %s2285 = scalar_lea.vmem %s427, 112 [#allocation12]
        %2286 = vst.msk [vmem:[%s2285] sm:$0xff] %vm560, %v2283
        %2287 = vst.msk [vmem:[%s2285 + $0x8] sm:$0xff] %vm560, %v2284
        %2288 = vmatprep.subr.mxu0 0.0
        %2289 = vmatpush1.msra.mxu0 %v2283
        %2290 = vmatprep.subr.mxu0 0.0
        %2291 = vmatpush1.msra.mxu0 %v2284
        %2292 = vmatprep.subr.mxu0 0.0
        %2293 = vmatpush1.msra.mxu0 0.0
        %2294 = vmatprep.subr.mxu0 0.0
        %2295 = vmatpush1.msra.mxu0 0.0
        %2296 = vmatprep.subr.mxu0 0.0
        %2297 = vmatpush1.msra.mxu0 0.0
        %2298 = vmatprep.subr.mxu0 0.0
        %2299 = vmatpush1.msra.mxu0 0.0
        %2300 = vmatprep.subr.mxu0 0.0
        %2301 = vmatpush1.msra.mxu0 0.0
        %2302 = vmatprep.subr.mxu0 0.0
        %2303 = vmatpush1.msra.mxu0 0.0
        %2304 = vmatprep.subr.mxu0 0.0
        %2305 = vmatpush1.msra.mxu0 0.0
        %2306 = vmatprep.subr.mxu0 0.0
        %2307 = vmatpush1.msra.mxu0 0.0
        %2308 = vmatprep.subr.mxu0 0.0
        %2309 = vmatpush1.msra.mxu0 0.0
        %2310 = vmatprep.subr.mxu0 0.0
        %2311 = vmatpush1.msra.mxu0 0.0
        %2312 = vmatprep.subr.mxu0 0.0
        %2313 = vmatpush1.msra.mxu0 0.0
        %2314 = vmatprep.subr.mxu0 0.0
        %2315 = vmatpush1.msra.mxu0 0.0
        %2316 = vmatprep.subr.mxu0 0.0
        %2317 = vmatpush1.msra.mxu0 0.0
        %2318 = vmatprep.subr.mxu0 0.0
        %2319 = vmatpush1.msra.mxu0 0.0
        %2320 = vmatprep.subr.mxu0 0.0
        %2321 = vmatpush1.msra.mxu0 0.0
        %2322 = vmatprep.subr.mxu0 0.0
        %2323 = vmatpush1.msra.mxu0 0.0
        %2324 = vmatprep.subr.mxu0 0.0
        %2325 = vmatpush1.msra.mxu0 0.0
        %2326 = vmatprep.subr.mxu0 0.0
        %2327 = vmatpush1.msra.mxu0 0.0
        %2328 = vmatprep.subr.mxu0 0.0
        %2329 = vmatpush1.msra.mxu0 0.0
        %2330 = vmatprep.subr.mxu0 0.0
        %2331 = vmatpush1.msra.mxu0 0.0
        %2332 = vmatprep.subr.mxu0 0.0
        %2333 = vmatpush1.msra.mxu0 0.0
        %2334 = vmatprep.subr.mxu0 0.0
        %2335 = vmatpush1.msra.mxu0 0.0
        %2336 = vmatprep.subr.mxu0 0.0
        %2337 = vmatpush1.msra.mxu0 0.0
        %2338 = vmatprep.subr.mxu0 0.0
        %2339 = vmatpush1.msra.mxu0 0.0
        %2340 = vmatprep.subr.mxu0 0.0
        %2341 = vmatpush1.msra.mxu0 0.0
        %2342 = vmatprep.subr.mxu0 0.0
        %2343 = vmatpush1.msra.mxu0 0.0
        %2344 = vmatprep.subr.mxu0 0.0
        %2345 = vmatpush1.msra.mxu0 0.0
        %2346 = vmatprep.subr.mxu0 0.0
        %2347 = vmatpush1.msra.mxu0 0.0
        %2348 = vmatprep.subr.mxu0 0.0
        %2349 = vmatpush1.msra.mxu0 0.0
        %2350 = vmatprep.subr.mxu0 0.0
        %2351 = vmatpush1.msra.mxu0 0.0
        %2352 = vmatprep.mubr.f32.mxu0 0.0
        %2353 = vmatmul.mubr.f32.gmra.mrb[0].mxu0 %v564
        %v2354 = vpop.f32.mrb[0].mxu0
        %v2355 = vadd.f32 0.0, %v2354
        %v2356 = vpop.f32.mrb[0].mxu0
        %2357 = vdwg.mxu0
        %v2359 = vsel %vm560, %v2355, 0
        %2361 = vmatprep.subr.mxu0 0.0
        %2362 = vmatpush1.msra.mxu0 %v450
        %2363 = vmatprep.subr.mxu0 0.0
        %2364 = vmatpush1.msra.mxu0 %v451
        %2365 = vmatprep.subr.mxu0 0.0
        %2366 = vmatpush1.msra.mxu0 0.0
        %2367 = vmatprep.subr.mxu0 0.0
        %2368 = vmatpush1.msra.mxu0 0.0
        %2369 = vmatprep.subr.mxu0 0.0
        %2370 = vmatpush1.msra.mxu0 0.0
        %2371 = vmatprep.subr.mxu0 0.0
        %2372 = vmatpush1.msra.mxu0 0.0
        %2373 = vmatprep.subr.mxu0 0.0
        %2374 = vmatpush1.msra.mxu0 0.0
        %2375 = vmatprep.subr.mxu0 0.0
        %2376 = vmatpush1.msra.mxu0 0.0
        %2377 = vmatprep.subr.mxu0 0.0
        %2378 = vmatpush1.msra.mxu0 0.0
        %2379 = vmatprep.subr.mxu0 0.0
        %2380 = vmatpush1.msra.mxu0 0.0
        %2381 = vmatprep.subr.mxu0 0.0
        %2382 = vmatpush1.msra.mxu0 0.0
        %2383 = vmatprep.subr.mxu0 0.0
        %2384 = vmatpush1.msra.mxu0 0.0
        %2385 = vmatprep.subr.mxu0 0.0
        %2386 = vmatpush1.msra.mxu0 0.0
        %2387 = vmatprep.subr.mxu0 0.0
        %2388 = vmatpush1.msra.mxu0 0.0
        %2389 = vmatprep.subr.mxu0 0.0
        %2390 = vmatpush1.msra.mxu0 0.0
        %2391 = vmatprep.subr.mxu0 0.0
        %2392 = vmatpush1.msra.mxu0 0.0
        %2393 = vmatprep.subr.mxu0 0.0
        %2394 = vmatpush1.msra.mxu0 0.0
        %2395 = vmatprep.subr.mxu0 0.0
        %2396 = vmatpush1.msra.mxu0 0.0
        %2397 = vmatprep.subr.mxu0 0.0
        %2398 = vmatpush1.msra.mxu0 0.0
        %2399 = vmatprep.subr.mxu0 0.0
        %2400 = vmatpush1.msra.mxu0 0.0
        %2401 = vmatprep.subr.mxu0 0.0
        %2402 = vmatpush1.msra.mxu0 0.0
        %2403 = vmatprep.subr.mxu0 0.0
        %2404 = vmatpush1.msra.mxu0 0.0
        %2405 = vmatprep.subr.mxu0 0.0
        %2406 = vmatpush1.msra.mxu0 0.0
        %2407 = vmatprep.subr.mxu0 0.0
        %2408 = vmatpush1.msra.mxu0 0.0
        %2409 = vmatprep.subr.mxu0 0.0
        %2410 = vmatpush1.msra.mxu0 0.0
        %2411 = vmatprep.subr.mxu0 0.0
        %2412 = vmatpush1.msra.mxu0 0.0
        %2413 = vmatprep.subr.mxu0 0.0
        %2414 = vmatpush1.msra.mxu0 0.0
        %2415 = vmatprep.subr.mxu0 0.0
        %2416 = vmatpush1.msra.mxu0 0.0
        %2417 = vmatprep.subr.mxu0 0.0
        %2418 = vmatpush1.msra.mxu0 0.0
        %2419 = vmatprep.subr.mxu0 0.0
        %2420 = vmatpush1.msra.mxu0 0.0
        %2421 = vmatprep.subr.mxu0 0.0
        %2422 = vmatpush1.msra.mxu0 0.0
        %2423 = vmatprep.subr.mxu0 0.0
        %2424 = vmatpush1.msra.mxu0 0.0
        %2425 = vmatprep.mubr.f32.mxu0 0.0
        %2426 = vmatmul.mubr.f32.gmra.mrb[0].mxu0 %v2359
        %v2427 = vpop.f32.mrb[0].mxu0
        %v2428 = vadd.f32 0.0, %v2427
        %v2429 = vpop.f32.mrb[0].mxu0
        %2430 = vdwg.mxu0
        %s2431 = scalar_lea.vmem %s448, 28
        %2432 = vst.msk [vmem:[%s2431] sm:$0xf] %vm709, %v2428
        %s2433 = sand.u32 %s214, 1
        %s2434 = scalar_lea.sflag [#allocation4], %s2433
        %s2435 = sand.u32 %s214, 1
        %s2436 = smul.addr %s2435, 128
        %s2437 = scalar_lea.vmem [#allocation12], %s2436
        %p2438 = scmp.lt.s32.totalorder %s35, 1
        %s2439 = scalar_select %p2438, %s35, 1
        %p2440 = scmp.lt.s32.totalorder %s36, 0
        %s2441 = scalar_select %p2440, %s36, 0
        %s2442 = smul.addr %s2439, 8
        %s2443 = sadd.s32 %s2441, %s2442
        %s2444 = smul.addr %s2443, 4
        %s2445 = scalar_lea.vmem %s8, %s2444
        // Predicated region
        $region69: #{tpu_custom_call.1} parent=47 // pred_check
          %p2446 = pneg %p224
        $region70: #{tpu_custom_call.1} parent=47 // pred_check_branch
          %2448 = sbr.rel (%p2446) target = $region72
        $region71: #{tpu_custom_call.1} parent=47 // pred_region
          %s2449 = smul.u32 2, %s36
          %s2451 = ssub.s32 2048, 2048
          %2452 = vsyncadd %s2434, %s2451
          %s2453 = smul.addr %s35, 16
          %s2454 = sadd.s32 %s2449, %s2453
          %s2455 = smul.addr %s2454, 128
          %s2456 = scalar_lea.hbm %s7, %s2455
          %s2457 = sshll.u32 %s2437, 4
          %s2458 = int_to_ptr.vmem [resolvable:$true] %s2457
          %2463 = dma.vmem_to_hbm [thread:$0]  %s2458, 2048, %s2456, %s2434, 128, 128, 8
        $region72: #{tpu_custom_call.1} parent=47 // pred_fallthru
          _
        // Predicated region
        $region73: #{tpu_custom_call.1} parent=47 // pred_check
          %p2464 = pneg %p252
        $region74: #{tpu_custom_call.1} parent=47 // pred_check_branch
          %2466 = sbr.rel (%p2464) target = $region76
        $region75: #{tpu_custom_call.1} parent=47 // pred_region
          _
        $region76: #{tpu_custom_call.1} parent=47 // pred_fallthru
          _
      $region48: #{tpu_custom_call.1} parent=5 // pred_fallthru
        _
      %p2467 = scmp.le.s32.totalorder 2, %s26
      // Predicated region
      $region77: #{tpu_custom_call.1} parent=5 // pred_check
        %p2468 = pneg %p2467
      $region78: #{tpu_custom_call.1} parent=5 // pred_check_branch
        %2470 = sbr.rel (%p2468) target = $region80
      $region79: #{tpu_custom_call.1} parent=5 // pred_region
        %s2471 = ssub.s32 %s26, 2
        // Predicated region
        $region81: #{tpu_custom_call.1} parent=79 // pred_check
          %p2472 = pneg %p230
        $region82: #{tpu_custom_call.1} parent=79 // pred_check_branch
          %2474 = sbr.rel (%p2472) target = $region84
        $region83: #{tpu_custom_call.1} parent=79 // pred_region
          %s2475 = sand.u32 %s215, 1
          %s2476 = scalar_lea.sflag [#allocation4], %s2475
          %s2477 = sand.u32 %s215, 1
          %s2478 = smul.addr %s2477, 128
          %s2479 = scalar_lea.vmem [#allocation12], %s2478
          %2480 = dma.done %s2476, 2048
        $region84: #{tpu_custom_call.1} parent=79 // pred_fallthru
          _
        // Predicated region
        $region85: #{tpu_custom_call.1} parent=79 // pred_check
          %p2481 = pneg %p258
        $region86: #{tpu_custom_call.1} parent=79 // pred_check_branch
          %2483 = sbr.rel (%p2481) target = $region88
        $region87: #{tpu_custom_call.1} parent=79 // pred_region
          %p2484 = scmp.lt.s32.totalorder %s37, 1
          %s2485 = scalar_select %p2484, %s37, 1
          %p2486 = scmp.lt.s32.totalorder %s38, 0
          %s2487 = scalar_select %p2486, %s38, 0
          %s2488 = smul.addr %s2485, 8
          %s2489 = sadd.s32 %s2487, %s2488
          %s2490 = smul.addr %s2489, 4
          %s2491 = scalar_lea.vmem %s8, %s2490
        $region88: #{tpu_custom_call.1} parent=79 // pred_fallthru
          _
      $region80: #{tpu_custom_call.1} parent=5 // pred_fallthru
        _
    $region6: #{tpu_custom_call.1} parent=1 // loop_footer
      %s30 = sadd.s32 1, %s26
    $region7: #{tpu_custom_call.1} parent=1 // loop_footer_branch
      %25 = sbr.rel target = $region3
    $region8: #{tpu_custom_call.1} parent=1 // loop_exit
      _
    %2492 = vsyncpa [#allocation3], 1
    %s2493 = scalar_lea.sflag [#allocation3], 1
    %2494 = vsyncpa %s2493, 1
    %2495 = vsyncpa [#allocation11], 1
    %s2496 = scalar_lea.sflag [#allocation11], 1
    %2497 = vsyncpa %s2496, 1
    %2498 = vsyncpa [#allocation4], 1
    %s2499 = scalar_lea.sflag [#allocation4], 1
    %2500 = vsyncpa %s2499, 1
    %2501 = vsyncpa [#allocation5], 1
    %s2502 = scalar_lea.sflag [#allocation5], 1
    %2503 = vsyncpa %s2502, 1
    %2504 = vsyncpa [#allocation7], 1

</llo_original>
